<compile_context>
chip_gen: v7x
topology: tpu7x:2x2x1
jax: 0.10.0
libtpu: 0.0.40
codegen_flags: <defaults>
</compile_context>

<pallas_src>
import functools

import jax
import jax.numpy as jnp
from jax.experimental import pallas as pl
from jax.experimental.pallas import tpu as pltpu

codebook = {"UNK": 0, "PAD": 1}


# ------------------------------ Pallas kernel ------------------------------- #

def _fused_rnn_kernel(*refs, seq_len, batch, hidden_dim, num_layers):
    """Fused multi-layer GRU + mean-over-time + linear projection.

    refs (inputs, then output, then scratch):
      x_ref                   : (S*B, E)
      per layer l:
        wih_ref               : (3, I_l, H)   per-gate input weights  (r, z, n)
        whh_ref               : (3, H,  H)    per-gate hidden weights (r, z, n)
        bgi_ref               : (3, 1,  H)    biases folded into gi   (r, z, n)
        bhn_ref               : (1, H)        b_hh_n (stays inside r*(.))
      wp_ref                  : (H, C)
      bp_ref                  : (1, C)
      o_ref   (output)        : (B, C)
      act_ref (VMEM scratch)  : (S*B, H)      inter-layer activations
    """
    S, B, H = seq_len, batch, hidden_dim
    x_ref = refs[0]
    layer_refs = refs[1:1 + 4 * num_layers]
    wp_ref = refs[1 + 4 * num_layers]
    bp_ref = refs[2 + 4 * num_layers]
    o_ref = refs[3 + 4 * num_layers]
    act_ref = refs[4 + 4 * num_layers]

    cur_in = x_ref
    for layer in range(num_layers):
        wih_ref, whh_ref, bgi_ref, bhn_ref = layer_refs[4 * layer:4 * layer + 4]
        last = layer == num_layers - 1

        xin = cur_in[...]                                       # (S*B, I)

        # Input-side gate pre-activations for ALL timesteps (off the serial
        # path): one MXU matmul per gate, biases outside the r-gate product
        # already folded in by the wrapper.
        gi_r = (jnp.dot(xin, wih_ref[0], preferred_element_type=jnp.float32)
                + bgi_ref[0])                                   # (S*B, H)
        gi_z = (jnp.dot(xin, wih_ref[1], preferred_element_type=jnp.float32)
                + bgi_ref[1])
        gi_n = (jnp.dot(xin, wih_ref[2], preferred_element_type=jnp.float32)
                + bgi_ref[2])

        # Hoist per-layer hidden weights / the one bias that must stay inside
        # r * (h @ W_hn + b_hn).
        whh_r, whh_z, whh_n = whh_ref[0], whh_ref[1], whh_ref[2]
        bhh_n = bhn_ref[...]

        h = jnp.zeros((B, H), jnp.float32)       # carried in vregs
        acc = jnp.zeros((B, H), jnp.float32)     # running sum for the mean
        for t in range(S):                       # fully unrolled, static indices
            lo = t * B
            gh_r = jnp.dot(h, whh_r, preferred_element_type=jnp.float32)
            gh_z = jnp.dot(h, whh_z, preferred_element_type=jnp.float32)
            gh_n = jnp.dot(h, whh_n, preferred_element_type=jnp.float32) + bhh_n
            r = jax.nn.sigmoid(gi_r[lo:lo + B, :] + gh_r)
            z = jax.nn.sigmoid(gi_z[lo:lo + B, :] + gh_z)
            n = jnp.tanh(gi_n[lo:lo + B, :] + r * gh_n)
            h = (1.0 - z) * n + z * h
            if last:
                acc = acc + h                    # mean accumulates in registers
            else:
                act_ref[lo:lo + B, :] = h        # feed next layer (VMEM only)

        if last:
            mean = acc * (1.0 / S)
            o_ref[...] = (jnp.dot(mean, wp_ref[...],
                                  preferred_element_type=jnp.float32)
                          + bp_ref[...])
        else:
            cur_in = act_ref


# ------------------------------ JAX wrapper --------------------------------- #

def rnn_mp_forward(source, params, hidden_dim):
    """Pallas implementation of RNN_MP.forward.  source: (B, S) int32."""
    B, S = source.shape
    H = hidden_dim
    num_layers = len(params["gru"])

    # Glue: embedding gather + transpose to time-major, flatten (S, B) -> S*B.
    emb = jnp.take(params["embedding"], source, axis=0)          # (B, S, E)
    x = jnp.transpose(emb, (1, 0, 2)).astype(jnp.float32)        # (S, B, E)
    E = x.shape[-1]
    x2 = x.reshape(S * B, E)

    # Repack PyTorch-format weights into per-gate leading-axis stacks and fold
    # the biases that sit outside the r-gate product (r/z gates, and b_ih_n).
    args = [x2]
    for lp in params["gru"]:
        in_dim = lp["w_ih"].shape[1]
        wih_g = lp["w_ih"].reshape(3, H, in_dim).transpose(0, 2, 1)  # (3, I, H)
        whh_g = lp["w_hh"].reshape(3, H, H).transpose(0, 2, 1)       # (3, H, H)
        bih_g = lp["b_ih"].reshape(3, 1, H)
        bhh_g = lp["b_hh"].reshape(3, 1, H)
        b_gi = jnp.stack([bih_g[0] + bhh_g[0],      # r
                          bih_g[1] + bhh_g[1],      # z
                          bih_g[2]], axis=0)        # n (input side only)
        b_hn = bhh_g[2]                             # (1, H), stays inside r*(.)
        args += [wih_g, whh_g, b_gi, b_hn]
    args += [params["proj_w"].T, params["proj_b"].reshape(1, -1)]

    C = params["proj_b"].shape[0]
    kernel = functools.partial(_fused_rnn_kernel, seq_len=S, batch=B,
                               hidden_dim=H, num_layers=num_layers)
    # TODO(synk): for a scaled-up model (larger B/H/S), add a batch grid axis
    # marked "parallel" (v7x 2-TC sharding) and bf16 weight casts; unnecessary
    # at these toy shapes.
    return pl.pallas_call(
        kernel,
        out_shape=jax.ShapeDtypeStruct((B, C), jnp.float32),
        in_specs=[pl.BlockSpec(memory_space=pltpu.MemorySpace.VMEM)] * len(args),
        out_specs=pl.BlockSpec(memory_space=pltpu.MemorySpace.VMEM),
        scratch_shapes=[pltpu.VMEM((S * B, H), jnp.float32)],
    )(*args)


# --------------------------- reference (pure JAX) --------------------------- #

def rnn_mp_reference(source, params, hidden_dim):
    H = hidden_dim
    emb = jnp.take(params["embedding"], source, axis=0)
    x = jnp.transpose(emb, (1, 0, 2)).astype(jnp.float32)        # (S, B, E)
    for lp in params["gru"]:
        S, B, _ = x.shape
        w_ih_t = lp["w_ih"].T
        w_hh_t = lp["w_hh"].T
        h = jnp.zeros((B, H), jnp.float32)
        outs = []
        for t in range(S):
            gi = x[t] @ w_ih_t + lp["b_ih"]
            gh = h @ w_hh_t + lp["b_hh"]
            r = jax.nn.sigmoid(gi[:, 0:H] + gh[:, 0:H])
            z = jax.nn.sigmoid(gi[:, H:2 * H] + gh[:, H:2 * H])
            n = jnp.tanh(gi[:, 2 * H:] + r * gh[:, 2 * H:])
            h = (1.0 - z) * n + z * h
            outs.append(h)
        x = jnp.stack(outs, axis=0)
    m = jnp.mean(x, axis=0)
    return m @ params["proj_w"].T + params["proj_b"]


# ------------------------------ parameter init ------------------------------ #

def init_params(key, vocab_size, embed_dim, hidden_dim, num_layers, n_class):
    keys = jax.random.split(key, 3 + 4 * num_layers)
    ki = iter(keys)
    params = {}
    # nn.Embedding: N(0, 1)
    params["embedding"] = jax.random.normal(next(ki), (vocab_size, embed_dim),
                                            jnp.float32)
    # nn.GRU: U(-1/sqrt(H), 1/sqrt(H)), PyTorch layout (3H, in) / (3H, H),
    # gate order (r, z, n).
    s = hidden_dim ** -0.5
    gru = []
    for layer in range(num_layers):
        in_dim = embed_dim if layer == 0 else hidden_dim
        gru.append({
            "w_ih": jax.random.uniform(next(ki), (3 * hidden_dim, in_dim),
                                       jnp.float32, -s, s),
            "w_hh": jax.random.uniform(next(ki), (3 * hidden_dim, hidden_dim),
                                       jnp.float32, -s, s),
            "b_ih": jax.random.uniform(next(ki), (3 * hidden_dim,),
                                       jnp.float32, -s, s),
            "b_hh": jax.random.uniform(next(ki), (3 * hidden_dim,),
                                       jnp.float32, -s, s),
        })
    params["gru"] = gru
    # nn.Linear(H, n_class)
    params["proj_w"] = jax.random.uniform(next(ki), (n_class, hidden_dim),
                                          jnp.float32, -s, s)
    params["proj_b"] = jax.random.uniform(next(ki), (n_class,),
                                          jnp.float32, -s, s)
    return params


# ----------------------------------- main ----------------------------------- #

if __name__ == "__main__":
    embed_dim, hidden_dim, num_layers, n_class = 16, 32, 2, 4
    batch, seq = 2, 8
    vocab_size = len(codebook)

    key = jax.random.PRNGKey(0)
    k_param, k_src = jax.random.split(key)
    params = init_params(k_param, vocab_size, embed_dim, hidden_dim,
                         num_layers, n_class)
    source = jax.random.randint(k_src, (batch, seq), 0, vocab_size, jnp.int32)

    out = jax.block_until_ready(rnn_mp_forward(source, params, hidden_dim))
    ref = jax.block_until_ready(rnn_mp_reference(source, params, hidden_dim))

    assert out.shape == (batch, n_class)
    assert jnp.allclose(out, ref, atol=1e-5, rtol=1e-5), "mismatch vs reference"

    print("KERNEL_OK")
</pallas_src>

<mosaic_0001>
module attributes {stable_mosaic.version = 11 : i64} {
  func.func @_fused_rnn_kernel(%arg0: memref<16x16xf32, #tpu.memory_space<vmem>>, %arg1: memref<3x16x32xf32, #tpu.memory_space<vmem>>, %arg2: memref<3x32x32xf32, #tpu.memory_space<vmem>>, %arg3: memref<3x1x32xf32, #tpu.memory_space<vmem>>, %arg4: memref<1x32xf32, #tpu.memory_space<vmem>>, %arg5: memref<3x32x32xf32, #tpu.memory_space<vmem>>, %arg6: memref<3x32x32xf32, #tpu.memory_space<vmem>>, %arg7: memref<3x1x32xf32, #tpu.memory_space<vmem>>, %arg8: memref<1x32xf32, #tpu.memory_space<vmem>>, %arg9: memref<32x4xf32, #tpu.memory_space<vmem>>, %arg10: memref<1x4xf32, #tpu.memory_space<vmem>>, %arg11: memref<2x4xf32, #tpu.memory_space<vmem>>, %arg12: memref<16x32xf32, #tpu.memory_space<vmem>>) attributes {dimension_semantics = [], scalar_prefetch = 0 : i64, scratch_operands = 1 : i64, tpu.core_type = #tpu.core_type<tc>} {
    %c0 = arith.constant 0 : index
    %c0_0 = arith.constant 0 : index
    %0 = vector.load %arg0[%c0, %c0_0] : memref<16x16xf32, #tpu.memory_space<vmem>>, vector<16x16xf32>
    %c0_1 = arith.constant 0 : index
    %c0_2 = arith.constant 0 : index
    %c0_3 = arith.constant 0 : index
    %1 = vector.load %arg1[%c0_1, %c0_2, %c0_3] : memref<3x16x32xf32, #tpu.memory_space<vmem>>, vector<1x16x32xf32>
    %2 = vector.shape_cast %1 : vector<1x16x32xf32> to vector<16x32xf32>
    %cst = arith.constant dense<0.000000e+00> : vector<16x32xf32>
    %3 = tpu.matmul %0, %2, %cst {dimension_numbers = #tpu.dot_dimension_numbers<[1], [0], [0], [1], [0, 0, 1, 1], [], []>} : vector<16x16xf32>, vector<16x32xf32>, vector<16x32xf32> -> vector<16x32xf32>
    %c0_4 = arith.constant 0 : index
    %c0_5 = arith.constant 0 : index
    %c0_6 = arith.constant 0 : index
    %4 = vector.load %arg3[%c0_4, %c0_5, %c0_6] : memref<3x1x32xf32, #tpu.memory_space<vmem>>, vector<1x1x32xf32>
    %5 = vector.shape_cast %4 : vector<1x1x32xf32> to vector<1x32xf32>
    %6 = vector.broadcast %5 : vector<1x32xf32> to vector<16x32xf32>
    %7 = arith.addf %3, %6 : vector<16x32xf32>
    %c1 = arith.constant 1 : index
    %c0_7 = arith.constant 0 : index
    %c0_8 = arith.constant 0 : index
    %8 = vector.load %arg1[%c1, %c0_7, %c0_8] : memref<3x16x32xf32, #tpu.memory_space<vmem>>, vector<1x16x32xf32>
    %9 = vector.shape_cast %8 : vector<1x16x32xf32> to vector<16x32xf32>
    %cst_9 = arith.constant dense<0.000000e+00> : vector<16x32xf32>
    %10 = tpu.matmul %0, %9, %cst_9 {dimension_numbers = #tpu.dot_dimension_numbers<[1], [0], [0], [1], [0, 0, 1, 1], [], []>} : vector<16x16xf32>, vector<16x32xf32>, vector<16x32xf32> -> vector<16x32xf32>
    %c1_10 = arith.constant 1 : index
    %c0_11 = arith.constant 0 : index
    %c0_12 = arith.constant 0 : index
    %11 = vector.load %arg3[%c1_10, %c0_11, %c0_12] : memref<3x1x32xf32, #tpu.memory_space<vmem>>, vector<1x1x32xf32>
    %12 = vector.shape_cast %11 : vector<1x1x32xf32> to vector<1x32xf32>
    %13 = vector.broadcast %12 : vector<1x32xf32> to vector<16x32xf32>
    %14 = arith.addf %10, %13 : vector<16x32xf32>
    %c2 = arith.constant 2 : index
    %c0_13 = arith.constant 0 : index
    %c0_14 = arith.constant 0 : index
    %15 = vector.load %arg1[%c2, %c0_13, %c0_14] : memref<3x16x32xf32, #tpu.memory_space<vmem>>, vector<1x16x32xf32>
    %16 = vector.shape_cast %15 : vector<1x16x32xf32> to vector<16x32xf32>
    %cst_15 = arith.constant dense<0.000000e+00> : vector<16x32xf32>
    %17 = tpu.matmul %0, %16, %cst_15 {dimension_numbers = #tpu.dot_dimension_numbers<[1], [0], [0], [1], [0, 0, 1, 1], [], []>} : vector<16x16xf32>, vector<16x32xf32>, vector<16x32xf32> -> vector<16x32xf32>
    %c2_16 = arith.constant 2 : index
    %c0_17 = arith.constant 0 : index
    %c0_18 = arith.constant 0 : index
    %18 = vector.load %arg3[%c2_16, %c0_17, %c0_18] : memref<3x1x32xf32, #tpu.memory_space<vmem>>, vector<1x1x32xf32>
    %19 = vector.shape_cast %18 : vector<1x1x32xf32> to vector<1x32xf32>
    %20 = vector.broadcast %19 : vector<1x32xf32> to vector<16x32xf32>
    %21 = arith.addf %17, %20 : vector<16x32xf32>
    %c0_19 = arith.constant 0 : index
    %c0_20 = arith.constant 0 : index
    %c0_21 = arith.constant 0 : index
    %22 = vector.load %arg2[%c0_19, %c0_20, %c0_21] : memref<3x32x32xf32, #tpu.memory_space<vmem>>, vector<1x32x32xf32>
    %23 = vector.shape_cast %22 : vector<1x32x32xf32> to vector<32x32xf32>
    %c1_22 = arith.constant 1 : index
    %c0_23 = arith.constant 0 : index
    %c0_24 = arith.constant 0 : index
    %24 = vector.load %arg2[%c1_22, %c0_23, %c0_24] : memref<3x32x32xf32, #tpu.memory_space<vmem>>, vector<1x32x32xf32>
    %25 = vector.shape_cast %24 : vector<1x32x32xf32> to vector<32x32xf32>
    %c2_25 = arith.constant 2 : index
    %c0_26 = arith.constant 0 : index
    %c0_27 = arith.constant 0 : index
    %26 = vector.load %arg2[%c2_25, %c0_26, %c0_27] : memref<3x32x32xf32, #tpu.memory_space<vmem>>, vector<1x32x32xf32>
    %27 = vector.shape_cast %26 : vector<1x32x32xf32> to vector<32x32xf32>
    %c0_28 = arith.constant 0 : index
    %c0_29 = arith.constant 0 : index
    %28 = vector.load %arg4[%c0_28, %c0_29] : memref<1x32xf32, #tpu.memory_space<vmem>>, vector<1x32xf32>
    %cst_30 = arith.constant 0.000000e+00 : f32
    %29 = vector.broadcast %cst_30 : f32 to vector<2x32xf32>
    %cst_31 = arith.constant dense<0.000000e+00> : vector<2x32xf32>
    %30 = tpu.matmul %29, %23, %cst_31 {dimension_numbers = #tpu.dot_dimension_numbers<[1], [0], [0], [1], [0, 0, 1, 1], [], []>} : vector<2x32xf32>, vector<32x32xf32>, vector<2x32xf32> -> vector<2x32xf32>
    %cst_32 = arith.constant dense<0.000000e+00> : vector<2x32xf32>
    %31 = tpu.matmul %29, %25, %cst_32 {dimension_numbers = #tpu.dot_dimension_numbers<[1], [0], [0], [1], [0, 0, 1, 1], [], []>} : vector<2x32xf32>, vector<32x32xf32>, vector<2x32xf32> -> vector<2x32xf32>
    %cst_33 = arith.constant dense<0.000000e+00> : vector<2x32xf32>
    %32 = tpu.matmul %29, %27, %cst_33 {dimension_numbers = #tpu.dot_dimension_numbers<[1], [0], [0], [1], [0, 0, 1, 1], [], []>} : vector<2x32xf32>, vector<32x32xf32>, vector<2x32xf32> -> vector<2x32xf32>
    %33 = vector.broadcast %28 : vector<1x32xf32> to vector<2x32xf32>
    %34 = arith.addf %32, %33 : vector<2x32xf32>
    %35 = vector.extract_strided_slice %7 {offsets = [0, 0], sizes = [2, 32], strides = [1, 1]} : vector<16x32xf32> to vector<2x32xf32>
    %36 = arith.addf %35, %30 : vector<2x32xf32>
    %37 = arith.negf %36 : vector<2x32xf32>
    %38 = math.exp %37 : vector<2x32xf32>
    %cst_34 = arith.constant 1.000000e+00 : f32
    %39 = vector.broadcast %cst_34 : f32 to vector<2x32xf32>
    %40 = arith.addf %39, %38 : vector<2x32xf32>
    %41 = arith.divf %39, %40 : vector<2x32xf32>
    %42 = vector.extract_strided_slice %14 {offsets = [0, 0], sizes = [2, 32], strides = [1, 1]} : vector<16x32xf32> to vector<2x32xf32>
    %43 = arith.addf %42, %31 : vector<2x32xf32>
    %44 = arith.negf %43 : vector<2x32xf32>
    %45 = math.exp %44 : vector<2x32xf32>
    %cst_35 = arith.constant 1.000000e+00 : f32
    %46 = vector.broadcast %cst_35 : f32 to vector<2x32xf32>
    %47 = arith.addf %46, %45 : vector<2x32xf32>
    %48 = arith.divf %46, %47 : vector<2x32xf32>
    %49 = vector.extract_strided_slice %21 {offsets = [0, 0], sizes = [2, 32], strides = [1, 1]} : vector<16x32xf32> to vector<2x32xf32>
    %50 = arith.mulf %41, %34 : vector<2x32xf32>
    %51 = arith.addf %49, %50 : vector<2x32xf32>
    %52 = math.tanh %51 : vector<2x32xf32>
    %cst_36 = arith.constant 1.000000e+00 : f32
    %53 = vector.broadcast %cst_36 : f32 to vector<2x32xf32>
    %54 = arith.subf %53, %48 : vector<2x32xf32>
    %55 = arith.mulf %54, %52 : vector<2x32xf32>
    %56 = arith.mulf %48, %29 : vector<2x32xf32>
    %57 = arith.addf %55, %56 : vector<2x32xf32>
    %c0_37 = arith.constant 0 : index
    %c0_38 = arith.constant 0 : index
    %58 = vector.load %arg12[%c0_37, %c0_38] : memref<16x32xf32, #tpu.memory_space<vmem>>, vector<2x32xf32>
    tpu.vector_store %arg12[%c0_37, %c0_38], %57 {strides = array<i32>} : memref<16x32xf32, #tpu.memory_space<vmem>>, vector<2x32xf32>,
    %cst_39 = arith.constant dense<0.000000e+00> : vector<2x32xf32>
    %59 = tpu.matmul %57, %23, %cst_39 {dimension_numbers = #tpu.dot_dimension_numbers<[1], [0], [0], [1], [0, 0, 1, 1], [], []>} : vector<2x32xf32>, vector<32x32xf32>, vector<2x32xf32> -> vector<2x32xf32>
    %cst_40 = arith.constant dense<0.000000e+00> : vector<2x32xf32>
    %60 = tpu.matmul %57, %25, %cst_40 {dimension_numbers = #tpu.dot_dimension_numbers<[1], [0], [0], [1], [0, 0, 1, 1], [], []>} : vector<2x32xf32>, vector<32x32xf32>, vector<2x32xf32> -> vector<2x32xf32>
    %cst_41 = arith.constant dense<0.000000e+00> : vector<2x32xf32>
    %61 = tpu.matmul %57, %27, %cst_41 {dimension_numbers = #tpu.dot_dimension_numbers<[1], [0], [0], [1], [0, 0, 1, 1], [], []>} : vector<2x32xf32>, vector<32x32xf32>, vector<2x32xf32> -> vector<2x32xf32>
    %62 = vector.broadcast %28 : vector<1x32xf32> to vector<2x32xf32>
    %63 = arith.addf %61, %62 : vector<2x32xf32>
    %64 = vector.extract_strided_slice %7 {offsets = [2, 0], sizes = [2, 32], strides = [1, 1]} : vector<16x32xf32> to vector<2x32xf32>
    %65 = arith.addf %64, %59 : vector<2x32xf32>
    %66 = arith.negf %65 : vector<2x32xf32>
    %67 = math.exp %66 : vector<2x32xf32>
    %cst_42 = arith.constant 1.000000e+00 : f32
    %68 = vector.broadcast %cst_42 : f32 to vector<2x32xf32>
    %69 = arith.addf %68, %67 : vector<2x32xf32>
    %70 = arith.divf %68, %69 : vector<2x32xf32>
    %71 = vector.extract_strided_slice %14 {offsets = [2, 0], sizes = [2, 32], strides = [1, 1]} : vector<16x32xf32> to vector<2x32xf32>
    %72 = arith.addf %71, %60 : vector<2x32xf32>
    %73 = arith.negf %72 : vector<2x32xf32>
    %74 = math.exp %73 : vector<2x32xf32>
    %cst_43 = arith.constant 1.000000e+00 : f32
    %75 = vector.broadcast %cst_43 : f32 to vector<2x32xf32>
    %76 = arith.addf %75, %74 : vector<2x32xf32>
    %77 = arith.divf %75, %76 : vector<2x32xf32>
    %78 = vector.extract_strided_slice %21 {offsets = [2, 0], sizes = [2, 32], strides = [1, 1]} : vector<16x32xf32> to vector<2x32xf32>
    %79 = arith.mulf %70, %63 : vector<2x32xf32>
    %80 = arith.addf %78, %79 : vector<2x32xf32>
    %81 = math.tanh %80 : vector<2x32xf32>
    %cst_44 = arith.constant 1.000000e+00 : f32
    %82 = vector.broadcast %cst_44 : f32 to vector<2x32xf32>
    %83 = arith.subf %82, %77 : vector<2x32xf32>
    %84 = arith.mulf %83, %81 : vector<2x32xf32>
    %85 = arith.mulf %77, %57 : vector<2x32xf32>
    %86 = arith.addf %84, %85 : vector<2x32xf32>
    %c2_45 = arith.constant 2 : index
    %c0_46 = arith.constant 0 : index
    %87 = vector.load %arg12[%c2_45, %c0_46] : memref<16x32xf32, #tpu.memory_space<vmem>>, vector<2x32xf32>
    tpu.vector_store %arg12[%c2_45, %c0_46], %86 {strides = array<i32>} : memref<16x32xf32, #tpu.memory_space<vmem>>, vector<2x32xf32>,
    %cst_47 = arith.constant dense<0.000000e+00> : vector<2x32xf32>
    %88 = tpu.matmul %86, %23, %cst_47 {dimension_numbers = #tpu.dot_dimension_numbers<[1], [0], [0], [1], [0, 0, 1, 1], [], []>} : vector<2x32xf32>, vector<32x32xf32>, vector<2x32xf32> -> vector<2x32xf32>
    %cst_48 = arith.constant dense<0.000000e+00> : vector<2x32xf32>
    %89 = tpu.matmul %86, %25, %cst_48 {dimension_numbers = #tpu.dot_dimension_numbers<[1], [0], [0], [1], [0, 0, 1, 1], [], []>} : vector<2x32xf32>, vector<32x32xf32>, vector<2x32xf32> -> vector<2x32xf32>
    %cst_49 = arith.constant dense<0.000000e+00> : vector<2x32xf32>
    %90 = tpu.matmul %86, %27, %cst_49 {dimension_numbers = #tpu.dot_dimension_numbers<[1], [0], [0], [1], [0, 0, 1, 1], [], []>} : vector<2x32xf32>, vector<32x32xf32>, vector<2x32xf32> -> vector<2x32xf32>
    %91 = vector.broadcast %28 : vector<1x32xf32> to vector<2x32xf32>
    %92 = arith.addf %90, %91 : vector<2x32xf32>
    %93 = vector.extract_strided_slice %7 {offsets = [4, 0], sizes = [2, 32], strides = [1, 1]} : vector<16x32xf32> to vector<2x32xf32>
    %94 = arith.addf %93, %88 : vector<2x32xf32>
    %95 = arith.negf %94 : vector<2x32xf32>
    %96 = math.exp %95 : vector<2x32xf32>
    %cst_50 = arith.constant 1.000000e+00 : f32
    %97 = vector.broadcast %cst_50 : f32 to vector<2x32xf32>
    %98 = arith.addf %97, %96 : vector<2x32xf32>
    %99 = arith.divf %97, %98 : vector<2x32xf32>
    %100 = vector.extract_strided_slice %14 {offsets = [4, 0], sizes = [2, 32], strides = [1, 1]} : vector<16x32xf32> to vector<2x32xf32>
    %101 = arith.addf %100, %89 : vector<2x32xf32>
    %102 = arith.negf %101 : vector<2x32xf32>
    %103 = math.exp %102 : vector<2x32xf32>
    %cst_51 = arith.constant 1.000000e+00 : f32
    %104 = vector.broadcast %cst_51 : f32 to vector<2x32xf32>
    %105 = arith.addf %104, %103 : vector<2x32xf32>
    %106 = arith.divf %104, %105 : vector<2x32xf32>
    %107 = vector.extract_strided_slice %21 {offsets = [4, 0], sizes = [2, 32], strides = [1, 1]} : vector<16x32xf32> to vector<2x32xf32>
    %108 = arith.mulf %99, %92 : vector<2x32xf32>
    %109 = arith.addf %107, %108 : vector<2x32xf32>
    %110 = math.tanh %109 : vector<2x32xf32>
    %cst_52 = arith.constant 1.000000e+00 : f32
    %111 = vector.broadcast %cst_52 : f32 to vector<2x32xf32>
    %112 = arith.subf %111, %106 : vector<2x32xf32>
    %113 = arith.mulf %112, %110 : vector<2x32xf32>
    %114 = arith.mulf %106, %86 : vector<2x32xf32>
    %115 = arith.addf %113, %114 : vector<2x32xf32>
    %c4 = arith.constant 4 : index
    %c0_53 = arith.constant 0 : index
    %116 = vector.load %arg12[%c4, %c0_53] : memref<16x32xf32, #tpu.memory_space<vmem>>, vector<2x32xf32>
    tpu.vector_store %arg12[%c4, %c0_53], %115 {strides = array<i32>} : memref<16x32xf32, #tpu.memory_space<vmem>>, vector<2x32xf32>,
    %cst_54 = arith.constant dense<0.000000e+00> : vector<2x32xf32>
    %117 = tpu.matmul %115, %23, %cst_54 {dimension_numbers = #tpu.dot_dimension_numbers<[1], [0], [0], [1], [0, 0, 1, 1], [], []>} : vector<2x32xf32>, vector<32x32xf32>, vector<2x32xf32> -> vector<2x32xf32>
    %cst_55 = arith.constant dense<0.000000e+00> : vector<2x32xf32>
    %118 = tpu.matmul %115, %25, %cst_55 {dimension_numbers = #tpu.dot_dimension_numbers<[1], [0], [0], [1], [0, 0, 1, 1], [], []>} : vector<2x32xf32>, vector<32x32xf32>, vector<2x32xf32> -> vector<2x32xf32>
    %cst_56 = arith.constant dense<0.000000e+00> : vector<2x32xf32>
    %119 = tpu.matmul %115, %27, %cst_56 {dimension_numbers = #tpu.dot_dimension_numbers<[1], [0], [0], [1], [0, 0, 1, 1], [], []>} : vector<2x32xf32>, vector<32x32xf32>, vector<2x32xf32> -> vector<2x32xf32>
    %120 = vector.broadcast %28 : vector<1x32xf32> to vector<2x32xf32>
    %121 = arith.addf %119, %120 : vector<2x32xf32>
    %122 = vector.extract_strided_slice %7 {offsets = [6, 0], sizes = [2, 32], strides = [1, 1]} : vector<16x32xf32> to vector<2x32xf32>
    %123 = arith.addf %122, %117 : vector<2x32xf32>
    %124 = arith.negf %123 : vector<2x32xf32>
    %125 = math.exp %124 : vector<2x32xf32>
    %cst_57 = arith.constant 1.000000e+00 : f32
    %126 = vector.broadcast %cst_57 : f32 to vector<2x32xf32>
    %127 = arith.addf %126, %125 : vector<2x32xf32>
    %128 = arith.divf %126, %127 : vector<2x32xf32>
    %129 = vector.extract_strided_slice %14 {offsets = [6, 0], sizes = [2, 32], strides = [1, 1]} : vector<16x32xf32> to vector<2x32xf32>
    %130 = arith.addf %129, %118 : vector<2x32xf32>
    %131 = arith.negf %130 : vector<2x32xf32>
    %132 = math.exp %131 : vector<2x32xf32>
    %cst_58 = arith.constant 1.000000e+00 : f32
    %133 = vector.broadcast %cst_58 : f32 to vector<2x32xf32>
    %134 = arith.addf %133, %132 : vector<2x32xf32>
    %135 = arith.divf %133, %134 : vector<2x32xf32>
    %136 = vector.extract_strided_slice %21 {offsets = [6, 0], sizes = [2, 32], strides = [1, 1]} : vector<16x32xf32> to vector<2x32xf32>
    %137 = arith.mulf %128, %121 : vector<2x32xf32>
    %138 = arith.addf %136, %137 : vector<2x32xf32>
    %139 = math.tanh %138 : vector<2x32xf32>
    %cst_59 = arith.constant 1.000000e+00 : f32
    %140 = vector.broadcast %cst_59 : f32 to vector<2x32xf32>
    %141 = arith.subf %140, %135 : vector<2x32xf32>
    %142 = arith.mulf %141, %139 : vector<2x32xf32>
    %143 = arith.mulf %135, %115 : vector<2x32xf32>
    %144 = arith.addf %142, %143 : vector<2x32xf32>
    %c6 = arith.constant 6 : index
    %c0_60 = arith.constant 0 : index
    %145 = vector.load %arg12[%c6, %c0_60] : memref<16x32xf32, #tpu.memory_space<vmem>>, vector<2x32xf32>
    tpu.vector_store %arg12[%c6, %c0_60], %144 {strides = array<i32>} : memref<16x32xf32, #tpu.memory_space<vmem>>, vector<2x32xf32>,
    %cst_61 = arith.constant dense<0.000000e+00> : vector<2x32xf32>
    %146 = tpu.matmul %144, %23, %cst_61 {dimension_numbers = #tpu.dot_dimension_numbers<[1], [0], [0], [1], [0, 0, 1, 1], [], []>} : vector<2x32xf32>, vector<32x32xf32>, vector<2x32xf32> -> vector<2x32xf32>
    %cst_62 = arith.constant dense<0.000000e+00> : vector<2x32xf32>
    %147 = tpu.matmul %144, %25, %cst_62 {dimension_numbers = #tpu.dot_dimension_numbers<[1], [0], [0], [1], [0, 0, 1, 1], [], []>} : vector<2x32xf32>, vector<32x32xf32>, vector<2x32xf32> -> vector<2x32xf32>
    %cst_63 = arith.constant dense<0.000000e+00> : vector<2x32xf32>
    %148 = tpu.matmul %144, %27, %cst_63 {dimension_numbers = #tpu.dot_dimension_numbers<[1], [0], [0], [1], [0, 0, 1, 1], [], []>} : vector<2x32xf32>, vector<32x32xf32>, vector<2x32xf32> -> vector<2x32xf32>
    %149 = vector.broadcast %28 : vector<1x32xf32> to vector<2x32xf32>
    %150 = arith.addf %148, %149 : vector<2x32xf32>
    %151 = vector.extract_strided_slice %7 {offsets = [8, 0], sizes = [2, 32], strides = [1, 1]} : vector<16x32xf32> to vector<2x32xf32>
    %152 = arith.addf %151, %146 : vector<2x32xf32>
    %153 = arith.negf %152 : vector<2x32xf32>
    %154 = math.exp %153 : vector<2x32xf32>
    %cst_64 = arith.constant 1.000000e+00 : f32
    %155 = vector.broadcast %cst_64 : f32 to vector<2x32xf32>
    %156 = arith.addf %155, %154 : vector<2x32xf32>
    %157 = arith.divf %155, %156 : vector<2x32xf32>
    %158 = vector.extract_strided_slice %14 {offsets = [8, 0], sizes = [2, 32], strides = [1, 1]} : vector<16x32xf32> to vector<2x32xf32>
    %159 = arith.addf %158, %147 : vector<2x32xf32>
    %160 = arith.negf %159 : vector<2x32xf32>
    %161 = math.exp %160 : vector<2x32xf32>
    %cst_65 = arith.constant 1.000000e+00 : f32
    %162 = vector.broadcast %cst_65 : f32 to vector<2x32xf32>
    %163 = arith.addf %162, %161 : vector<2x32xf32>
    %164 = arith.divf %162, %163 : vector<2x32xf32>
    %165 = vector.extract_strided_slice %21 {offsets = [8, 0], sizes = [2, 32], strides = [1, 1]} : vector<16x32xf32> to vector<2x32xf32>
    %166 = arith.mulf %157, %150 : vector<2x32xf32>
    %167 = arith.addf %165, %166 : vector<2x32xf32>
    %168 = math.tanh %167 : vector<2x32xf32>
    %cst_66 = arith.constant 1.000000e+00 : f32
    %169 = vector.broadcast %cst_66 : f32 to vector<2x32xf32>
    %170 = arith.subf %169, %164 : vector<2x32xf32>
    %171 = arith.mulf %170, %168 : vector<2x32xf32>
    %172 = arith.mulf %164, %144 : vector<2x32xf32>
    %173 = arith.addf %171, %172 : vector<2x32xf32>
    %c8 = arith.constant 8 : index
    %c0_67 = arith.constant 0 : index
    %174 = vector.load %arg12[%c8, %c0_67] : memref<16x32xf32, #tpu.memory_space<vmem>>, vector<2x32xf32>
    tpu.vector_store %arg12[%c8, %c0_67], %173 {strides = array<i32>} : memref<16x32xf32, #tpu.memory_space<vmem>>, vector<2x32xf32>,
    %cst_68 = arith.constant dense<0.000000e+00> : vector<2x32xf32>
    %175 = tpu.matmul %173, %23, %cst_68 {dimension_numbers = #tpu.dot_dimension_numbers<[1], [0], [0], [1], [0, 0, 1, 1], [], []>} : vector<2x32xf32>, vector<32x32xf32>, vector<2x32xf32> -> vector<2x32xf32>
    %cst_69 = arith.constant dense<0.000000e+00> : vector<2x32xf32>
    %176 = tpu.matmul %173, %25, %cst_69 {dimension_numbers = #tpu.dot_dimension_numbers<[1], [0], [0], [1], [0, 0, 1, 1], [], []>} : vector<2x32xf32>, vector<32x32xf32>, vector<2x32xf32> -> vector<2x32xf32>
    %cst_70 = arith.constant dense<0.000000e+00> : vector<2x32xf32>
    %177 = tpu.matmul %173, %27, %cst_70 {dimension_numbers = #tpu.dot_dimension_numbers<[1], [0], [0], [1], [0, 0, 1, 1], [], []>} : vector<2x32xf32>, vector<32x32xf32>, vector<2x32xf32> -> vector<2x32xf32>
    %178 = vector.broadcast %28 : vector<1x32xf32> to vector<2x32xf32>
    %179 = arith.addf %177, %178 : vector<2x32xf32>
    %180 = vector.extract_strided_slice %7 {offsets = [10, 0], sizes = [2, 32], strides = [1, 1]} : vector<16x32xf32> to vector<2x32xf32>
    %181 = arith.addf %180, %175 : vector<2x32xf32>
    %182 = arith.negf %181 : vector<2x32xf32>
    %183 = math.exp %182 : vector<2x32xf32>
    %cst_71 = arith.constant 1.000000e+00 : f32
    %184 = vector.broadcast %cst_71 : f32 to vector<2x32xf32>
    %185 = arith.addf %184, %183 : vector<2x32xf32>
    %186 = arith.divf %184, %185 : vector<2x32xf32>
    %187 = vector.extract_strided_slice %14 {offsets = [10, 0], sizes = [2, 32], strides = [1, 1]} : vector<16x32xf32> to vector<2x32xf32>
    %188 = arith.addf %187, %176 : vector<2x32xf32>
    %189 = arith.negf %188 : vector<2x32xf32>
    %190 = math.exp %189 : vector<2x32xf32>
    %cst_72 = arith.constant 1.000000e+00 : f32
    %191 = vector.broadcast %cst_72 : f32 to vector<2x32xf32>
    %192 = arith.addf %191, %190 : vector<2x32xf32>
    %193 = arith.divf %191, %192 : vector<2x32xf32>
    %194 = vector.extract_strided_slice %21 {offsets = [10, 0], sizes = [2, 32], strides = [1, 1]} : vector<16x32xf32> to vector<2x32xf32>
    %195 = arith.mulf %186, %179 : vector<2x32xf32>
    %196 = arith.addf %194, %195 : vector<2x32xf32>
    %197 = math.tanh %196 : vector<2x32xf32>
    %cst_73 = arith.constant 1.000000e+00 : f32
    %198 = vector.broadcast %cst_73 : f32 to vector<2x32xf32>
    %199 = arith.subf %198, %193 : vector<2x32xf32>
    %200 = arith.mulf %199, %197 : vector<2x32xf32>
    %201 = arith.mulf %193, %173 : vector<2x32xf32>
    %202 = arith.addf %200, %201 : vector<2x32xf32>
    %c10 = arith.constant 10 : index
    %c0_74 = arith.constant 0 : index
    %203 = vector.load %arg12[%c10, %c0_74] : memref<16x32xf32, #tpu.memory_space<vmem>>, vector<2x32xf32>
    tpu.vector_store %arg12[%c10, %c0_74], %202 {strides = array<i32>} : memref<16x32xf32, #tpu.memory_space<vmem>>, vector<2x32xf32>,
    %cst_75 = arith.constant dense<0.000000e+00> : vector<2x32xf32>
    %204 = tpu.matmul %202, %23, %cst_75 {dimension_numbers = #tpu.dot_dimension_numbers<[1], [0], [0], [1], [0, 0, 1, 1], [], []>} : vector<2x32xf32>, vector<32x32xf32>, vector<2x32xf32> -> vector<2x32xf32>
    %cst_76 = arith.constant dense<0.000000e+00> : vector<2x32xf32>
    %205 = tpu.matmul %202, %25, %cst_76 {dimension_numbers = #tpu.dot_dimension_numbers<[1], [0], [0], [1], [0, 0, 1, 1], [], []>} : vector<2x32xf32>, vector<32x32xf32>, vector<2x32xf32> -> vector<2x32xf32>
    %cst_77 = arith.constant dense<0.000000e+00> : vector<2x32xf32>
    %206 = tpu.matmul %202, %27, %cst_77 {dimension_numbers = #tpu.dot_dimension_numbers<[1], [0], [0], [1], [0, 0, 1, 1], [], []>} : vector<2x32xf32>, vector<32x32xf32>, vector<2x32xf32> -> vector<2x32xf32>
    %207 = vector.broadcast %28 : vector<1x32xf32> to vector<2x32xf32>
    %208 = arith.addf %206, %207 : vector<2x32xf32>
    %209 = vector.extract_strided_slice %7 {offsets = [12, 0], sizes = [2, 32], strides = [1, 1]} : vector<16x32xf32> to vector<2x32xf32>
    %210 = arith.addf %209, %204 : vector<2x32xf32>
    %211 = arith.negf %210 : vector<2x32xf32>
    %212 = math.exp %211 : vector<2x32xf32>
    %cst_78 = arith.constant 1.000000e+00 : f32
    %213 = vector.broadcast %cst_78 : f32 to vector<2x32xf32>
    %214 = arith.addf %213, %212 : vector<2x32xf32>
    %215 = arith.divf %213, %214 : vector<2x32xf32>
    %216 = vector.extract_strided_slice %14 {offsets = [12, 0], sizes = [2, 32], strides = [1, 1]} : vector<16x32xf32> to vector<2x32xf32>
    %217 = arith.addf %216, %205 : vector<2x32xf32>
    %218 = arith.negf %217 : vector<2x32xf32>
    %219 = math.exp %218 : vector<2x32xf32>
    %cst_79 = arith.constant 1.000000e+00 : f32
    %220 = vector.broadcast %cst_79 : f32 to vector<2x32xf32>
    %221 = arith.addf %220, %219 : vector<2x32xf32>
    %222 = arith.divf %220, %221 : vector<2x32xf32>
    %223 = vector.extract_strided_slice %21 {offsets = [12, 0], sizes = [2, 32], strides = [1, 1]} : vector<16x32xf32> to vector<2x32xf32>
    %224 = arith.mulf %215, %208 : vector<2x32xf32>
    %225 = arith.addf %223, %224 : vector<2x32xf32>
    %226 = math.tanh %225 : vector<2x32xf32>
    %cst_80 = arith.constant 1.000000e+00 : f32
    %227 = vector.broadcast %cst_80 : f32 to vector<2x32xf32>
    %228 = arith.subf %227, %222 : vector<2x32xf32>
    %229 = arith.mulf %228, %226 : vector<2x32xf32>
    %230 = arith.mulf %222, %202 : vector<2x32xf32>
    %231 = arith.addf %229, %230 : vector<2x32xf32>
    %c12 = arith.constant 12 : index
    %c0_81 = arith.constant 0 : index
    %232 = vector.load %arg12[%c12, %c0_81] : memref<16x32xf32, #tpu.memory_space<vmem>>, vector<2x32xf32>
    tpu.vector_store %arg12[%c12, %c0_81], %231 {strides = array<i32>} : memref<16x32xf32, #tpu.memory_space<vmem>>, vector<2x32xf32>,
    %cst_82 = arith.constant dense<0.000000e+00> : vector<2x32xf32>
    %233 = tpu.matmul %231, %23, %cst_82 {dimension_numbers = #tpu.dot_dimension_numbers<[1], [0], [0], [1], [0, 0, 1, 1], [], []>} : vector<2x32xf32>, vector<32x32xf32>, vector<2x32xf32> -> vector<2x32xf32>
    %cst_83 = arith.constant dense<0.000000e+00> : vector<2x32xf32>
    %234 = tpu.matmul %231, %25, %cst_83 {dimension_numbers = #tpu.dot_dimension_numbers<[1], [0], [0], [1], [0, 0, 1, 1], [], []>} : vector<2x32xf32>, vector<32x32xf32>, vector<2x32xf32> -> vector<2x32xf32>
    %cst_84 = arith.constant dense<0.000000e+00> : vector<2x32xf32>
    %235 = tpu.matmul %231, %27, %cst_84 {dimension_numbers = #tpu.dot_dimension_numbers<[1], [0], [0], [1], [0, 0, 1, 1], [], []>} : vector<2x32xf32>, vector<32x32xf32>, vector<2x32xf32> -> vector<2x32xf32>
    %236 = vector.broadcast %28 : vector<1x32xf32> to vector<2x32xf32>
    %237 = arith.addf %235, %236 : vector<2x32xf32>
    %238 = vector.extract_strided_slice %7 {offsets = [14, 0], sizes = [2, 32], strides = [1, 1]} : vector<16x32xf32> to vector<2x32xf32>
    %239 = arith.addf %238, %233 : vector<2x32xf32>
    %240 = arith.negf %239 : vector<2x32xf32>
    %241 = math.exp %240 : vector<2x32xf32>
    %cst_85 = arith.constant 1.000000e+00 : f32
    %242 = vector.broadcast %cst_85 : f32 to vector<2x32xf32>
    %243 = arith.addf %242, %241 : vector<2x32xf32>
    %244 = arith.divf %242, %243 : vector<2x32xf32>
    %245 = vector.extract_strided_slice %14 {offsets = [14, 0], sizes = [2, 32], strides = [1, 1]} : vector<16x32xf32> to vector<2x32xf32>
    %246 = arith.addf %245, %234 : vector<2x32xf32>
    %247 = arith.negf %246 : vector<2x32xf32>
    %248 = math.exp %247 : vector<2x32xf32>
    %cst_86 = arith.constant 1.000000e+00 : f32
    %249 = vector.broadcast %cst_86 : f32 to vector<2x32xf32>
    %250 = arith.addf %249, %248 : vector<2x32xf32>
    %251 = arith.divf %249, %250 : vector<2x32xf32>
    %252 = vector.extract_strided_slice %21 {offsets = [14, 0], sizes = [2, 32], strides = [1, 1]} : vector<16x32xf32> to vector<2x32xf32>
    %253 = arith.mulf %244, %237 : vector<2x32xf32>
    %254 = arith.addf %252, %253 : vector<2x32xf32>
    %255 = math.tanh %254 : vector<2x32xf32>
    %cst_87 = arith.constant 1.000000e+00 : f32
    %256 = vector.broadcast %cst_87 : f32 to vector<2x32xf32>
    %257 = arith.subf %256, %251 : vector<2x32xf32>
    %258 = arith.mulf %257, %255 : vector<2x32xf32>
    %259 = arith.mulf %251, %231 : vector<2x32xf32>
    %260 = arith.addf %258, %259 : vector<2x32xf32>
    %c14 = arith.constant 14 : index
    %c0_88 = arith.constant 0 : index
    %261 = vector.load %arg12[%c14, %c0_88] : memref<16x32xf32, #tpu.memory_space<vmem>>, vector<2x32xf32>
    tpu.vector_store %arg12[%c14, %c0_88], %260 {strides = array<i32>} : memref<16x32xf32, #tpu.memory_space<vmem>>, vector<2x32xf32>,
    %c0_89 = arith.constant 0 : index
    %c0_90 = arith.constant 0 : index
    %262 = vector.load %arg12[%c0_89, %c0_90] : memref<16x32xf32, #tpu.memory_space<vmem>>, vector<16x32xf32>
    %c0_91 = arith.constant 0 : index
    %c0_92 = arith.constant 0 : index
    %c0_93 = arith.constant 0 : index
    %263 = vector.load %arg5[%c0_91, %c0_92, %c0_93] : memref<3x32x32xf32, #tpu.memory_space<vmem>>, vector<1x32x32xf32>
    %264 = vector.shape_cast %263 : vector<1x32x32xf32> to vector<32x32xf32>
    %cst_94 = arith.constant dense<0.000000e+00> : vector<16x32xf32>
    %265 = tpu.matmul %262, %264, %cst_94 {dimension_numbers = #tpu.dot_dimension_numbers<[1], [0], [0], [1], [0, 0, 1, 1], [], []>} : vector<16x32xf32>, vector<32x32xf32>, vector<16x32xf32> -> vector<16x32xf32>
    %c0_95 = arith.constant 0 : index
    %c0_96 = arith.constant 0 : index
    %c0_97 = arith.constant 0 : index
    %266 = vector.load %arg7[%c0_95, %c0_96, %c0_97] : memref<3x1x32xf32, #tpu.memory_space<vmem>>, vector<1x1x32xf32>
    %267 = vector.shape_cast %266 : vector<1x1x32xf32> to vector<1x32xf32>
    %268 = vector.broadcast %267 : vector<1x32xf32> to vector<16x32xf32>
    %269 = arith.addf %265, %268 : vector<16x32xf32>
    %c1_98 = arith.constant 1 : index
    %c0_99 = arith.constant 0 : index
    %c0_100 = arith.constant 0 : index
    %270 = vector.load %arg5[%c1_98, %c0_99, %c0_100] : memref<3x32x32xf32, #tpu.memory_space<vmem>>, vector<1x32x32xf32>
    %271 = vector.shape_cast %270 : vector<1x32x32xf32> to vector<32x32xf32>
    %cst_101 = arith.constant dense<0.000000e+00> : vector<16x32xf32>
    %272 = tpu.matmul %262, %271, %cst_101 {dimension_numbers = #tpu.dot_dimension_numbers<[1], [0], [0], [1], [0, 0, 1, 1], [], []>} : vector<16x32xf32>, vector<32x32xf32>, vector<16x32xf32> -> vector<16x32xf32>
    %c1_102 = arith.constant 1 : index
    %c0_103 = arith.constant 0 : index
    %c0_104 = arith.constant 0 : index
    %273 = vector.load %arg7[%c1_102, %c0_103, %c0_104] : memref<3x1x32xf32, #tpu.memory_space<vmem>>, vector<1x1x32xf32>
    %274 = vector.shape_cast %273 : vector<1x1x32xf32> to vector<1x32xf32>
    %275 = vector.broadcast %274 : vector<1x32xf32> to vector<16x32xf32>
    %276 = arith.addf %272, %275 : vector<16x32xf32>
    %c2_105 = arith.constant 2 : index
    %c0_106 = arith.constant 0 : index
    %c0_107 = arith.constant 0 : index
    %277 = vector.load %arg5[%c2_105, %c0_106, %c0_107] : memref<3x32x32xf32, #tpu.memory_space<vmem>>, vector<1x32x32xf32>
    %278 = vector.shape_cast %277 : vector<1x32x32xf32> to vector<32x32xf32>
    %cst_108 = arith.constant dense<0.000000e+00> : vector<16x32xf32>
    %279 = tpu.matmul %262, %278, %cst_108 {dimension_numbers = #tpu.dot_dimension_numbers<[1], [0], [0], [1], [0, 0, 1, 1], [], []>} : vector<16x32xf32>, vector<32x32xf32>, vector<16x32xf32> -> vector<16x32xf32>
    %c2_109 = arith.constant 2 : index
    %c0_110 = arith.constant 0 : index
    %c0_111 = arith.constant 0 : index
    %280 = vector.load %arg7[%c2_109, %c0_110, %c0_111] : memref<3x1x32xf32, #tpu.memory_space<vmem>>, vector<1x1x32xf32>
    %281 = vector.shape_cast %280 : vector<1x1x32xf32> to vector<1x32xf32>
    %282 = vector.broadcast %281 : vector<1x32xf32> to vector<16x32xf32>
    %283 = arith.addf %279, %282 : vector<16x32xf32>
    %c0_112 = arith.constant 0 : index
    %c0_113 = arith.constant 0 : index
    %c0_114 = arith.constant 0 : index
    %284 = vector.load %arg6[%c0_112, %c0_113, %c0_114] : memref<3x32x32xf32, #tpu.memory_space<vmem>>, vector<1x32x32xf32>
    %285 = vector.shape_cast %284 : vector<1x32x32xf32> to vector<32x32xf32>
    %c1_115 = arith.constant 1 : index
    %c0_116 = arith.constant 0 : index
    %c0_117 = arith.constant 0 : index
    %286 = vector.load %arg6[%c1_115, %c0_116, %c0_117] : memref<3x32x32xf32, #tpu.memory_space<vmem>>, vector<1x32x32xf32>
    %287 = vector.shape_cast %286 : vector<1x32x32xf32> to vector<32x32xf32>
    %c2_118 = arith.constant 2 : index
    %c0_119 = arith.constant 0 : index
    %c0_120 = arith.constant 0 : index
    %288 = vector.load %arg6[%c2_118, %c0_119, %c0_120] : memref<3x32x32xf32, #tpu.memory_space<vmem>>, vector<1x32x32xf32>
    %289 = vector.shape_cast %288 : vector<1x32x32xf32> to vector<32x32xf32>
    %c0_121 = arith.constant 0 : index
    %c0_122 = arith.constant 0 : index
    %290 = vector.load %arg8[%c0_121, %c0_122] : memref<1x32xf32, #tpu.memory_space<vmem>>, vector<1x32xf32>
    %cst_123 = arith.constant 0.000000e+00 : f32
    %291 = vector.broadcast %cst_123 : f32 to vector<2x32xf32>
    %cst_124 = arith.constant 0.000000e+00 : f32
    %292 = vector.broadcast %cst_124 : f32 to vector<2x32xf32>
    %cst_125 = arith.constant dense<0.000000e+00> : vector<2x32xf32>
    %293 = tpu.matmul %291, %285, %cst_125 {dimension_numbers = #tpu.dot_dimension_numbers<[1], [0], [0], [1], [0, 0, 1, 1], [], []>} : vector<2x32xf32>, vector<32x32xf32>, vector<2x32xf32> -> vector<2x32xf32>
    %cst_126 = arith.constant dense<0.000000e+00> : vector<2x32xf32>
    %294 = tpu.matmul %291, %287, %cst_126 {dimension_numbers = #tpu.dot_dimension_numbers<[1], [0], [0], [1], [0, 0, 1, 1], [], []>} : vector<2x32xf32>, vector<32x32xf32>, vector<2x32xf32> -> vector<2x32xf32>
    %cst_127 = arith.constant dense<0.000000e+00> : vector<2x32xf32>
    %295 = tpu.matmul %291, %289, %cst_127 {dimension_numbers = #tpu.dot_dimension_numbers<[1], [0], [0], [1], [0, 0, 1, 1], [], []>} : vector<2x32xf32>, vector<32x32xf32>, vector<2x32xf32> -> vector<2x32xf32>
    %296 = vector.broadcast %290 : vector<1x32xf32> to vector<2x32xf32>
    %297 = arith.addf %295, %296 : vector<2x32xf32>
    %298 = vector.extract_strided_slice %269 {offsets = [0, 0], sizes = [2, 32], strides = [1, 1]} : vector<16x32xf32> to vector<2x32xf32>
    %299 = arith.addf %298, %293 : vector<2x32xf32>
    %300 = arith.negf %299 : vector<2x32xf32>
    %301 = math.exp %300 : vector<2x32xf32>
    %cst_128 = arith.constant 1.000000e+00 : f32
    %302 = vector.broadcast %cst_128 : f32 to vector<2x32xf32>
    %303 = arith.addf %302, %301 : vector<2x32xf32>
    %304 = arith.divf %302, %303 : vector<2x32xf32>
    %305 = vector.extract_strided_slice %276 {offsets = [0, 0], sizes = [2, 32], strides = [1, 1]} : vector<16x32xf32> to vector<2x32xf32>
    %306 = arith.addf %305, %294 : vector<2x32xf32>
    %307 = arith.negf %306 : vector<2x32xf32>
    %308 = math.exp %307 : vector<2x32xf32>
    %cst_129 = arith.constant 1.000000e+00 : f32
    %309 = vector.broadcast %cst_129 : f32 to vector<2x32xf32>
    %310 = arith.addf %309, %308 : vector<2x32xf32>
    %311 = arith.divf %309, %310 : vector<2x32xf32>
    %312 = vector.extract_strided_slice %283 {offsets = [0, 0], sizes = [2, 32], strides = [1, 1]} : vector<16x32xf32> to vector<2x32xf32>
    %313 = arith.mulf %304, %297 : vector<2x32xf32>
    %314 = arith.addf %312, %313 : vector<2x32xf32>
    %315 = math.tanh %314 : vector<2x32xf32>
    %cst_130 = arith.constant 1.000000e+00 : f32
    %316 = vector.broadcast %cst_130 : f32 to vector<2x32xf32>
    %317 = arith.subf %316, %311 : vector<2x32xf32>
    %318 = arith.mulf %317, %315 : vector<2x32xf32>
    %319 = arith.mulf %311, %291 : vector<2x32xf32>
    %320 = arith.addf %318, %319 : vector<2x32xf32>
    %321 = arith.addf %292, %320 : vector<2x32xf32>
    %cst_131 = arith.constant dense<0.000000e+00> : vector<2x32xf32>
    %322 = tpu.matmul %320, %285, %cst_131 {dimension_numbers = #tpu.dot_dimension_numbers<[1], [0], [0], [1], [0, 0, 1, 1], [], []>} : vector<2x32xf32>, vector<32x32xf32>, vector<2x32xf32> -> vector<2x32xf32>
    %cst_132 = arith.constant dense<0.000000e+00> : vector<2x32xf32>
    %323 = tpu.matmul %320, %287, %cst_132 {dimension_numbers = #tpu.dot_dimension_numbers<[1], [0], [0], [1], [0, 0, 1, 1], [], []>} : vector<2x32xf32>, vector<32x32xf32>, vector<2x32xf32> -> vector<2x32xf32>
    %cst_133 = arith.constant dense<0.000000e+00> : vector<2x32xf32>
    %324 = tpu.matmul %320, %289, %cst_133 {dimension_numbers = #tpu.dot_dimension_numbers<[1], [0], [0], [1], [0, 0, 1, 1], [], []>} : vector<2x32xf32>, vector<32x32xf32>, vector<2x32xf32> -> vector<2x32xf32>
    %325 = vector.broadcast %290 : vector<1x32xf32> to vector<2x32xf32>
    %326 = arith.addf %324, %325 : vector<2x32xf32>
    %327 = vector.extract_strided_slice %269 {offsets = [2, 0], sizes = [2, 32], strides = [1, 1]} : vector<16x32xf32> to vector<2x32xf32>
    %328 = arith.addf %327, %322 : vector<2x32xf32>
    %329 = arith.negf %328 : vector<2x32xf32>
    %330 = math.exp %329 : vector<2x32xf32>
    %cst_134 = arith.constant 1.000000e+00 : f32
    %331 = vector.broadcast %cst_134 : f32 to vector<2x32xf32>
    %332 = arith.addf %331, %330 : vector<2x32xf32>
    %333 = arith.divf %331, %332 : vector<2x32xf32>
    %334 = vector.extract_strided_slice %276 {offsets = [2, 0], sizes = [2, 32], strides = [1, 1]} : vector<16x32xf32> to vector<2x32xf32>
    %335 = arith.addf %334, %323 : vector<2x32xf32>
    %336 = arith.negf %335 : vector<2x32xf32>
    %337 = math.exp %336 : vector<2x32xf32>
    %cst_135 = arith.constant 1.000000e+00 : f32
    %338 = vector.broadcast %cst_135 : f32 to vector<2x32xf32>
    %339 = arith.addf %338, %337 : vector<2x32xf32>
    %340 = arith.divf %338, %339 : vector<2x32xf32>
    %341 = vector.extract_strided_slice %283 {offsets = [2, 0], sizes = [2, 32], strides = [1, 1]} : vector<16x32xf32> to vector<2x32xf32>
    %342 = arith.mulf %333, %326 : vector<2x32xf32>
    %343 = arith.addf %341, %342 : vector<2x32xf32>
    %344 = math.tanh %343 : vector<2x32xf32>
    %cst_136 = arith.constant 1.000000e+00 : f32
    %345 = vector.broadcast %cst_136 : f32 to vector<2x32xf32>
    %346 = arith.subf %345, %340 : vector<2x32xf32>
    %347 = arith.mulf %346, %344 : vector<2x32xf32>
    %348 = arith.mulf %340, %320 : vector<2x32xf32>
    %349 = arith.addf %347, %348 : vector<2x32xf32>
    %350 = arith.addf %321, %349 : vector<2x32xf32>
    %cst_137 = arith.constant dense<0.000000e+00> : vector<2x32xf32>
    %351 = tpu.matmul %349, %285, %cst_137 {dimension_numbers = #tpu.dot_dimension_numbers<[1], [0], [0], [1], [0, 0, 1, 1], [], []>} : vector<2x32xf32>, vector<32x32xf32>, vector<2x32xf32> -> vector<2x32xf32>
    %cst_138 = arith.constant dense<0.000000e+00> : vector<2x32xf32>
    %352 = tpu.matmul %349, %287, %cst_138 {dimension_numbers = #tpu.dot_dimension_numbers<[1], [0], [0], [1], [0, 0, 1, 1], [], []>} : vector<2x32xf32>, vector<32x32xf32>, vector<2x32xf32> -> vector<2x32xf32>
    %cst_139 = arith.constant dense<0.000000e+00> : vector<2x32xf32>
    %353 = tpu.matmul %349, %289, %cst_139 {dimension_numbers = #tpu.dot_dimension_numbers<[1], [0], [0], [1], [0, 0, 1, 1], [], []>} : vector<2x32xf32>, vector<32x32xf32>, vector<2x32xf32> -> vector<2x32xf32>
    %354 = vector.broadcast %290 : vector<1x32xf32> to vector<2x32xf32>
    %355 = arith.addf %353, %354 : vector<2x32xf32>
    %356 = vector.extract_strided_slice %269 {offsets = [4, 0], sizes = [2, 32], strides = [1, 1]} : vector<16x32xf32> to vector<2x32xf32>
    %357 = arith.addf %356, %351 : vector<2x32xf32>
    %358 = arith.negf %357 : vector<2x32xf32>
    %359 = math.exp %358 : vector<2x32xf32>
    %cst_140 = arith.constant 1.000000e+00 : f32
    %360 = vector.broadcast %cst_140 : f32 to vector<2x32xf32>
    %361 = arith.addf %360, %359 : vector<2x32xf32>
    %362 = arith.divf %360, %361 : vector<2x32xf32>
    %363 = vector.extract_strided_slice %276 {offsets = [4, 0], sizes = [2, 32], strides = [1, 1]} : vector<16x32xf32> to vector<2x32xf32>
    %364 = arith.addf %363, %352 : vector<2x32xf32>
    %365 = arith.negf %364 : vector<2x32xf32>
    %366 = math.exp %365 : vector<2x32xf32>
    %cst_141 = arith.constant 1.000000e+00 : f32
    %367 = vector.broadcast %cst_141 : f32 to vector<2x32xf32>
    %368 = arith.addf %367, %366 : vector<2x32xf32>
    %369 = arith.divf %367, %368 : vector<2x32xf32>
    %370 = vector.extract_strided_slice %283 {offsets = [4, 0], sizes = [2, 32], strides = [1, 1]} : vector<16x32xf32> to vector<2x32xf32>
    %371 = arith.mulf %362, %355 : vector<2x32xf32>
    %372 = arith.addf %370, %371 : vector<2x32xf32>
    %373 = math.tanh %372 : vector<2x32xf32>
    %cst_142 = arith.constant 1.000000e+00 : f32
    %374 = vector.broadcast %cst_142 : f32 to vector<2x32xf32>
    %375 = arith.subf %374, %369 : vector<2x32xf32>
    %376 = arith.mulf %375, %373 : vector<2x32xf32>
    %377 = arith.mulf %369, %349 : vector<2x32xf32>
    %378 = arith.addf %376, %377 : vector<2x32xf32>
    %379 = arith.addf %350, %378 : vector<2x32xf32>
    %cst_143 = arith.constant dense<0.000000e+00> : vector<2x32xf32>
    %380 = tpu.matmul %378, %285, %cst_143 {dimension_numbers = #tpu.dot_dimension_numbers<[1], [0], [0], [1], [0, 0, 1, 1], [], []>} : vector<2x32xf32>, vector<32x32xf32>, vector<2x32xf32> -> vector<2x32xf32>
    %cst_144 = arith.constant dense<0.000000e+00> : vector<2x32xf32>
    %381 = tpu.matmul %378, %287, %cst_144 {dimension_numbers = #tpu.dot_dimension_numbers<[1], [0], [0], [1], [0, 0, 1, 1], [], []>} : vector<2x32xf32>, vector<32x32xf32>, vector<2x32xf32> -> vector<2x32xf32>
    %cst_145 = arith.constant dense<0.000000e+00> : vector<2x32xf32>
    %382 = tpu.matmul %378, %289, %cst_145 {dimension_numbers = #tpu.dot_dimension_numbers<[1], [0], [0], [1], [0, 0, 1, 1], [], []>} : vector<2x32xf32>, vector<32x32xf32>, vector<2x32xf32> -> vector<2x32xf32>
    %383 = vector.broadcast %290 : vector<1x32xf32> to vector<2x32xf32>
    %384 = arith.addf %382, %383 : vector<2x32xf32>
    %385 = vector.extract_strided_slice %269 {offsets = [6, 0], sizes = [2, 32], strides = [1, 1]} : vector<16x32xf32> to vector<2x32xf32>
    %386 = arith.addf %385, %380 : vector<2x32xf32>
    %387 = arith.negf %386 : vector<2x32xf32>
    %388 = math.exp %387 : vector<2x32xf32>
    %cst_146 = arith.constant 1.000000e+00 : f32
    %389 = vector.broadcast %cst_146 : f32 to vector<2x32xf32>
    %390 = arith.addf %389, %388 : vector<2x32xf32>
    %391 = arith.divf %389, %390 : vector<2x32xf32>
    %392 = vector.extract_strided_slice %276 {offsets = [6, 0], sizes = [2, 32], strides = [1, 1]} : vector<16x32xf32> to vector<2x32xf32>
    %393 = arith.addf %392, %381 : vector<2x32xf32>
    %394 = arith.negf %393 : vector<2x32xf32>
    %395 = math.exp %394 : vector<2x32xf32>
    %cst_147 = arith.constant 1.000000e+00 : f32
    %396 = vector.broadcast %cst_147 : f32 to vector<2x32xf32>
    %397 = arith.addf %396, %395 : vector<2x32xf32>
    %398 = arith.divf %396, %397 : vector<2x32xf32>
    %399 = vector.extract_strided_slice %283 {offsets = [6, 0], sizes = [2, 32], strides = [1, 1]} : vector<16x32xf32> to vector<2x32xf32>
    %400 = arith.mulf %391, %384 : vector<2x32xf32>
    %401 = arith.addf %399, %400 : vector<2x32xf32>
    %402 = math.tanh %401 : vector<2x32xf32>
    %cst_148 = arith.constant 1.000000e+00 : f32
    %403 = vector.broadcast %cst_148 : f32 to vector<2x32xf32>
    %404 = arith.subf %403, %398 : vector<2x32xf32>
    %405 = arith.mulf %404, %402 : vector<2x32xf32>
    %406 = arith.mulf %398, %378 : vector<2x32xf32>
    %407 = arith.addf %405, %406 : vector<2x32xf32>
    %408 = arith.addf %379, %407 : vector<2x32xf32>
    %cst_149 = arith.constant dense<0.000000e+00> : vector<2x32xf32>
    %409 = tpu.matmul %407, %285, %cst_149 {dimension_numbers = #tpu.dot_dimension_numbers<[1], [0], [0], [1], [0, 0, 1, 1], [], []>} : vector<2x32xf32>, vector<32x32xf32>, vector<2x32xf32> -> vector<2x32xf32>
    %cst_150 = arith.constant dense<0.000000e+00> : vector<2x32xf32>
    %410 = tpu.matmul %407, %287, %cst_150 {dimension_numbers = #tpu.dot_dimension_numbers<[1], [0], [0], [1], [0, 0, 1, 1], [], []>} : vector<2x32xf32>, vector<32x32xf32>, vector<2x32xf32> -> vector<2x32xf32>
    %cst_151 = arith.constant dense<0.000000e+00> : vector<2x32xf32>
    %411 = tpu.matmul %407, %289, %cst_151 {dimension_numbers = #tpu.dot_dimension_numbers<[1], [0], [0], [1], [0, 0, 1, 1], [], []>} : vector<2x32xf32>, vector<32x32xf32>, vector<2x32xf32> -> vector<2x32xf32>
    %412 = vector.broadcast %290 : vector<1x32xf32> to vector<2x32xf32>
    %413 = arith.addf %411, %412 : vector<2x32xf32>
    %414 = vector.extract_strided_slice %269 {offsets = [8, 0], sizes = [2, 32], strides = [1, 1]} : vector<16x32xf32> to vector<2x32xf32>
    %415 = arith.addf %414, %409 : vector<2x32xf32>
    %416 = arith.negf %415 : vector<2x32xf32>
    %417 = math.exp %416 : vector<2x32xf32>
    %cst_152 = arith.constant 1.000000e+00 : f32
    %418 = vector.broadcast %cst_152 : f32 to vector<2x32xf32>
    %419 = arith.addf %418, %417 : vector<2x32xf32>
    %420 = arith.divf %418, %419 : vector<2x32xf32>
    %421 = vector.extract_strided_slice %276 {offsets = [8, 0], sizes = [2, 32], strides = [1, 1]} : vector<16x32xf32> to vector<2x32xf32>
    %422 = arith.addf %421, %410 : vector<2x32xf32>
    %423 = arith.negf %422 : vector<2x32xf32>
    %424 = math.exp %423 : vector<2x32xf32>
    %cst_153 = arith.constant 1.000000e+00 : f32
    %425 = vector.broadcast %cst_153 : f32 to vector<2x32xf32>
    %426 = arith.addf %425, %424 : vector<2x32xf32>
    %427 = arith.divf %425, %426 : vector<2x32xf32>
    %428 = vector.extract_strided_slice %283 {offsets = [8, 0], sizes = [2, 32], strides = [1, 1]} : vector<16x32xf32> to vector<2x32xf32>
    %429 = arith.mulf %420, %413 : vector<2x32xf32>
    %430 = arith.addf %428, %429 : vector<2x32xf32>
    %431 = math.tanh %430 : vector<2x32xf32>
    %cst_154 = arith.constant 1.000000e+00 : f32
    %432 = vector.broadcast %cst_154 : f32 to vector<2x32xf32>
    %433 = arith.subf %432, %427 : vector<2x32xf32>
    %434 = arith.mulf %433, %431 : vector<2x32xf32>
    %435 = arith.mulf %427, %407 : vector<2x32xf32>
    %436 = arith.addf %434, %435 : vector<2x32xf32>
    %437 = arith.addf %408, %436 : vector<2x32xf32>
    %cst_155 = arith.constant dense<0.000000e+00> : vector<2x32xf32>
    %438 = tpu.matmul %436, %285, %cst_155 {dimension_numbers = #tpu.dot_dimension_numbers<[1], [0], [0], [1], [0, 0, 1, 1], [], []>} : vector<2x32xf32>, vector<32x32xf32>, vector<2x32xf32> -> vector<2x32xf32>
    %cst_156 = arith.constant dense<0.000000e+00> : vector<2x32xf32>
    %439 = tpu.matmul %436, %287, %cst_156 {dimension_numbers = #tpu.dot_dimension_numbers<[1], [0], [0], [1], [0, 0, 1, 1], [], []>} : vector<2x32xf32>, vector<32x32xf32>, vector<2x32xf32> -> vector<2x32xf32>
    %cst_157 = arith.constant dense<0.000000e+00> : vector<2x32xf32>
    %440 = tpu.matmul %436, %289, %cst_157 {dimension_numbers = #tpu.dot_dimension_numbers<[1], [0], [0], [1], [0, 0, 1, 1], [], []>} : vector<2x32xf32>, vector<32x32xf32>, vector<2x32xf32> -> vector<2x32xf32>
    %441 = vector.broadcast %290 : vector<1x32xf32> to vector<2x32xf32>
    %442 = arith.addf %440, %441 : vector<2x32xf32>
    %443 = vector.extract_strided_slice %269 {offsets = [10, 0], sizes = [2, 32], strides = [1, 1]} : vector<16x32xf32> to vector<2x32xf32>
    %444 = arith.addf %443, %438 : vector<2x32xf32>
    %445 = arith.negf %444 : vector<2x32xf32>
    %446 = math.exp %445 : vector<2x32xf32>
    %cst_158 = arith.constant 1.000000e+00 : f32
    %447 = vector.broadcast %cst_158 : f32 to vector<2x32xf32>
    %448 = arith.addf %447, %446 : vector<2x32xf32>
    %449 = arith.divf %447, %448 : vector<2x32xf32>
    %450 = vector.extract_strided_slice %276 {offsets = [10, 0], sizes = [2, 32], strides = [1, 1]} : vector<16x32xf32> to vector<2x32xf32>
    %451 = arith.addf %450, %439 : vector<2x32xf32>
    %452 = arith.negf %451 : vector<2x32xf32>
    %453 = math.exp %452 : vector<2x32xf32>
    %cst_159 = arith.constant 1.000000e+00 : f32
    %454 = vector.broadcast %cst_159 : f32 to vector<2x32xf32>
    %455 = arith.addf %454, %453 : vector<2x32xf32>
    %456 = arith.divf %454, %455 : vector<2x32xf32>
    %457 = vector.extract_strided_slice %283 {offsets = [10, 0], sizes = [2, 32], strides = [1, 1]} : vector<16x32xf32> to vector<2x32xf32>
    %458 = arith.mulf %449, %442 : vector<2x32xf32>
    %459 = arith.addf %457, %458 : vector<2x32xf32>
    %460 = math.tanh %459 : vector<2x32xf32>
    %cst_160 = arith.constant 1.000000e+00 : f32
    %461 = vector.broadcast %cst_160 : f32 to vector<2x32xf32>
    %462 = arith.subf %461, %456 : vector<2x32xf32>
    %463 = arith.mulf %462, %460 : vector<2x32xf32>
    %464 = arith.mulf %456, %436 : vector<2x32xf32>
    %465 = arith.addf %463, %464 : vector<2x32xf32>
    %466 = arith.addf %437, %465 : vector<2x32xf32>
    %cst_161 = arith.constant dense<0.000000e+00> : vector<2x32xf32>
    %467 = tpu.matmul %465, %285, %cst_161 {dimension_numbers = #tpu.dot_dimension_numbers<[1], [0], [0], [1], [0, 0, 1, 1], [], []>} : vector<2x32xf32>, vector<32x32xf32>, vector<2x32xf32> -> vector<2x32xf32>
    %cst_162 = arith.constant dense<0.000000e+00> : vector<2x32xf32>
    %468 = tpu.matmul %465, %287, %cst_162 {dimension_numbers = #tpu.dot_dimension_numbers<[1], [0], [0], [1], [0, 0, 1, 1], [], []>} : vector<2x32xf32>, vector<32x32xf32>, vector<2x32xf32> -> vector<2x32xf32>
    %cst_163 = arith.constant dense<0.000000e+00> : vector<2x32xf32>
    %469 = tpu.matmul %465, %289, %cst_163 {dimension_numbers = #tpu.dot_dimension_numbers<[1], [0], [0], [1], [0, 0, 1, 1], [], []>} : vector<2x32xf32>, vector<32x32xf32>, vector<2x32xf32> -> vector<2x32xf32>
    %470 = vector.broadcast %290 : vector<1x32xf32> to vector<2x32xf32>
    %471 = arith.addf %469, %470 : vector<2x32xf32>
    %472 = vector.extract_strided_slice %269 {offsets = [12, 0], sizes = [2, 32], strides = [1, 1]} : vector<16x32xf32> to vector<2x32xf32>
    %473 = arith.addf %472, %467 : vector<2x32xf32>
    %474 = arith.negf %473 : vector<2x32xf32>
    %475 = math.exp %474 : vector<2x32xf32>
    %cst_164 = arith.constant 1.000000e+00 : f32
    %476 = vector.broadcast %cst_164 : f32 to vector<2x32xf32>
    %477 = arith.addf %476, %475 : vector<2x32xf32>
    %478 = arith.divf %476, %477 : vector<2x32xf32>
    %479 = vector.extract_strided_slice %276 {offsets = [12, 0], sizes = [2, 32], strides = [1, 1]} : vector<16x32xf32> to vector<2x32xf32>
    %480 = arith.addf %479, %468 : vector<2x32xf32>
    %481 = arith.negf %480 : vector<2x32xf32>
    %482 = math.exp %481 : vector<2x32xf32>
    %cst_165 = arith.constant 1.000000e+00 : f32
    %483 = vector.broadcast %cst_165 : f32 to vector<2x32xf32>
    %484 = arith.addf %483, %482 : vector<2x32xf32>
    %485 = arith.divf %483, %484 : vector<2x32xf32>
    %486 = vector.extract_strided_slice %283 {offsets = [12, 0], sizes = [2, 32], strides = [1, 1]} : vector<16x32xf32> to vector<2x32xf32>
    %487 = arith.mulf %478, %471 : vector<2x32xf32>
    %488 = arith.addf %486, %487 : vector<2x32xf32>
    %489 = math.tanh %488 : vector<2x32xf32>
    %cst_166 = arith.constant 1.000000e+00 : f32
    %490 = vector.broadcast %cst_166 : f32 to vector<2x32xf32>
    %491 = arith.subf %490, %485 : vector<2x32xf32>
    %492 = arith.mulf %491, %489 : vector<2x32xf32>
    %493 = arith.mulf %485, %465 : vector<2x32xf32>
    %494 = arith.addf %492, %493 : vector<2x32xf32>
    %495 = arith.addf %466, %494 : vector<2x32xf32>
    %cst_167 = arith.constant dense<0.000000e+00> : vector<2x32xf32>
    %496 = tpu.matmul %494, %285, %cst_167 {dimension_numbers = #tpu.dot_dimension_numbers<[1], [0], [0], [1], [0, 0, 1, 1], [], []>} : vector<2x32xf32>, vector<32x32xf32>, vector<2x32xf32> -> vector<2x32xf32>
    %cst_168 = arith.constant dense<0.000000e+00> : vector<2x32xf32>
    %497 = tpu.matmul %494, %287, %cst_168 {dimension_numbers = #tpu.dot_dimension_numbers<[1], [0], [0], [1], [0, 0, 1, 1], [], []>} : vector<2x32xf32>, vector<32x32xf32>, vector<2x32xf32> -> vector<2x32xf32>
    %cst_169 = arith.constant dense<0.000000e+00> : vector<2x32xf32>
    %498 = tpu.matmul %494, %289, %cst_169 {dimension_numbers = #tpu.dot_dimension_numbers<[1], [0], [0], [1], [0, 0, 1, 1], [], []>} : vector<2x32xf32>, vector<32x32xf32>, vector<2x32xf32> -> vector<2x32xf32>
    %499 = vector.broadcast %290 : vector<1x32xf32> to vector<2x32xf32>
    %500 = arith.addf %498, %499 : vector<2x32xf32>
    %501 = vector.extract_strided_slice %269 {offsets = [14, 0], sizes = [2, 32], strides = [1, 1]} : vector<16x32xf32> to vector<2x32xf32>
    %502 = arith.addf %501, %496 : vector<2x32xf32>
    %503 = arith.negf %502 : vector<2x32xf32>
    %504 = math.exp %503 : vector<2x32xf32>
    %cst_170 = arith.constant 1.000000e+00 : f32
    %505 = vector.broadcast %cst_170 : f32 to vector<2x32xf32>
    %506 = arith.addf %505, %504 : vector<2x32xf32>
    %507 = arith.divf %505, %506 : vector<2x32xf32>
    %508 = vector.extract_strided_slice %276 {offsets = [14, 0], sizes = [2, 32], strides = [1, 1]} : vector<16x32xf32> to vector<2x32xf32>
    %509 = arith.addf %508, %497 : vector<2x32xf32>
    %510 = arith.negf %509 : vector<2x32xf32>
    %511 = math.exp %510 : vector<2x32xf32>
    %cst_171 = arith.constant 1.000000e+00 : f32
    %512 = vector.broadcast %cst_171 : f32 to vector<2x32xf32>
    %513 = arith.addf %512, %511 : vector<2x32xf32>
    %514 = arith.divf %512, %513 : vector<2x32xf32>
    %515 = vector.extract_strided_slice %283 {offsets = [14, 0], sizes = [2, 32], strides = [1, 1]} : vector<16x32xf32> to vector<2x32xf32>
    %516 = arith.mulf %507, %500 : vector<2x32xf32>
    %517 = arith.addf %515, %516 : vector<2x32xf32>
    %518 = math.tanh %517 : vector<2x32xf32>
    %cst_172 = arith.constant 1.000000e+00 : f32
    %519 = vector.broadcast %cst_172 : f32 to vector<2x32xf32>
    %520 = arith.subf %519, %514 : vector<2x32xf32>
    %521 = arith.mulf %520, %518 : vector<2x32xf32>
    %522 = arith.mulf %514, %494 : vector<2x32xf32>
    %523 = arith.addf %521, %522 : vector<2x32xf32>
    %524 = arith.addf %495, %523 : vector<2x32xf32>
    %cst_173 = arith.constant 1.250000e-01 : f32
    %525 = vector.broadcast %cst_173 : f32 to vector<2x32xf32>
    %526 = arith.mulf %524, %525 : vector<2x32xf32>
    %c0_174 = arith.constant 0 : index
    %c0_175 = arith.constant 0 : index
    %527 = vector.load %arg9[%c0_174, %c0_175] : memref<32x4xf32, #tpu.memory_space<vmem>>, vector<32x4xf32>
    %cst_176 = arith.constant dense<0.000000e+00> : vector<2x4xf32>
    %528 = tpu.matmul %526, %527, %cst_176 {dimension_numbers = #tpu.dot_dimension_numbers<[1], [0], [0], [1], [0, 0, 1, 1], [], []>} : vector<2x32xf32>, vector<32x4xf32>, vector<2x4xf32> -> vector<2x4xf32>
    %c0_177 = arith.constant 0 : index
    %c0_178 = arith.constant 0 : index
    %529 = vector.load %arg10[%c0_177, %c0_178] : memref<1x4xf32, #tpu.memory_space<vmem>>, vector<1x4xf32>
    %530 = vector.broadcast %529 : vector<1x4xf32> to vector<2x4xf32>
    %531 = arith.addf %528, %530 : vector<2x4xf32>
    %c0_179 = arith.constant 0 : index
    %c0_180 = arith.constant 0 : index
    %532 = vector.load %arg11[%c0_179, %c0_180] : memref<2x4xf32, #tpu.memory_space<vmem>>, vector<2x4xf32>
    tpu.vector_store %arg11[%c0_179, %c0_180], %531 {strides = array<i32>} : memref<2x4xf32, #tpu.memory_space<vmem>>, vector<2x4xf32>,
    return
  }
}

</mosaic_0001>

<llo_original>
// kernel: tpu_custom_call.1
$region0: #{tpu_custom_call.1}
  #allocation0 [shape = 'u32[]', space=smem, size = 0x4, offset = 0x4, fixed_abs, tag = 'smem constant byte address 0x4 - core index']
  #allocation1 [shape = 'u32[144,128]{1,0:T(1,128)}', space=vmem, size = 0x12000, scoped, tag = 'internal scratch']
  #allocation2 [shape = 'f32[16,32]{1,0:T(8,128)}', space=vmem, size = 0x2000, scoped, tag = 'scratch operand']
  %s0 = inlined_call_operand.vmem [shape: f32[16,16], index: 0, kind: input, shape index: {}]
  %s1 = inlined_call_operand.hbm [shape: f32[3,16,32], index: 1, kind: input, shape index: {}]
  %s2 = inlined_call_operand.hbm [shape: f32[3,32,32], index: 2, kind: input, shape index: {}]
  %s3 = inlined_call_operand.vmem [shape: f32[3,1,32], index: 3, kind: input, shape index: {}]
  %s4 = inlined_call_operand.vmem [shape: f32[1,32], index: 4, kind: input, shape index: {}]
  %s5 = inlined_call_operand.hbm [shape: f32[3,32,32], index: 5, kind: input, shape index: {}]
  %s6 = inlined_call_operand.hbm [shape: f32[3,32,32], index: 6, kind: input, shape index: {}]
  %s7 = inlined_call_operand.vmem [shape: f32[3,1,32], index: 7, kind: input, shape index: {}]
  %s8 = inlined_call_operand.vmem [shape: f32[1,32], index: 8, kind: input, shape index: {}]
  %s9 = inlined_call_operand.vmem [shape: f32[32,4], index: 9, kind: input, shape index: {}]
  %s10 = inlined_call_operand.vmem [shape: f32[1,4], index: 10, kind: input, shape index: {}]
  %s11 = inlined_call_operand.hbm [shape: f32[2,4], index: 11, kind: output, shape index: {}]
  %s12 = sld [smem:[#allocation0]]
  $region70: #{tpu_custom_call.1} parent=0
    _
  %s14 = ssub.s32 1, %s12
  %s15 = scalar_select 0, %s14, %s12
  $region1: #{tpu_custom_call.1} parent=0
    #allocation3 [shape = 'u8[24576]{0}', space=vmem, size = 0x6000, scoped, tag = 'input window, operand 1, single buffered']
    #allocation4 [shape = 's32[1]{0}', space=sflag, size = 0x4, scoped, tag = 'scoped memory for tpu_custom_call.1']
    #allocation5 [shape = 's32[1]{0}', space=sflag, size = 0x4, scoped, tag = 'scoped memory for tpu_custom_call.1']
    #allocation6 [shape = 'u8[49152]{0}', space=vmem, size = 0xc000, scoped, tag = 'input window, operand 2, single buffered']
    #allocation7 [shape = 's32[1]{0}', space=sflag, size = 0x4, scoped, tag = 'scoped memory for tpu_custom_call.1']
    #allocation8 [shape = 'u8[49152]{0}', space=vmem, size = 0xc000, scoped, tag = 'input window, operand 5, single buffered']
    #allocation9 [shape = 'u8[49152]{0}', space=vmem, size = 0xc000, scoped, tag = 'input window, operand 6, single buffered']
    #allocation10 [shape = 's32[1]{0}', space=sflag, size = 0x4, scoped, tag = 'scoped memory for tpu_custom_call.1']
    #allocation11 [shape = 'u8[1024]{0}', space=vmem, size = 0x400, scoped, tag = 'output window, operand 0, single buffered']
    %16 = vsyncpa [#allocation4], 0
    %17 = vsyncpa [#allocation7], 0
    %18 = vsyncpa [#allocation10], 0
    %19 = vsyncpa [#allocation5], 0
    // Predicated region
    $region2: #{tpu_custom_call.1} parent=1 // pred_check
      _
    $region3: #{tpu_custom_call.1} parent=1 // pred_check_branch
      %21 = sbr.rel (0) target = $region5
    $region4: #{tpu_custom_call.1} parent=1 // pred_region
      _
    $region5: #{tpu_custom_call.1} parent=1 // pred_fallthru
      _
    // Predicated region
    $region6: #{tpu_custom_call.1} parent=1 // pred_check
      _
    $region7: #{tpu_custom_call.1} parent=1 // pred_check_branch
      %23 = sbr.rel (0) target = $region9
    $region8: #{tpu_custom_call.1} parent=1 // pred_region
      %s25 = ssub.s32 768, 768
      %26 = vsyncadd [#allocation4], %s25
      %s27 = sshll.u32 [#allocation3], 4
      %s28 = int_to_ptr.vmem [resolvable:$true] %s27
      %33 = dma.hbm_to_vmem [thread:$0]  %s1, 768, %s28, [#allocation4], 128, 128, 8
    $region9: #{tpu_custom_call.1} parent=1 // pred_fallthru
      _
    // Predicated region
    $region10: #{tpu_custom_call.1} parent=1 // pred_check
      _
    $region11: #{tpu_custom_call.1} parent=1 // pred_check_branch
      %35 = sbr.rel (0) target = $region13
    $region12: #{tpu_custom_call.1} parent=1 // pred_region
      %s37 = ssub.s32 1536, 1536
      %38 = vsyncadd [#allocation7], %s37
      %s39 = sshll.u32 [#allocation6], 4
      %s40 = int_to_ptr.vmem [resolvable:$true] %s39
      %45 = dma.hbm_to_vmem [thread:$0]  %s2, 1536, %s40, [#allocation7], 128, 128, 8
    $region13: #{tpu_custom_call.1} parent=1 // pred_fallthru
      _
    // Predicated region
    $region14: #{tpu_custom_call.1} parent=1 // pred_check
      _
    $region15: #{tpu_custom_call.1} parent=1 // pred_check_branch
      %47 = sbr.rel (0) target = $region17
    $region16: #{tpu_custom_call.1} parent=1 // pred_region
      _
    $region17: #{tpu_custom_call.1} parent=1 // pred_fallthru
      _
    // Predicated region
    $region18: #{tpu_custom_call.1} parent=1 // pred_check
      _
    $region19: #{tpu_custom_call.1} parent=1 // pred_check_branch
      %49 = sbr.rel (0) target = $region21
    $region20: #{tpu_custom_call.1} parent=1 // pred_region
      _
    $region21: #{tpu_custom_call.1} parent=1 // pred_fallthru
      _
    // Predicated region
    $region22: #{tpu_custom_call.1} parent=1 // pred_check
      _
    $region23: #{tpu_custom_call.1} parent=1 // pred_check_branch
      %51 = sbr.rel (0) target = $region25
    $region24: #{tpu_custom_call.1} parent=1 // pred_region
      %s53 = ssub.s32 1536, 1536
      %54 = vsyncadd [#allocation7], %s53
      %s55 = sshll.u32 [#allocation8], 4
      %s56 = int_to_ptr.vmem [resolvable:$true] %s55
      %61 = dma.hbm_to_vmem [thread:$0]  %s5, 1536, %s56, [#allocation7], 128, 128, 8
    $region25: #{tpu_custom_call.1} parent=1 // pred_fallthru
      _
    // Predicated region
    $region26: #{tpu_custom_call.1} parent=1 // pred_check
      _
    $region27: #{tpu_custom_call.1} parent=1 // pred_check_branch
      %63 = sbr.rel (0) target = $region29
    $region28: #{tpu_custom_call.1} parent=1 // pred_region
      %s65 = ssub.s32 1536, 1536
      %66 = vsyncadd [#allocation10], %s65
      %s67 = sshll.u32 [#allocation9], 4
      %s68 = int_to_ptr.vmem [resolvable:$true] %s67
      %73 = dma.hbm_to_vmem [thread:$0]  %s6, 1536, %s68, [#allocation10], 128, 128, 8
    $region29: #{tpu_custom_call.1} parent=1 // pred_fallthru
      _
    // Predicated region
    $region30: #{tpu_custom_call.1} parent=1 // pred_check
      _
    $region31: #{tpu_custom_call.1} parent=1 // pred_check_branch
      %75 = sbr.rel (0) target = $region33
    $region32: #{tpu_custom_call.1} parent=1 // pred_region
      _
    $region33: #{tpu_custom_call.1} parent=1 // pred_fallthru
      _
    // Predicated region
    $region34: #{tpu_custom_call.1} parent=1 // pred_check
      _
    $region35: #{tpu_custom_call.1} parent=1 // pred_check_branch
      %77 = sbr.rel (0) target = $region37
    $region36: #{tpu_custom_call.1} parent=1 // pred_region
      _
    $region37: #{tpu_custom_call.1} parent=1 // pred_fallthru
      _
    // Predicated region
    $region38: #{tpu_custom_call.1} parent=1 // pred_check
      _
    $region39: #{tpu_custom_call.1} parent=1 // pred_check_branch
      %79 = sbr.rel (0) target = $region41
    $region40: #{tpu_custom_call.1} parent=1 // pred_region
      _
    $region41: #{tpu_custom_call.1} parent=1 // pred_fallthru
      _
    // Predicated region
    $region42: #{tpu_custom_call.1} parent=1 // pred_check
      _
    $region43: #{tpu_custom_call.1} parent=1 // pred_check_branch
      %81 = sbr.rel (0) target = $region45
    $region44: #{tpu_custom_call.1} parent=1 // pred_region
      _
    $region45: #{tpu_custom_call.1} parent=1 // pred_fallthru
      _
    // Predicated region
    $region46: #{tpu_custom_call.1} parent=1 // pred_check
      _
    $region47: #{tpu_custom_call.1} parent=1 // pred_check_branch
      %83 = sbr.rel (0) target = $region49
    $region48: #{tpu_custom_call.1} parent=1 // pred_region
      %84 = dma.done [#allocation4], 768
    $region49: #{tpu_custom_call.1} parent=1 // pred_fallthru
      _
    // Predicated region
    $region50: #{tpu_custom_call.1} parent=1 // pred_check
      _
    $region51: #{tpu_custom_call.1} parent=1 // pred_check_branch
      %86 = sbr.rel (0) target = $region53
    $region52: #{tpu_custom_call.1} parent=1 // pred_region
      %87 = dma.done [#allocation7], 1536
    $region53: #{tpu_custom_call.1} parent=1 // pred_fallthru
      _
    // Predicated region
    $region54: #{tpu_custom_call.1} parent=1 // pred_check
      _
    $region55: #{tpu_custom_call.1} parent=1 // pred_check_branch
      %89 = sbr.rel (0) target = $region57
    $region56: #{tpu_custom_call.1} parent=1 // pred_region
      %90 = dma.done [#allocation7], 1536
    $region57: #{tpu_custom_call.1} parent=1 // pred_fallthru
      _
    // Predicated region
    $region58: #{tpu_custom_call.1} parent=1 // pred_check
      _
    $region59: #{tpu_custom_call.1} parent=1 // pred_check_branch
      %92 = sbr.rel (0) target = $region61
    $region60: #{tpu_custom_call.1} parent=1 // pred_region
      %93 = dma.done [#allocation10], 1536
    $region61: #{tpu_custom_call.1} parent=1 // pred_fallthru
      _
    %v94 = vld [vmem:[%s0] sm:$0xff]
    %v95 = vld [vmem:[%s0 + $0x8] sm:$0xff]
    %v96 = vld [vmem:[#allocation3] sm:$0xff]
    %v97 = vld [vmem:[#allocation3 + $0x8] sm:$0xff]
    %v98 = vld [vmem:[%s3] sm:$0x1]
    %v100 = vlaneseq
    %v101 = vshrl.u32 %v100, 7
    %v102 = vsub.s32 0, %v101
    %v103 = vrot.slane %v98, %v102
    %vm105 = vcmask 130048
    %v107 = vsel %vm105, %v94, 0
    %v110 = vsel %vm105, %v95, 0
    %112 = vmatprep.subr.mxu0 0.0
    %113 = vmatpush1.msra.mxu0 %v96
    %114 = vmatprep.subr.mxu0 0.0
    %115 = vmatpush1.msra.mxu0 %v97
    %116 = vmatprep.subr.mxu0 0.0
    %117 = vmatpush1.msra.mxu0 0.0
    %118 = vmatprep.subr.mxu0 0.0
    %119 = vmatpush1.msra.mxu0 0.0
    %120 = vmatprep.subr.mxu0 0.0
    %121 = vmatpush1.msra.mxu0 0.0
    %122 = vmatprep.subr.mxu0 0.0
    %123 = vmatpush1.msra.mxu0 0.0
    %124 = vmatprep.subr.mxu0 0.0
    %125 = vmatpush1.msra.mxu0 0.0
    %126 = vmatprep.subr.mxu0 0.0
    %127 = vmatpush1.msra.mxu0 0.0
    %128 = vmatprep.subr.mxu0 0.0
    %129 = vmatpush1.msra.mxu0 0.0
    %130 = vmatprep.subr.mxu0 0.0
    %131 = vmatpush1.msra.mxu0 0.0
    %132 = vmatprep.subr.mxu0 0.0
    %133 = vmatpush1.msra.mxu0 0.0
    %134 = vmatprep.subr.mxu0 0.0
    %135 = vmatpush1.msra.mxu0 0.0
    %136 = vmatprep.subr.mxu0 0.0
    %137 = vmatpush1.msra.mxu0 0.0
    %138 = vmatprep.subr.mxu0 0.0
    %139 = vmatpush1.msra.mxu0 0.0
    %140 = vmatprep.subr.mxu0 0.0
    %141 = vmatpush1.msra.mxu0 0.0
    %142 = vmatprep.subr.mxu0 0.0
    %143 = vmatpush1.msra.mxu0 0.0
    %144 = vmatprep.subr.mxu0 0.0
    %145 = vmatpush1.msra.mxu0 0.0
    %146 = vmatprep.subr.mxu0 0.0
    %147 = vmatpush1.msra.mxu0 0.0
    %148 = vmatprep.subr.mxu0 0.0
    %149 = vmatpush1.msra.mxu0 0.0
    %150 = vmatprep.subr.mxu0 0.0
    %151 = vmatpush1.msra.mxu0 0.0
    %152 = vmatprep.subr.mxu0 0.0
    %153 = vmatpush1.msra.mxu0 0.0
    %154 = vmatprep.subr.mxu0 0.0
    %155 = vmatpush1.msra.mxu0 0.0
    %156 = vmatprep.subr.mxu0 0.0
    %157 = vmatpush1.msra.mxu0 0.0
    %158 = vmatprep.subr.mxu0 0.0
    %159 = vmatpush1.msra.mxu0 0.0
    %160 = vmatprep.subr.mxu0 0.0
    %161 = vmatpush1.msra.mxu0 0.0
    %162 = vmatprep.subr.mxu0 0.0
    %163 = vmatpush1.msra.mxu0 0.0
    %164 = vmatprep.subr.mxu0 0.0
    %165 = vmatpush1.msra.mxu0 0.0
    %166 = vmatprep.subr.mxu0 0.0
    %167 = vmatpush1.msra.mxu0 0.0
    %168 = vmatprep.subr.mxu0 0.0
    %169 = vmatpush1.msra.mxu0 0.0
    %170 = vmatprep.subr.mxu0 0.0
    %171 = vmatpush1.msra.mxu0 0.0
    %172 = vmatprep.subr.mxu0 0.0
    %173 = vmatpush1.msra.mxu0 0.0
    %174 = vmatprep.subr.mxu0 0.0
    %175 = vmatpush1.msra.mxu0 0.0
    %176 = vmatprep.mubr.f32.mxu0 0.0
    %177 = vmatmul.mubr.f32.gmra.mrb[0].mxu0 %v107
    %v178 = vpop.f32.mrb[0].mxu0
    %v179 = vadd.f32 %v103, %v178
    %v180 = vpop.f32.mrb[0].mxu0
    %181 = vmatprep.mubr.f32.mxu0 0.0
    %182 = vmatmul.mubr.f32.gmra.mrb[0].mxu0 %v110
    %v183 = vpop.f32.mrb[0].mxu0
    %v184 = vadd.f32 %v103, %v183
    %v185 = vpop.f32.mrb[0].mxu0
    %186 = vdwg.mxu0
    %s187 = scalar_lea.vmem [#allocation3], 16
    %v188 = vld [vmem:[%s187] sm:$0xff]
    %v189 = vld [vmem:[%s187 + $0x8] sm:$0xff]
    %s190 = scalar_lea.vmem %s3, 1
    %v191 = vld [vmem:[%s190] sm:$0x1]
    %v193 = vlaneseq
    %v194 = vshrl.u32 %v193, 7
    %v195 = vsub.s32 0, %v194
    %v196 = vrot.slane %v191, %v195
    %198 = vmatprep.subr.mxu0 0.0
    %199 = vmatpush1.msra.mxu0 %v188
    %200 = vmatprep.subr.mxu0 0.0
    %201 = vmatpush1.msra.mxu0 %v189
    %202 = vmatprep.subr.mxu0 0.0
    %203 = vmatpush1.msra.mxu0 0.0
    %204 = vmatprep.subr.mxu0 0.0
    %205 = vmatpush1.msra.mxu0 0.0
    %206 = vmatprep.subr.mxu0 0.0
    %207 = vmatpush1.msra.mxu0 0.0
    %208 = vmatprep.subr.mxu0 0.0
    %209 = vmatpush1.msra.mxu0 0.0
    %210 = vmatprep.subr.mxu0 0.0
    %211 = vmatpush1.msra.mxu0 0.0
    %212 = vmatprep.subr.mxu0 0.0
    %213 = vmatpush1.msra.mxu0 0.0
    %214 = vmatprep.subr.mxu0 0.0
    %215 = vmatpush1.msra.mxu0 0.0
    %216 = vmatprep.subr.mxu0 0.0
    %217 = vmatpush1.msra.mxu0 0.0
    %218 = vmatprep.subr.mxu0 0.0
    %219 = vmatpush1.msra.mxu0 0.0
    %220 = vmatprep.subr.mxu0 0.0
    %221 = vmatpush1.msra.mxu0 0.0
    %222 = vmatprep.subr.mxu0 0.0
    %223 = vmatpush1.msra.mxu0 0.0
    %224 = vmatprep.subr.mxu0 0.0
    %225 = vmatpush1.msra.mxu0 0.0
    %226 = vmatprep.subr.mxu0 0.0
    %227 = vmatpush1.msra.mxu0 0.0
    %228 = vmatprep.subr.mxu0 0.0
    %229 = vmatpush1.msra.mxu0 0.0
    %230 = vmatprep.subr.mxu0 0.0
    %231 = vmatpush1.msra.mxu0 0.0
    %232 = vmatprep.subr.mxu0 0.0
    %233 = vmatpush1.msra.mxu0 0.0
    %234 = vmatprep.subr.mxu0 0.0
    %235 = vmatpush1.msra.mxu0 0.0
    %236 = vmatprep.subr.mxu0 0.0
    %237 = vmatpush1.msra.mxu0 0.0
    %238 = vmatprep.subr.mxu0 0.0
    %239 = vmatpush1.msra.mxu0 0.0
    %240 = vmatprep.subr.mxu0 0.0
    %241 = vmatpush1.msra.mxu0 0.0
    %242 = vmatprep.subr.mxu0 0.0
    %243 = vmatpush1.msra.mxu0 0.0
    %244 = vmatprep.subr.mxu0 0.0
    %245 = vmatpush1.msra.mxu0 0.0
    %246 = vmatprep.subr.mxu0 0.0
    %247 = vmatpush1.msra.mxu0 0.0
    %248 = vmatprep.subr.mxu0 0.0
    %249 = vmatpush1.msra.mxu0 0.0
    %250 = vmatprep.subr.mxu0 0.0
    %251 = vmatpush1.msra.mxu0 0.0
    %252 = vmatprep.subr.mxu0 0.0
    %253 = vmatpush1.msra.mxu0 0.0
    %254 = vmatprep.subr.mxu0 0.0
    %255 = vmatpush1.msra.mxu0 0.0
    %256 = vmatprep.subr.mxu0 0.0
    %257 = vmatpush1.msra.mxu0 0.0
    %258 = vmatprep.subr.mxu0 0.0
    %259 = vmatpush1.msra.mxu0 0.0
    %260 = vmatprep.subr.mxu0 0.0
    %261 = vmatpush1.msra.mxu0 0.0
    %262 = vmatprep.mubr.f32.mxu0 0.0
    %263 = vmatmul.mubr.f32.gmra.mrb[0].mxu0 %v107
    %v264 = vpop.f32.mrb[0].mxu0
    %v265 = vadd.f32 %v196, %v264
    %v266 = vpop.f32.mrb[0].mxu0
    %267 = vmatprep.mubr.f32.mxu0 0.0
    %268 = vmatmul.mubr.f32.gmra.mrb[0].mxu0 %v110
    %v269 = vpop.f32.mrb[0].mxu0
    %v270 = vadd.f32 %v196, %v269
    %v271 = vpop.f32.mrb[0].mxu0
    %272 = vdwg.mxu0
    %s273 = scalar_lea.vmem [#allocation3], 32
    %v274 = vld [vmem:[%s273] sm:$0xff]
    %v275 = vld [vmem:[%s273 + $0x8] sm:$0xff]
    %s276 = scalar_lea.vmem %s3, 2
    %v277 = vld [vmem:[%s276] sm:$0x1]
    %v279 = vlaneseq
    %v280 = vshrl.u32 %v279, 7
    %v281 = vsub.s32 0, %v280
    %v282 = vrot.slane %v277, %v281
    %284 = vmatprep.subr.mxu0 0.0
    %285 = vmatpush1.msra.mxu0 %v274
    %286 = vmatprep.subr.mxu0 0.0
    %287 = vmatpush1.msra.mxu0 %v275
    %288 = vmatprep.subr.mxu0 0.0
    %289 = vmatpush1.msra.mxu0 0.0
    %290 = vmatprep.subr.mxu0 0.0
    %291 = vmatpush1.msra.mxu0 0.0
    %292 = vmatprep.subr.mxu0 0.0
    %293 = vmatpush1.msra.mxu0 0.0
    %294 = vmatprep.subr.mxu0 0.0
    %295 = vmatpush1.msra.mxu0 0.0
    %296 = vmatprep.subr.mxu0 0.0
    %297 = vmatpush1.msra.mxu0 0.0
    %298 = vmatprep.subr.mxu0 0.0
    %299 = vmatpush1.msra.mxu0 0.0
    %300 = vmatprep.subr.mxu0 0.0
    %301 = vmatpush1.msra.mxu0 0.0
    %302 = vmatprep.subr.mxu0 0.0
    %303 = vmatpush1.msra.mxu0 0.0
    %304 = vmatprep.subr.mxu0 0.0
    %305 = vmatpush1.msra.mxu0 0.0
    %306 = vmatprep.subr.mxu0 0.0
    %307 = vmatpush1.msra.mxu0 0.0
    %308 = vmatprep.subr.mxu0 0.0
    %309 = vmatpush1.msra.mxu0 0.0
    %310 = vmatprep.subr.mxu0 0.0
    %311 = vmatpush1.msra.mxu0 0.0
    %312 = vmatprep.subr.mxu0 0.0
    %313 = vmatpush1.msra.mxu0 0.0
    %314 = vmatprep.subr.mxu0 0.0
    %315 = vmatpush1.msra.mxu0 0.0
    %316 = vmatprep.subr.mxu0 0.0
    %317 = vmatpush1.msra.mxu0 0.0
    %318 = vmatprep.subr.mxu0 0.0
    %319 = vmatpush1.msra.mxu0 0.0
    %320 = vmatprep.subr.mxu0 0.0
    %321 = vmatpush1.msra.mxu0 0.0
    %322 = vmatprep.subr.mxu0 0.0
    %323 = vmatpush1.msra.mxu0 0.0
    %324 = vmatprep.subr.mxu0 0.0
    %325 = vmatpush1.msra.mxu0 0.0
    %326 = vmatprep.subr.mxu0 0.0
    %327 = vmatpush1.msra.mxu0 0.0
    %328 = vmatprep.subr.mxu0 0.0
    %329 = vmatpush1.msra.mxu0 0.0
    %330 = vmatprep.subr.mxu0 0.0
    %331 = vmatpush1.msra.mxu0 0.0
    %332 = vmatprep.subr.mxu0 0.0
    %333 = vmatpush1.msra.mxu0 0.0
    %334 = vmatprep.subr.mxu0 0.0
    %335 = vmatpush1.msra.mxu0 0.0
    %336 = vmatprep.subr.mxu0 0.0
    %337 = vmatpush1.msra.mxu0 0.0
    %338 = vmatprep.subr.mxu0 0.0
    %339 = vmatpush1.msra.mxu0 0.0
    %340 = vmatprep.subr.mxu0 0.0
    %341 = vmatpush1.msra.mxu0 0.0
    %342 = vmatprep.subr.mxu0 0.0
    %343 = vmatpush1.msra.mxu0 0.0
    %344 = vmatprep.subr.mxu0 0.0
    %345 = vmatpush1.msra.mxu0 0.0
    %346 = vmatprep.subr.mxu0 0.0
    %347 = vmatpush1.msra.mxu0 0.0
    %348 = vmatprep.mubr.f32.mxu0 0.0
    %349 = vmatmul.mubr.f32.gmra.mrb[0].mxu0 %v107
    %v350 = vpop.f32.mrb[0].mxu0
    %v351 = vadd.f32 %v282, %v350
    %v352 = vpop.f32.mrb[0].mxu0
    %353 = vmatprep.mubr.f32.mxu0 0.0
    %354 = vmatmul.mubr.f32.gmra.mrb[0].mxu0 %v110
    %v355 = vpop.f32.mrb[0].mxu0
    %v356 = vadd.f32 %v282, %v355
    %v357 = vpop.f32.mrb[0].mxu0
    %358 = vdwg.mxu0
    %v359 = vld [vmem:[#allocation6] sm:$0xff]
    %v360 = vld [vmem:[#allocation6 + $0x8] sm:$0xff]
    %v361 = vld [vmem:[#allocation6 + $0x10] sm:$0xff]
    %v362 = vld [vmem:[#allocation6 + $0x18] sm:$0xff]
    %s363 = scalar_lea.vmem [#allocation6], 32
    %v364 = vld [vmem:[%s363] sm:$0xff]
    %v365 = vld [vmem:[%s363 + $0x8] sm:$0xff]
    %v366 = vld [vmem:[%s363 + $0x10] sm:$0xff]
    %v367 = vld [vmem:[%s363 + $0x18] sm:$0xff]
    %s368 = scalar_lea.vmem [#allocation6], 64
    %v369 = vld [vmem:[%s368] sm:$0xff]
    %v370 = vld [vmem:[%s368 + $0x8] sm:$0xff]
    %v371 = vld [vmem:[%s368 + $0x10] sm:$0xff]
    %v372 = vld [vmem:[%s368 + $0x18] sm:$0xff]
    %v373 = vld [vmem:[%s4] sm:$0x1]
    %vm374 = vcmask 261120
    %v376 = vsel %vm374, 0.0, 0
    %378 = vmatprep.subr.mxu0 0.0
    %379 = vmatpush1.msra.mxu0 %v359
    %380 = vmatprep.subr.mxu0 0.0
    %381 = vmatpush1.msra.mxu0 %v360
    %382 = vmatprep.subr.mxu0 0.0
    %383 = vmatpush1.msra.mxu0 %v361
    %384 = vmatprep.subr.mxu0 0.0
    %385 = vmatpush1.msra.mxu0 %v362
    %386 = vmatprep.subr.mxu0 0.0
    %387 = vmatpush1.msra.mxu0 0.0
    %388 = vmatprep.subr.mxu0 0.0
    %389 = vmatpush1.msra.mxu0 0.0
    %390 = vmatprep.subr.mxu0 0.0
    %391 = vmatpush1.msra.mxu0 0.0
    %392 = vmatprep.subr.mxu0 0.0
    %393 = vmatpush1.msra.mxu0 0.0
    %394 = vmatprep.subr.mxu0 0.0
    %395 = vmatpush1.msra.mxu0 0.0
    %396 = vmatprep.subr.mxu0 0.0
    %397 = vmatpush1.msra.mxu0 0.0
    %398 = vmatprep.subr.mxu0 0.0
    %399 = vmatpush1.msra.mxu0 0.0
    %400 = vmatprep.subr.mxu0 0.0
    %401 = vmatpush1.msra.mxu0 0.0
    %402 = vmatprep.subr.mxu0 0.0
    %403 = vmatpush1.msra.mxu0 0.0
    %404 = vmatprep.subr.mxu0 0.0
    %405 = vmatpush1.msra.mxu0 0.0
    %406 = vmatprep.subr.mxu0 0.0
    %407 = vmatpush1.msra.mxu0 0.0
    %408 = vmatprep.subr.mxu0 0.0
    %409 = vmatpush1.msra.mxu0 0.0
    %410 = vmatprep.subr.mxu0 0.0
    %411 = vmatpush1.msra.mxu0 0.0
    %412 = vmatprep.subr.mxu0 0.0
    %413 = vmatpush1.msra.mxu0 0.0
    %414 = vmatprep.subr.mxu0 0.0
    %415 = vmatpush1.msra.mxu0 0.0
    %416 = vmatprep.subr.mxu0 0.0
    %417 = vmatpush1.msra.mxu0 0.0
    %418 = vmatprep.subr.mxu0 0.0
    %419 = vmatpush1.msra.mxu0 0.0
    %420 = vmatprep.subr.mxu0 0.0
    %421 = vmatpush1.msra.mxu0 0.0
    %422 = vmatprep.subr.mxu0 0.0
    %423 = vmatpush1.msra.mxu0 0.0
    %424 = vmatprep.subr.mxu0 0.0
    %425 = vmatpush1.msra.mxu0 0.0
    %426 = vmatprep.subr.mxu0 0.0
    %427 = vmatpush1.msra.mxu0 0.0
    %428 = vmatprep.subr.mxu0 0.0
    %429 = vmatpush1.msra.mxu0 0.0
    %430 = vmatprep.subr.mxu0 0.0
    %431 = vmatpush1.msra.mxu0 0.0
    %432 = vmatprep.subr.mxu0 0.0
    %433 = vmatpush1.msra.mxu0 0.0
    %434 = vmatprep.subr.mxu0 0.0
    %435 = vmatpush1.msra.mxu0 0.0
    %436 = vmatprep.subr.mxu0 0.0
    %437 = vmatpush1.msra.mxu0 0.0
    %438 = vmatprep.subr.mxu0 0.0
    %439 = vmatpush1.msra.mxu0 0.0
    %440 = vmatprep.subr.mxu0 0.0
    %441 = vmatpush1.msra.mxu0 0.0
    %442 = vmatprep.mubr.f32.mxu0 0.0
    %443 = vmatmul.mubr.f32.gmra.mrb[0].mxu0 %v376
    %v444 = vpop.f32.mrb[0].mxu0
    %v445 = vadd.f32 0.0, %v444
    %v446 = vpop.f32.mrb[0].mxu0
    %447 = vdwg.mxu0
    %448 = vmatprep.subr.mxu0 0.0
    %449 = vmatpush1.msra.mxu0 %v364
    %450 = vmatprep.subr.mxu0 0.0
    %451 = vmatpush1.msra.mxu0 %v365
    %452 = vmatprep.subr.mxu0 0.0
    %453 = vmatpush1.msra.mxu0 %v366
    %454 = vmatprep.subr.mxu0 0.0
    %455 = vmatpush1.msra.mxu0 %v367
    %456 = vmatprep.subr.mxu0 0.0
    %457 = vmatpush1.msra.mxu0 0.0
    %458 = vmatprep.subr.mxu0 0.0
    %459 = vmatpush1.msra.mxu0 0.0
    %460 = vmatprep.subr.mxu0 0.0
    %461 = vmatpush1.msra.mxu0 0.0
    %462 = vmatprep.subr.mxu0 0.0
    %463 = vmatpush1.msra.mxu0 0.0
    %464 = vmatprep.subr.mxu0 0.0
    %465 = vmatpush1.msra.mxu0 0.0
    %466 = vmatprep.subr.mxu0 0.0
    %467 = vmatpush1.msra.mxu0 0.0
    %468 = vmatprep.subr.mxu0 0.0
    %469 = vmatpush1.msra.mxu0 0.0
    %470 = vmatprep.subr.mxu0 0.0
    %471 = vmatpush1.msra.mxu0 0.0
    %472 = vmatprep.subr.mxu0 0.0
    %473 = vmatpush1.msra.mxu0 0.0
    %474 = vmatprep.subr.mxu0 0.0
    %475 = vmatpush1.msra.mxu0 0.0
    %476 = vmatprep.subr.mxu0 0.0
    %477 = vmatpush1.msra.mxu0 0.0
    %478 = vmatprep.subr.mxu0 0.0
    %479 = vmatpush1.msra.mxu0 0.0
    %480 = vmatprep.subr.mxu0 0.0
    %481 = vmatpush1.msra.mxu0 0.0
    %482 = vmatprep.subr.mxu0 0.0
    %483 = vmatpush1.msra.mxu0 0.0
    %484 = vmatprep.subr.mxu0 0.0
    %485 = vmatpush1.msra.mxu0 0.0
    %486 = vmatprep.subr.mxu0 0.0
    %487 = vmatpush1.msra.mxu0 0.0
    %488 = vmatprep.subr.mxu0 0.0
    %489 = vmatpush1.msra.mxu0 0.0
    %490 = vmatprep.subr.mxu0 0.0
    %491 = vmatpush1.msra.mxu0 0.0
    %492 = vmatprep.subr.mxu0 0.0
    %493 = vmatpush1.msra.mxu0 0.0
    %494 = vmatprep.subr.mxu0 0.0
    %495 = vmatpush1.msra.mxu0 0.0
    %496 = vmatprep.subr.mxu0 0.0
    %497 = vmatpush1.msra.mxu0 0.0
    %498 = vmatprep.subr.mxu0 0.0
    %499 = vmatpush1.msra.mxu0 0.0
    %500 = vmatprep.subr.mxu0 0.0
    %501 = vmatpush1.msra.mxu0 0.0
    %502 = vmatprep.subr.mxu0 0.0
    %503 = vmatpush1.msra.mxu0 0.0
    %504 = vmatprep.subr.mxu0 0.0
    %505 = vmatpush1.msra.mxu0 0.0
    %506 = vmatprep.subr.mxu0 0.0
    %507 = vmatpush1.msra.mxu0 0.0
    %508 = vmatprep.subr.mxu0 0.0
    %509 = vmatpush1.msra.mxu0 0.0
    %510 = vmatprep.subr.mxu0 0.0
    %511 = vmatpush1.msra.mxu0 0.0
    %512 = vmatprep.mubr.f32.mxu0 0.0
    %513 = vmatmul.mubr.f32.gmra.mrb[0].mxu0 %v376
    %v514 = vpop.f32.mrb[0].mxu0
    %v515 = vadd.f32 0.0, %v514
    %v516 = vpop.f32.mrb[0].mxu0
    %517 = vdwg.mxu0
    %v519 = vlaneseq
    %v520 = vshrl.u32 %v519, 7
    %v521 = vsub.s32 0, %v520
    %v522 = vrot.slane %v373, %v521
    %524 = vmatprep.subr.mxu0 0.0
    %525 = vmatpush1.msra.mxu0 %v369
    %526 = vmatprep.subr.mxu0 0.0
    %527 = vmatpush1.msra.mxu0 %v370
    %528 = vmatprep.subr.mxu0 0.0
    %529 = vmatpush1.msra.mxu0 %v371
    %530 = vmatprep.subr.mxu0 0.0
    %531 = vmatpush1.msra.mxu0 %v372
    %532 = vmatprep.subr.mxu0 0.0
    %533 = vmatpush1.msra.mxu0 0.0
    %534 = vmatprep.subr.mxu0 0.0
    %535 = vmatpush1.msra.mxu0 0.0
    %536 = vmatprep.subr.mxu0 0.0
    %537 = vmatpush1.msra.mxu0 0.0
    %538 = vmatprep.subr.mxu0 0.0
    %539 = vmatpush1.msra.mxu0 0.0
    %540 = vmatprep.subr.mxu0 0.0
    %541 = vmatpush1.msra.mxu0 0.0
    %542 = vmatprep.subr.mxu0 0.0
    %543 = vmatpush1.msra.mxu0 0.0
    %544 = vmatprep.subr.mxu0 0.0
    %545 = vmatpush1.msra.mxu0 0.0
    %546 = vmatprep.subr.mxu0 0.0
    %547 = vmatpush1.msra.mxu0 0.0
    %548 = vmatprep.subr.mxu0 0.0
    %549 = vmatpush1.msra.mxu0 0.0
    %550 = vmatprep.subr.mxu0 0.0
    %551 = vmatpush1.msra.mxu0 0.0
    %552 = vmatprep.subr.mxu0 0.0
    %553 = vmatpush1.msra.mxu0 0.0
    %554 = vmatprep.subr.mxu0 0.0
    %555 = vmatpush1.msra.mxu0 0.0
    %556 = vmatprep.subr.mxu0 0.0
    %557 = vmatpush1.msra.mxu0 0.0
    %558 = vmatprep.subr.mxu0 0.0
    %559 = vmatpush1.msra.mxu0 0.0
    %560 = vmatprep.subr.mxu0 0.0
    %561 = vmatpush1.msra.mxu0 0.0
    %562 = vmatprep.subr.mxu0 0.0
    %563 = vmatpush1.msra.mxu0 0.0
    %564 = vmatprep.subr.mxu0 0.0
    %565 = vmatpush1.msra.mxu0 0.0
    %566 = vmatprep.subr.mxu0 0.0
    %567 = vmatpush1.msra.mxu0 0.0
    %568 = vmatprep.subr.mxu0 0.0
    %569 = vmatpush1.msra.mxu0 0.0
    %570 = vmatprep.subr.mxu0 0.0
    %571 = vmatpush1.msra.mxu0 0.0
    %572 = vmatprep.subr.mxu0 0.0
    %573 = vmatpush1.msra.mxu0 0.0
    %574 = vmatprep.subr.mxu0 0.0
    %575 = vmatpush1.msra.mxu0 0.0
    %576 = vmatprep.subr.mxu0 0.0
    %577 = vmatpush1.msra.mxu0 0.0
    %578 = vmatprep.subr.mxu0 0.0
    %579 = vmatpush1.msra.mxu0 0.0
    %580 = vmatprep.subr.mxu0 0.0
    %581 = vmatpush1.msra.mxu0 0.0
    %582 = vmatprep.subr.mxu0 0.0
    %583 = vmatpush1.msra.mxu0 0.0
    %584 = vmatprep.subr.mxu0 0.0
    %585 = vmatpush1.msra.mxu0 0.0
    %586 = vmatprep.subr.mxu0 0.0
    %587 = vmatpush1.msra.mxu0 0.0
    %588 = vmatprep.mubr.f32.mxu0 0.0
    %589 = vmatmul.mubr.f32.gmra.mrb[0].mxu0 %v376
    %v590 = vpop.f32.mrb[0].mxu0
    %v591 = vadd.f32 %v522, %v590
    %v592 = vpop.f32.mrb[0].mxu0
    %593 = vdwg.mxu0
    %v594 = vadd.f32 %v179, %v445
    %v595 = vxor.u32 %v594, 2147483648
    %v596 = vmul.f32 %v595, 1.442695
    %v597 = vpow.pop %v596
    %v598 = vadd.f32 %v597, 1.0
    %v599 = vrcp.pop %v598
    %v600 = vmul.f32 1.0, %v599
    %v601 = vadd.f32 %v265, %v515
    %v602 = vxor.u32 %v601, 2147483648
    %v603 = vmul.f32 %v602, 1.442695
    %v604 = vpow.pop %v603
    %v605 = vadd.f32 %v604, 1.0
    %v606 = vrcp.pop %v605
    %v607 = vmul.f32 1.0, %v606
    %v608 = vmul.f32 %v600, %v591
    %v609 = vadd.f32 %v351, %v608
    %v610 = vtanh.pop %v609
    %v611 = vsub.f32 1.0, %v607
    %v612 = vmul.f32 %v611, %v610
    %v613 = vmul.f32 %v607, 0.0
    %v614 = vadd.f32 %v612, %v613
    %vm615 = vcmask 254976
    %616 = vst.msk [vmem:[#allocation2] sm:$0x3] %vm615, %v614
    %v618 = vsel %vm374, %v614, 0
    %620 = vmatprep.subr.mxu0 0.0
    %621 = vmatpush1.msra.mxu0 %v359
    %622 = vmatprep.subr.mxu0 0.0
    %623 = vmatpush1.msra.mxu0 %v360
    %624 = vmatprep.subr.mxu0 0.0
    %625 = vmatpush1.msra.mxu0 %v361
    %626 = vmatprep.subr.mxu0 0.0
    %627 = vmatpush1.msra.mxu0 %v362
    %628 = vmatprep.subr.mxu0 0.0
    %629 = vmatpush1.msra.mxu0 0.0
    %630 = vmatprep.subr.mxu0 0.0
    %631 = vmatpush1.msra.mxu0 0.0
    %632 = vmatprep.subr.mxu0 0.0
    %633 = vmatpush1.msra.mxu0 0.0
    %634 = vmatprep.subr.mxu0 0.0
    %635 = vmatpush1.msra.mxu0 0.0
    %636 = vmatprep.subr.mxu0 0.0
    %637 = vmatpush1.msra.mxu0 0.0
    %638 = vmatprep.subr.mxu0 0.0
    %639 = vmatpush1.msra.mxu0 0.0
    %640 = vmatprep.subr.mxu0 0.0
    %641 = vmatpush1.msra.mxu0 0.0
    %642 = vmatprep.subr.mxu0 0.0
    %643 = vmatpush1.msra.mxu0 0.0
    %644 = vmatprep.subr.mxu0 0.0
    %645 = vmatpush1.msra.mxu0 0.0
    %646 = vmatprep.subr.mxu0 0.0
    %647 = vmatpush1.msra.mxu0 0.0
    %648 = vmatprep.subr.mxu0 0.0
    %649 = vmatpush1.msra.mxu0 0.0
    %650 = vmatprep.subr.mxu0 0.0
    %651 = vmatpush1.msra.mxu0 0.0
    %652 = vmatprep.subr.mxu0 0.0
    %653 = vmatpush1.msra.mxu0 0.0
    %654 = vmatprep.subr.mxu0 0.0
    %655 = vmatpush1.msra.mxu0 0.0
    %656 = vmatprep.subr.mxu0 0.0
    %657 = vmatpush1.msra.mxu0 0.0
    %658 = vmatprep.subr.mxu0 0.0
    %659 = vmatpush1.msra.mxu0 0.0
    %660 = vmatprep.subr.mxu0 0.0
    %661 = vmatpush1.msra.mxu0 0.0
    %662 = vmatprep.subr.mxu0 0.0
    %663 = vmatpush1.msra.mxu0 0.0
    %664 = vmatprep.subr.mxu0 0.0
    %665 = vmatpush1.msra.mxu0 0.0
    %666 = vmatprep.subr.mxu0 0.0
    %667 = vmatpush1.msra.mxu0 0.0
    %668 = vmatprep.subr.mxu0 0.0
    %669 = vmatpush1.msra.mxu0 0.0
    %670 = vmatprep.subr.mxu0 0.0
    %671 = vmatpush1.msra.mxu0 0.0
    %672 = vmatprep.subr.mxu0 0.0
    %673 = vmatpush1.msra.mxu0 0.0
    %674 = vmatprep.subr.mxu0 0.0
    %675 = vmatpush1.msra.mxu0 0.0
    %676 = vmatprep.subr.mxu0 0.0
    %677 = vmatpush1.msra.mxu0 0.0
    %678 = vmatprep.subr.mxu0 0.0
    %679 = vmatpush1.msra.mxu0 0.0
    %680 = vmatprep.subr.mxu0 0.0
    %681 = vmatpush1.msra.mxu0 0.0
    %682 = vmatprep.subr.mxu0 0.0
    %683 = vmatpush1.msra.mxu0 0.0
    %684 = vmatprep.mubr.f32.mxu0 0.0
    %685 = vmatmul.mubr.f32.gmra.mrb[0].mxu0 %v618
    %v686 = vpop.f32.mrb[0].mxu0
    %v687 = vadd.f32 0.0, %v686
    %v688 = vpop.f32.mrb[0].mxu0
    %689 = vdwg.mxu0
    %690 = vmatprep.subr.mxu0 0.0
    %691 = vmatpush1.msra.mxu0 %v364
    %692 = vmatprep.subr.mxu0 0.0
    %693 = vmatpush1.msra.mxu0 %v365
    %694 = vmatprep.subr.mxu0 0.0
    %695 = vmatpush1.msra.mxu0 %v366
    %696 = vmatprep.subr.mxu0 0.0
    %697 = vmatpush1.msra.mxu0 %v367
    %698 = vmatprep.subr.mxu0 0.0
    %699 = vmatpush1.msra.mxu0 0.0
    %700 = vmatprep.subr.mxu0 0.0
    %701 = vmatpush1.msra.mxu0 0.0
    %702 = vmatprep.subr.mxu0 0.0
    %703 = vmatpush1.msra.mxu0 0.0
    %704 = vmatprep.subr.mxu0 0.0
    %705 = vmatpush1.msra.mxu0 0.0
    %706 = vmatprep.subr.mxu0 0.0
    %707 = vmatpush1.msra.mxu0 0.0
    %708 = vmatprep.subr.mxu0 0.0
    %709 = vmatpush1.msra.mxu0 0.0
    %710 = vmatprep.subr.mxu0 0.0
    %711 = vmatpush1.msra.mxu0 0.0
    %712 = vmatprep.subr.mxu0 0.0
    %713 = vmatpush1.msra.mxu0 0.0
    %714 = vmatprep.subr.mxu0 0.0
    %715 = vmatpush1.msra.mxu0 0.0
    %716 = vmatprep.subr.mxu0 0.0
    %717 = vmatpush1.msra.mxu0 0.0
    %718 = vmatprep.subr.mxu0 0.0
    %719 = vmatpush1.msra.mxu0 0.0
    %720 = vmatprep.subr.mxu0 0.0
    %721 = vmatpush1.msra.mxu0 0.0
    %722 = vmatprep.subr.mxu0 0.0
    %723 = vmatpush1.msra.mxu0 0.0
    %724 = vmatprep.subr.mxu0 0.0
    %725 = vmatpush1.msra.mxu0 0.0
    %726 = vmatprep.subr.mxu0 0.0
    %727 = vmatpush1.msra.mxu0 0.0
    %728 = vmatprep.subr.mxu0 0.0
    %729 = vmatpush1.msra.mxu0 0.0
    %730 = vmatprep.subr.mxu0 0.0
    %731 = vmatpush1.msra.mxu0 0.0
    %732 = vmatprep.subr.mxu0 0.0
    %733 = vmatpush1.msra.mxu0 0.0
    %734 = vmatprep.subr.mxu0 0.0
    %735 = vmatpush1.msra.mxu0 0.0
    %736 = vmatprep.subr.mxu0 0.0
    %737 = vmatpush1.msra.mxu0 0.0
    %738 = vmatprep.subr.mxu0 0.0
    %739 = vmatpush1.msra.mxu0 0.0
    %740 = vmatprep.subr.mxu0 0.0
    %741 = vmatpush1.msra.mxu0 0.0
    %742 = vmatprep.subr.mxu0 0.0
    %743 = vmatpush1.msra.mxu0 0.0
    %744 = vmatprep.subr.mxu0 0.0
    %745 = vmatpush1.msra.mxu0 0.0
    %746 = vmatprep.subr.mxu0 0.0
    %747 = vmatpush1.msra.mxu0 0.0
    %748 = vmatprep.subr.mxu0 0.0
    %749 = vmatpush1.msra.mxu0 0.0
    %750 = vmatprep.subr.mxu0 0.0
    %751 = vmatpush1.msra.mxu0 0.0
    %752 = vmatprep.subr.mxu0 0.0
    %753 = vmatpush1.msra.mxu0 0.0
    %754 = vmatprep.mubr.f32.mxu0 0.0
    %755 = vmatmul.mubr.f32.gmra.mrb[0].mxu0 %v618
    %v756 = vpop.f32.mrb[0].mxu0
    %v757 = vadd.f32 0.0, %v756
    %v758 = vpop.f32.mrb[0].mxu0
    %759 = vdwg.mxu0
    %760 = vmatprep.subr.mxu0 0.0
    %761 = vmatpush1.msra.mxu0 %v369
    %762 = vmatprep.subr.mxu0 0.0
    %763 = vmatpush1.msra.mxu0 %v370
    %764 = vmatprep.subr.mxu0 0.0
    %765 = vmatpush1.msra.mxu0 %v371
    %766 = vmatprep.subr.mxu0 0.0
    %767 = vmatpush1.msra.mxu0 %v372
    %768 = vmatprep.subr.mxu0 0.0
    %769 = vmatpush1.msra.mxu0 0.0
    %770 = vmatprep.subr.mxu0 0.0
    %771 = vmatpush1.msra.mxu0 0.0
    %772 = vmatprep.subr.mxu0 0.0
    %773 = vmatpush1.msra.mxu0 0.0
    %774 = vmatprep.subr.mxu0 0.0
    %775 = vmatpush1.msra.mxu0 0.0
    %776 = vmatprep.subr.mxu0 0.0
    %777 = vmatpush1.msra.mxu0 0.0
    %778 = vmatprep.subr.mxu0 0.0
    %779 = vmatpush1.msra.mxu0 0.0
    %780 = vmatprep.subr.mxu0 0.0
    %781 = vmatpush1.msra.mxu0 0.0
    %782 = vmatprep.subr.mxu0 0.0
    %783 = vmatpush1.msra.mxu0 0.0
    %784 = vmatprep.subr.mxu0 0.0
    %785 = vmatpush1.msra.mxu0 0.0
    %786 = vmatprep.subr.mxu0 0.0
    %787 = vmatpush1.msra.mxu0 0.0
    %788 = vmatprep.subr.mxu0 0.0
    %789 = vmatpush1.msra.mxu0 0.0
    %790 = vmatprep.subr.mxu0 0.0
    %791 = vmatpush1.msra.mxu0 0.0
    %792 = vmatprep.subr.mxu0 0.0
    %793 = vmatpush1.msra.mxu0 0.0
    %794 = vmatprep.subr.mxu0 0.0
    %795 = vmatpush1.msra.mxu0 0.0
    %796 = vmatprep.subr.mxu0 0.0
    %797 = vmatpush1.msra.mxu0 0.0
    %798 = vmatprep.subr.mxu0 0.0
    %799 = vmatpush1.msra.mxu0 0.0
    %800 = vmatprep.subr.mxu0 0.0
    %801 = vmatpush1.msra.mxu0 0.0
    %802 = vmatprep.subr.mxu0 0.0
    %803 = vmatpush1.msra.mxu0 0.0
    %804 = vmatprep.subr.mxu0 0.0
    %805 = vmatpush1.msra.mxu0 0.0
    %806 = vmatprep.subr.mxu0 0.0
    %807 = vmatpush1.msra.mxu0 0.0
    %808 = vmatprep.subr.mxu0 0.0
    %809 = vmatpush1.msra.mxu0 0.0
    %810 = vmatprep.subr.mxu0 0.0
    %811 = vmatpush1.msra.mxu0 0.0
    %812 = vmatprep.subr.mxu0 0.0
    %813 = vmatpush1.msra.mxu0 0.0
    %814 = vmatprep.subr.mxu0 0.0
    %815 = vmatpush1.msra.mxu0 0.0
    %816 = vmatprep.subr.mxu0 0.0
    %817 = vmatpush1.msra.mxu0 0.0
    %818 = vmatprep.subr.mxu0 0.0
    %819 = vmatpush1.msra.mxu0 0.0
    %820 = vmatprep.subr.mxu0 0.0
    %821 = vmatpush1.msra.mxu0 0.0
    %822 = vmatprep.subr.mxu0 0.0
    %823 = vmatpush1.msra.mxu0 0.0
    %824 = vmatprep.mubr.f32.mxu0 0.0
    %825 = vmatmul.mubr.f32.gmra.mrb[0].mxu0 %v618
    %v826 = vpop.f32.mrb[0].mxu0
    %v827 = vadd.f32 %v522, %v826
    %v828 = vpop.f32.mrb[0].mxu0
    %829 = vdwg.mxu0
    %v831 = vrot.slane %v687, 6
    %v833 = vadd.f32 %v179, %v831
    %v834 = vxor.u32 %v833, 2147483648
    %v835 = vmul.f32 %v834, 1.442695
    %v836 = vpow.pop %v835
    %v837 = vadd.f32 %v836, 1.0
    %v838 = vrcp.pop %v837
    %v839 = vmul.f32 1.0, %v838
    %v841 = vrot.slane %v757, 6
    %v843 = vadd.f32 %v265, %v841
    %v844 = vxor.u32 %v843, 2147483648
    %v845 = vmul.f32 %v844, 1.442695
    %v846 = vpow.pop %v845
    %v847 = vadd.f32 %v846, 1.0
    %v848 = vrcp.pop %v847
    %v849 = vmul.f32 1.0, %v848
    %v851 = vrot.slane %v827, 6
    %v853 = vmul.f32 %v839, %v851
    %v854 = vadd.f32 %v351, %v853
    %v855 = vtanh.pop %v854
    %v856 = vsub.f32 1.0, %v849
    %v857 = vmul.f32 %v856, %v855
    %v858 = vrot.slane %v614, 6
    %v860 = vmul.f32 %v849, %v858
    %v861 = vadd.f32 %v857, %v860
    %vm862 = vcmask 257026
    %863 = vst.msk [vmem:[#allocation2] sm:$0xc] %vm862, %v861
    %v865 = vrot.slane %v861, 2
    %v866 = vsel %vm374, %v865, 0
    %868 = vmatprep.subr.mxu0 0.0
    %869 = vmatpush1.msra.mxu0 %v359
    %870 = vmatprep.subr.mxu0 0.0
    %871 = vmatpush1.msra.mxu0 %v360
    %872 = vmatprep.subr.mxu0 0.0
    %873 = vmatpush1.msra.mxu0 %v361
    %874 = vmatprep.subr.mxu0 0.0
    %875 = vmatpush1.msra.mxu0 %v362
    %876 = vmatprep.subr.mxu0 0.0
    %877 = vmatpush1.msra.mxu0 0.0
    %878 = vmatprep.subr.mxu0 0.0
    %879 = vmatpush1.msra.mxu0 0.0
    %880 = vmatprep.subr.mxu0 0.0
    %881 = vmatpush1.msra.mxu0 0.0
    %882 = vmatprep.subr.mxu0 0.0
    %883 = vmatpush1.msra.mxu0 0.0
    %884 = vmatprep.subr.mxu0 0.0
    %885 = vmatpush1.msra.mxu0 0.0
    %886 = vmatprep.subr.mxu0 0.0
    %887 = vmatpush1.msra.mxu0 0.0
    %888 = vmatprep.subr.mxu0 0.0
    %889 = vmatpush1.msra.mxu0 0.0
    %890 = vmatprep.subr.mxu0 0.0
    %891 = vmatpush1.msra.mxu0 0.0
    %892 = vmatprep.subr.mxu0 0.0
    %893 = vmatpush1.msra.mxu0 0.0
    %894 = vmatprep.subr.mxu0 0.0
    %895 = vmatpush1.msra.mxu0 0.0
    %896 = vmatprep.subr.mxu0 0.0
    %897 = vmatpush1.msra.mxu0 0.0
    %898 = vmatprep.subr.mxu0 0.0
    %899 = vmatpush1.msra.mxu0 0.0
    %900 = vmatprep.subr.mxu0 0.0
    %901 = vmatpush1.msra.mxu0 0.0
    %902 = vmatprep.subr.mxu0 0.0
    %903 = vmatpush1.msra.mxu0 0.0
    %904 = vmatprep.subr.mxu0 0.0
    %905 = vmatpush1.msra.mxu0 0.0
    %906 = vmatprep.subr.mxu0 0.0
    %907 = vmatpush1.msra.mxu0 0.0
    %908 = vmatprep.subr.mxu0 0.0
    %909 = vmatpush1.msra.mxu0 0.0
    %910 = vmatprep.subr.mxu0 0.0
    %911 = vmatpush1.msra.mxu0 0.0
    %912 = vmatprep.subr.mxu0 0.0
    %913 = vmatpush1.msra.mxu0 0.0
    %914 = vmatprep.subr.mxu0 0.0
    %915 = vmatpush1.msra.mxu0 0.0
    %916 = vmatprep.subr.mxu0 0.0
    %917 = vmatpush1.msra.mxu0 0.0
    %918 = vmatprep.subr.mxu0 0.0
    %919 = vmatpush1.msra.mxu0 0.0
    %920 = vmatprep.subr.mxu0 0.0
    %921 = vmatpush1.msra.mxu0 0.0
    %922 = vmatprep.subr.mxu0 0.0
    %923 = vmatpush1.msra.mxu0 0.0
    %924 = vmatprep.subr.mxu0 0.0
    %925 = vmatpush1.msra.mxu0 0.0
    %926 = vmatprep.subr.mxu0 0.0
    %927 = vmatpush1.msra.mxu0 0.0
    %928 = vmatprep.subr.mxu0 0.0
    %929 = vmatpush1.msra.mxu0 0.0
    %930 = vmatprep.subr.mxu0 0.0
    %931 = vmatpush1.msra.mxu0 0.0
    %932 = vmatprep.mubr.f32.mxu0 0.0
    %933 = vmatmul.mubr.f32.gmra.mrb[0].mxu0 %v866
    %v934 = vpop.f32.mrb[0].mxu0
    %v935 = vadd.f32 0.0, %v934
    %v936 = vpop.f32.mrb[0].mxu0
    %937 = vdwg.mxu0
    %938 = vmatprep.subr.mxu0 0.0
    %939 = vmatpush1.msra.mxu0 %v364
    %940 = vmatprep.subr.mxu0 0.0
    %941 = vmatpush1.msra.mxu0 %v365
    %942 = vmatprep.subr.mxu0 0.0
    %943 = vmatpush1.msra.mxu0 %v366
    %944 = vmatprep.subr.mxu0 0.0
    %945 = vmatpush1.msra.mxu0 %v367
    %946 = vmatprep.subr.mxu0 0.0
    %947 = vmatpush1.msra.mxu0 0.0
    %948 = vmatprep.subr.mxu0 0.0
    %949 = vmatpush1.msra.mxu0 0.0
    %950 = vmatprep.subr.mxu0 0.0
    %951 = vmatpush1.msra.mxu0 0.0
    %952 = vmatprep.subr.mxu0 0.0
    %953 = vmatpush1.msra.mxu0 0.0
    %954 = vmatprep.subr.mxu0 0.0
    %955 = vmatpush1.msra.mxu0 0.0
    %956 = vmatprep.subr.mxu0 0.0
    %957 = vmatpush1.msra.mxu0 0.0
    %958 = vmatprep.subr.mxu0 0.0
    %959 = vmatpush1.msra.mxu0 0.0
    %960 = vmatprep.subr.mxu0 0.0
    %961 = vmatpush1.msra.mxu0 0.0
    %962 = vmatprep.subr.mxu0 0.0
    %963 = vmatpush1.msra.mxu0 0.0
    %964 = vmatprep.subr.mxu0 0.0
    %965 = vmatpush1.msra.mxu0 0.0
    %966 = vmatprep.subr.mxu0 0.0
    %967 = vmatpush1.msra.mxu0 0.0
    %968 = vmatprep.subr.mxu0 0.0
    %969 = vmatpush1.msra.mxu0 0.0
    %970 = vmatprep.subr.mxu0 0.0
    %971 = vmatpush1.msra.mxu0 0.0
    %972 = vmatprep.subr.mxu0 0.0
    %973 = vmatpush1.msra.mxu0 0.0
    %974 = vmatprep.subr.mxu0 0.0
    %975 = vmatpush1.msra.mxu0 0.0
    %976 = vmatprep.subr.mxu0 0.0
    %977 = vmatpush1.msra.mxu0 0.0
    %978 = vmatprep.subr.mxu0 0.0
    %979 = vmatpush1.msra.mxu0 0.0
    %980 = vmatprep.subr.mxu0 0.0
    %981 = vmatpush1.msra.mxu0 0.0
    %982 = vmatprep.subr.mxu0 0.0
    %983 = vmatpush1.msra.mxu0 0.0
    %984 = vmatprep.subr.mxu0 0.0
    %985 = vmatpush1.msra.mxu0 0.0
    %986 = vmatprep.subr.mxu0 0.0
    %987 = vmatpush1.msra.mxu0 0.0
    %988 = vmatprep.subr.mxu0 0.0
    %989 = vmatpush1.msra.mxu0 0.0
    %990 = vmatprep.subr.mxu0 0.0
    %991 = vmatpush1.msra.mxu0 0.0
    %992 = vmatprep.subr.mxu0 0.0
    %993 = vmatpush1.msra.mxu0 0.0
    %994 = vmatprep.subr.mxu0 0.0
    %995 = vmatpush1.msra.mxu0 0.0
    %996 = vmatprep.subr.mxu0 0.0
    %997 = vmatpush1.msra.mxu0 0.0
    %998 = vmatprep.subr.mxu0 0.0
    %999 = vmatpush1.msra.mxu0 0.0
    %1000 = vmatprep.subr.mxu0 0.0
    %1001 = vmatpush1.msra.mxu0 0.0
    %1002 = vmatprep.mubr.f32.mxu0 0.0
    %1003 = vmatmul.mubr.f32.gmra.mrb[0].mxu0 %v866
    %v1004 = vpop.f32.mrb[0].mxu0
    %v1005 = vadd.f32 0.0, %v1004
    %v1006 = vpop.f32.mrb[0].mxu0
    %1007 = vdwg.mxu0
    %1008 = vmatprep.subr.mxu0 0.0
    %1009 = vmatpush1.msra.mxu0 %v369
    %1010 = vmatprep.subr.mxu0 0.0
    %1011 = vmatpush1.msra.mxu0 %v370
    %1012 = vmatprep.subr.mxu0 0.0
    %1013 = vmatpush1.msra.mxu0 %v371
    %1014 = vmatprep.subr.mxu0 0.0
    %1015 = vmatpush1.msra.mxu0 %v372
    %1016 = vmatprep.subr.mxu0 0.0
    %1017 = vmatpush1.msra.mxu0 0.0
    %1018 = vmatprep.subr.mxu0 0.0
    %1019 = vmatpush1.msra.mxu0 0.0
    %1020 = vmatprep.subr.mxu0 0.0
    %1021 = vmatpush1.msra.mxu0 0.0
    %1022 = vmatprep.subr.mxu0 0.0
    %1023 = vmatpush1.msra.mxu0 0.0
    %1024 = vmatprep.subr.mxu0 0.0
    %1025 = vmatpush1.msra.mxu0 0.0
    %1026 = vmatprep.subr.mxu0 0.0
    %1027 = vmatpush1.msra.mxu0 0.0
    %1028 = vmatprep.subr.mxu0 0.0
    %1029 = vmatpush1.msra.mxu0 0.0
    %1030 = vmatprep.subr.mxu0 0.0
    %1031 = vmatpush1.msra.mxu0 0.0
    %1032 = vmatprep.subr.mxu0 0.0
    %1033 = vmatpush1.msra.mxu0 0.0
    %1034 = vmatprep.subr.mxu0 0.0
    %1035 = vmatpush1.msra.mxu0 0.0
    %1036 = vmatprep.subr.mxu0 0.0
    %1037 = vmatpush1.msra.mxu0 0.0
    %1038 = vmatprep.subr.mxu0 0.0
    %1039 = vmatpush1.msra.mxu0 0.0
    %1040 = vmatprep.subr.mxu0 0.0
    %1041 = vmatpush1.msra.mxu0 0.0
    %1042 = vmatprep.subr.mxu0 0.0
    %1043 = vmatpush1.msra.mxu0 0.0
    %1044 = vmatprep.subr.mxu0 0.0
    %1045 = vmatpush1.msra.mxu0 0.0
    %1046 = vmatprep.subr.mxu0 0.0
    %1047 = vmatpush1.msra.mxu0 0.0
    %1048 = vmatprep.subr.mxu0 0.0
    %1049 = vmatpush1.msra.mxu0 0.0
    %1050 = vmatprep.subr.mxu0 0.0
    %1051 = vmatpush1.msra.mxu0 0.0
    %1052 = vmatprep.subr.mxu0 0.0
    %1053 = vmatpush1.msra.mxu0 0.0
    %1054 = vmatprep.subr.mxu0 0.0
    %1055 = vmatpush1.msra.mxu0 0.0
    %1056 = vmatprep.subr.mxu0 0.0
    %1057 = vmatpush1.msra.mxu0 0.0
    %1058 = vmatprep.subr.mxu0 0.0
    %1059 = vmatpush1.msra.mxu0 0.0
    %1060 = vmatprep.subr.mxu0 0.0
    %1061 = vmatpush1.msra.mxu0 0.0
    %1062 = vmatprep.subr.mxu0 0.0
    %1063 = vmatpush1.msra.mxu0 0.0
    %1064 = vmatprep.subr.mxu0 0.0
    %1065 = vmatpush1.msra.mxu0 0.0
    %1066 = vmatprep.subr.mxu0 0.0
    %1067 = vmatpush1.msra.mxu0 0.0
    %1068 = vmatprep.subr.mxu0 0.0
    %1069 = vmatpush1.msra.mxu0 0.0
    %1070 = vmatprep.subr.mxu0 0.0
    %1071 = vmatpush1.msra.mxu0 0.0
    %1072 = vmatprep.mubr.f32.mxu0 0.0
    %1073 = vmatmul.mubr.f32.gmra.mrb[0].mxu0 %v866
    %v1074 = vpop.f32.mrb[0].mxu0
    %v1075 = vadd.f32 %v522, %v1074
    %v1076 = vpop.f32.mrb[0].mxu0
    %1077 = vdwg.mxu0
    %v1079 = vrot.slane %v935, 4
    %v1081 = vadd.f32 %v179, %v1079
    %v1082 = vxor.u32 %v1081, 2147483648
    %v1083 = vmul.f32 %v1082, 1.442695
    %v1084 = vpow.pop %v1083
    %v1085 = vadd.f32 %v1084, 1.0
    %v1086 = vrcp.pop %v1085
    %v1087 = vmul.f32 1.0, %v1086
    %v1089 = vrot.slane %v1005, 4
    %v1091 = vadd.f32 %v265, %v1089
    %v1092 = vxor.u32 %v1091, 2147483648
    %v1093 = vmul.f32 %v1092, 1.442695
    %v1094 = vpow.pop %v1093
    %v1095 = vadd.f32 %v1094, 1.0
    %v1096 = vrcp.pop %v1095
    %v1097 = vmul.f32 1.0, %v1096
    %v1099 = vrot.slane %v1075, 4
    %v1101 = vmul.f32 %v1087, %v1099
    %v1102 = vadd.f32 %v351, %v1101
    %v1103 = vtanh.pop %v1102
    %v1104 = vsub.f32 1.0, %v1097
    %v1105 = vmul.f32 %v1104, %v1103
    %v1106 = vrot.slane %v861, 6
    %v1108 = vmul.f32 %v1097, %v1106
    %v1109 = vadd.f32 %v1105, %v1108
    %vm1110 = vcmask 259076
    %1111 = vst.msk [vmem:[#allocation2] sm:$0x30] %vm1110, %v1109
    %v1113 = vrot.slane %v1109, 4
    %v1114 = vsel %vm374, %v1113, 0
    %1116 = vmatprep.subr.mxu0 0.0
    %1117 = vmatpush1.msra.mxu0 %v359
    %1118 = vmatprep.subr.mxu0 0.0
    %1119 = vmatpush1.msra.mxu0 %v360
    %1120 = vmatprep.subr.mxu0 0.0
    %1121 = vmatpush1.msra.mxu0 %v361
    %1122 = vmatprep.subr.mxu0 0.0
    %1123 = vmatpush1.msra.mxu0 %v362
    %1124 = vmatprep.subr.mxu0 0.0
    %1125 = vmatpush1.msra.mxu0 0.0
    %1126 = vmatprep.subr.mxu0 0.0
    %1127 = vmatpush1.msra.mxu0 0.0
    %1128 = vmatprep.subr.mxu0 0.0
    %1129 = vmatpush1.msra.mxu0 0.0
    %1130 = vmatprep.subr.mxu0 0.0
    %1131 = vmatpush1.msra.mxu0 0.0
    %1132 = vmatprep.subr.mxu0 0.0
    %1133 = vmatpush1.msra.mxu0 0.0
    %1134 = vmatprep.subr.mxu0 0.0
    %1135 = vmatpush1.msra.mxu0 0.0
    %1136 = vmatprep.subr.mxu0 0.0
    %1137 = vmatpush1.msra.mxu0 0.0
    %1138 = vmatprep.subr.mxu0 0.0
    %1139 = vmatpush1.msra.mxu0 0.0
    %1140 = vmatprep.subr.mxu0 0.0
    %1141 = vmatpush1.msra.mxu0 0.0
    %1142 = vmatprep.subr.mxu0 0.0
    %1143 = vmatpush1.msra.mxu0 0.0
    %1144 = vmatprep.subr.mxu0 0.0
    %1145 = vmatpush1.msra.mxu0 0.0
    %1146 = vmatprep.subr.mxu0 0.0
    %1147 = vmatpush1.msra.mxu0 0.0
    %1148 = vmatprep.subr.mxu0 0.0
    %1149 = vmatpush1.msra.mxu0 0.0
    %1150 = vmatprep.subr.mxu0 0.0
    %1151 = vmatpush1.msra.mxu0 0.0
    %1152 = vmatprep.subr.mxu0 0.0
    %1153 = vmatpush1.msra.mxu0 0.0
    %1154 = vmatprep.subr.mxu0 0.0
    %1155 = vmatpush1.msra.mxu0 0.0
    %1156 = vmatprep.subr.mxu0 0.0
    %1157 = vmatpush1.msra.mxu0 0.0
    %1158 = vmatprep.subr.mxu0 0.0
    %1159 = vmatpush1.msra.mxu0 0.0
    %1160 = vmatprep.subr.mxu0 0.0
    %1161 = vmatpush1.msra.mxu0 0.0
    %1162 = vmatprep.subr.mxu0 0.0
    %1163 = vmatpush1.msra.mxu0 0.0
    %1164 = vmatprep.subr.mxu0 0.0
    %1165 = vmatpush1.msra.mxu0 0.0
    %1166 = vmatprep.subr.mxu0 0.0
    %1167 = vmatpush1.msra.mxu0 0.0
    %1168 = vmatprep.subr.mxu0 0.0
    %1169 = vmatpush1.msra.mxu0 0.0
    %1170 = vmatprep.subr.mxu0 0.0
    %1171 = vmatpush1.msra.mxu0 0.0
    %1172 = vmatprep.subr.mxu0 0.0
    %1173 = vmatpush1.msra.mxu0 0.0
    %1174 = vmatprep.subr.mxu0 0.0
    %1175 = vmatpush1.msra.mxu0 0.0
    %1176 = vmatprep.subr.mxu0 0.0
    %1177 = vmatpush1.msra.mxu0 0.0
    %1178 = vmatprep.subr.mxu0 0.0
    %1179 = vmatpush1.msra.mxu0 0.0
    %1180 = vmatprep.mubr.f32.mxu0 0.0
    %1181 = vmatmul.mubr.f32.gmra.mrb[0].mxu0 %v1114
    %v1182 = vpop.f32.mrb[0].mxu0
    %v1183 = vadd.f32 0.0, %v1182
    %v1184 = vpop.f32.mrb[0].mxu0
    %1185 = vdwg.mxu0
    %1186 = vmatprep.subr.mxu0 0.0
    %1187 = vmatpush1.msra.mxu0 %v364
    %1188 = vmatprep.subr.mxu0 0.0
    %1189 = vmatpush1.msra.mxu0 %v365
    %1190 = vmatprep.subr.mxu0 0.0
    %1191 = vmatpush1.msra.mxu0 %v366
    %1192 = vmatprep.subr.mxu0 0.0
    %1193 = vmatpush1.msra.mxu0 %v367
    %1194 = vmatprep.subr.mxu0 0.0
    %1195 = vmatpush1.msra.mxu0 0.0
    %1196 = vmatprep.subr.mxu0 0.0
    %1197 = vmatpush1.msra.mxu0 0.0
    %1198 = vmatprep.subr.mxu0 0.0
    %1199 = vmatpush1.msra.mxu0 0.0
    %1200 = vmatprep.subr.mxu0 0.0
    %1201 = vmatpush1.msra.mxu0 0.0
    %1202 = vmatprep.subr.mxu0 0.0
    %1203 = vmatpush1.msra.mxu0 0.0
    %1204 = vmatprep.subr.mxu0 0.0
    %1205 = vmatpush1.msra.mxu0 0.0
    %1206 = vmatprep.subr.mxu0 0.0
    %1207 = vmatpush1.msra.mxu0 0.0
    %1208 = vmatprep.subr.mxu0 0.0
    %1209 = vmatpush1.msra.mxu0 0.0
    %1210 = vmatprep.subr.mxu0 0.0
    %1211 = vmatpush1.msra.mxu0 0.0
    %1212 = vmatprep.subr.mxu0 0.0
    %1213 = vmatpush1.msra.mxu0 0.0
    %1214 = vmatprep.subr.mxu0 0.0
    %1215 = vmatpush1.msra.mxu0 0.0
    %1216 = vmatprep.subr.mxu0 0.0
    %1217 = vmatpush1.msra.mxu0 0.0
    %1218 = vmatprep.subr.mxu0 0.0
    %1219 = vmatpush1.msra.mxu0 0.0
    %1220 = vmatprep.subr.mxu0 0.0
    %1221 = vmatpush1.msra.mxu0 0.0
    %1222 = vmatprep.subr.mxu0 0.0
    %1223 = vmatpush1.msra.mxu0 0.0
    %1224 = vmatprep.subr.mxu0 0.0
    %1225 = vmatpush1.msra.mxu0 0.0
    %1226 = vmatprep.subr.mxu0 0.0
    %1227 = vmatpush1.msra.mxu0 0.0
    %1228 = vmatprep.subr.mxu0 0.0
    %1229 = vmatpush1.msra.mxu0 0.0
    %1230 = vmatprep.subr.mxu0 0.0
    %1231 = vmatpush1.msra.mxu0 0.0
    %1232 = vmatprep.subr.mxu0 0.0
    %1233 = vmatpush1.msra.mxu0 0.0
    %1234 = vmatprep.subr.mxu0 0.0
    %1235 = vmatpush1.msra.mxu0 0.0
    %1236 = vmatprep.subr.mxu0 0.0
    %1237 = vmatpush1.msra.mxu0 0.0
    %1238 = vmatprep.subr.mxu0 0.0
    %1239 = vmatpush1.msra.mxu0 0.0
    %1240 = vmatprep.subr.mxu0 0.0
    %1241 = vmatpush1.msra.mxu0 0.0
    %1242 = vmatprep.subr.mxu0 0.0
    %1243 = vmatpush1.msra.mxu0 0.0
    %1244 = vmatprep.subr.mxu0 0.0
    %1245 = vmatpush1.msra.mxu0 0.0
    %1246 = vmatprep.subr.mxu0 0.0
    %1247 = vmatpush1.msra.mxu0 0.0
    %1248 = vmatprep.subr.mxu0 0.0
    %1249 = vmatpush1.msra.mxu0 0.0
    %1250 = vmatprep.mubr.f32.mxu0 0.0
    %1251 = vmatmul.mubr.f32.gmra.mrb[0].mxu0 %v1114
    %v1252 = vpop.f32.mrb[0].mxu0
    %v1253 = vadd.f32 0.0, %v1252
    %v1254 = vpop.f32.mrb[0].mxu0
    %1255 = vdwg.mxu0
    %1256 = vmatprep.subr.mxu0 0.0
    %1257 = vmatpush1.msra.mxu0 %v369
    %1258 = vmatprep.subr.mxu0 0.0
    %1259 = vmatpush1.msra.mxu0 %v370
    %1260 = vmatprep.subr.mxu0 0.0
    %1261 = vmatpush1.msra.mxu0 %v371
    %1262 = vmatprep.subr.mxu0 0.0
    %1263 = vmatpush1.msra.mxu0 %v372
    %1264 = vmatprep.subr.mxu0 0.0
    %1265 = vmatpush1.msra.mxu0 0.0
    %1266 = vmatprep.subr.mxu0 0.0
    %1267 = vmatpush1.msra.mxu0 0.0
    %1268 = vmatprep.subr.mxu0 0.0
    %1269 = vmatpush1.msra.mxu0 0.0
    %1270 = vmatprep.subr.mxu0 0.0
    %1271 = vmatpush1.msra.mxu0 0.0
    %1272 = vmatprep.subr.mxu0 0.0
    %1273 = vmatpush1.msra.mxu0 0.0
    %1274 = vmatprep.subr.mxu0 0.0
    %1275 = vmatpush1.msra.mxu0 0.0
    %1276 = vmatprep.subr.mxu0 0.0
    %1277 = vmatpush1.msra.mxu0 0.0
    %1278 = vmatprep.subr.mxu0 0.0
    %1279 = vmatpush1.msra.mxu0 0.0
    %1280 = vmatprep.subr.mxu0 0.0
    %1281 = vmatpush1.msra.mxu0 0.0
    %1282 = vmatprep.subr.mxu0 0.0
    %1283 = vmatpush1.msra.mxu0 0.0
    %1284 = vmatprep.subr.mxu0 0.0
    %1285 = vmatpush1.msra.mxu0 0.0
    %1286 = vmatprep.subr.mxu0 0.0
    %1287 = vmatpush1.msra.mxu0 0.0
    %1288 = vmatprep.subr.mxu0 0.0
    %1289 = vmatpush1.msra.mxu0 0.0
    %1290 = vmatprep.subr.mxu0 0.0
    %1291 = vmatpush1.msra.mxu0 0.0
    %1292 = vmatprep.subr.mxu0 0.0
    %1293 = vmatpush1.msra.mxu0 0.0
    %1294 = vmatprep.subr.mxu0 0.0
    %1295 = vmatpush1.msra.mxu0 0.0
    %1296 = vmatprep.subr.mxu0 0.0
    %1297 = vmatpush1.msra.mxu0 0.0
    %1298 = vmatprep.subr.mxu0 0.0
    %1299 = vmatpush1.msra.mxu0 0.0
    %1300 = vmatprep.subr.mxu0 0.0
    %1301 = vmatpush1.msra.mxu0 0.0
    %1302 = vmatprep.subr.mxu0 0.0
    %1303 = vmatpush1.msra.mxu0 0.0
    %1304 = vmatprep.subr.mxu0 0.0
    %1305 = vmatpush1.msra.mxu0 0.0
    %1306 = vmatprep.subr.mxu0 0.0
    %1307 = vmatpush1.msra.mxu0 0.0
    %1308 = vmatprep.subr.mxu0 0.0
    %1309 = vmatpush1.msra.mxu0 0.0
    %1310 = vmatprep.subr.mxu0 0.0
    %1311 = vmatpush1.msra.mxu0 0.0
    %1312 = vmatprep.subr.mxu0 0.0
    %1313 = vmatpush1.msra.mxu0 0.0
    %1314 = vmatprep.subr.mxu0 0.0
    %1315 = vmatpush1.msra.mxu0 0.0
    %1316 = vmatprep.subr.mxu0 0.0
    %1317 = vmatpush1.msra.mxu0 0.0
    %1318 = vmatprep.subr.mxu0 0.0
    %1319 = vmatpush1.msra.mxu0 0.0
    %1320 = vmatprep.mubr.f32.mxu0 0.0
    %1321 = vmatmul.mubr.f32.gmra.mrb[0].mxu0 %v1114
    %v1322 = vpop.f32.mrb[0].mxu0
    %v1323 = vadd.f32 %v522, %v1322
    %v1324 = vpop.f32.mrb[0].mxu0
    %1325 = vdwg.mxu0
    %v1327 = vrot.slane %v1183, 2
    %v1329 = vadd.f32 %v179, %v1327
    %v1330 = vxor.u32 %v1329, 2147483648
    %v1331 = vmul.f32 %v1330, 1.442695
    %v1332 = vpow.pop %v1331
    %v1333 = vadd.f32 %v1332, 1.0
    %v1334 = vrcp.pop %v1333
    %v1335 = vmul.f32 1.0, %v1334
    %v1337 = vrot.slane %v1253, 2
    %v1339 = vadd.f32 %v265, %v1337
    %v1340 = vxor.u32 %v1339, 2147483648
    %v1341 = vmul.f32 %v1340, 1.442695
    %v1342 = vpow.pop %v1341
    %v1343 = vadd.f32 %v1342, 1.0
    %v1344 = vrcp.pop %v1343
    %v1345 = vmul.f32 1.0, %v1344
    %v1347 = vrot.slane %v1323, 2
    %v1349 = vmul.f32 %v1335, %v1347
    %v1350 = vadd.f32 %v351, %v1349
    %v1351 = vtanh.pop %v1350
    %v1352 = vsub.f32 1.0, %v1345
    %v1353 = vmul.f32 %v1352, %v1351
    %v1354 = vrot.slane %v1109, 6
    %v1356 = vmul.f32 %v1345, %v1354
    %v1357 = vadd.f32 %v1353, %v1356
    %vm1358 = vcmask 261126
    %1359 = vst.msk [vmem:[#allocation2] sm:$0xc0] %vm1358, %v1357
    %v1361 = vrot.slane %v1357, 6
    %v1362 = vsel %vm374, %v1361, 0
    %1364 = vmatprep.subr.mxu0 0.0
    %1365 = vmatpush1.msra.mxu0 %v359
    %1366 = vmatprep.subr.mxu0 0.0
    %1367 = vmatpush1.msra.mxu0 %v360
    %1368 = vmatprep.subr.mxu0 0.0
    %1369 = vmatpush1.msra.mxu0 %v361
    %1370 = vmatprep.subr.mxu0 0.0
    %1371 = vmatpush1.msra.mxu0 %v362
    %1372 = vmatprep.subr.mxu0 0.0
    %1373 = vmatpush1.msra.mxu0 0.0
    %1374 = vmatprep.subr.mxu0 0.0
    %1375 = vmatpush1.msra.mxu0 0.0
    %1376 = vmatprep.subr.mxu0 0.0
    %1377 = vmatpush1.msra.mxu0 0.0
    %1378 = vmatprep.subr.mxu0 0.0
    %1379 = vmatpush1.msra.mxu0 0.0
    %1380 = vmatprep.subr.mxu0 0.0
    %1381 = vmatpush1.msra.mxu0 0.0
    %1382 = vmatprep.subr.mxu0 0.0
    %1383 = vmatpush1.msra.mxu0 0.0
    %1384 = vmatprep.subr.mxu0 0.0
    %1385 = vmatpush1.msra.mxu0 0.0
    %1386 = vmatprep.subr.mxu0 0.0
    %1387 = vmatpush1.msra.mxu0 0.0
    %1388 = vmatprep.subr.mxu0 0.0
    %1389 = vmatpush1.msra.mxu0 0.0
    %1390 = vmatprep.subr.mxu0 0.0
    %1391 = vmatpush1.msra.mxu0 0.0
    %1392 = vmatprep.subr.mxu0 0.0
    %1393 = vmatpush1.msra.mxu0 0.0
    %1394 = vmatprep.subr.mxu0 0.0
    %1395 = vmatpush1.msra.mxu0 0.0
    %1396 = vmatprep.subr.mxu0 0.0
    %1397 = vmatpush1.msra.mxu0 0.0
    %1398 = vmatprep.subr.mxu0 0.0
    %1399 = vmatpush1.msra.mxu0 0.0
    %1400 = vmatprep.subr.mxu0 0.0
    %1401 = vmatpush1.msra.mxu0 0.0
    %1402 = vmatprep.subr.mxu0 0.0
    %1403 = vmatpush1.msra.mxu0 0.0
    %1404 = vmatprep.subr.mxu0 0.0
    %1405 = vmatpush1.msra.mxu0 0.0
    %1406 = vmatprep.subr.mxu0 0.0
    %1407 = vmatpush1.msra.mxu0 0.0
    %1408 = vmatprep.subr.mxu0 0.0
    %1409 = vmatpush1.msra.mxu0 0.0
    %1410 = vmatprep.subr.mxu0 0.0
    %1411 = vmatpush1.msra.mxu0 0.0
    %1412 = vmatprep.subr.mxu0 0.0
    %1413 = vmatpush1.msra.mxu0 0.0
    %1414 = vmatprep.subr.mxu0 0.0
    %1415 = vmatpush1.msra.mxu0 0.0
    %1416 = vmatprep.subr.mxu0 0.0
    %1417 = vmatpush1.msra.mxu0 0.0
    %1418 = vmatprep.subr.mxu0 0.0
    %1419 = vmatpush1.msra.mxu0 0.0
    %1420 = vmatprep.subr.mxu0 0.0
    %1421 = vmatpush1.msra.mxu0 0.0
    %1422 = vmatprep.subr.mxu0 0.0
    %1423 = vmatpush1.msra.mxu0 0.0
    %1424 = vmatprep.subr.mxu0 0.0
    %1425 = vmatpush1.msra.mxu0 0.0
    %1426 = vmatprep.subr.mxu0 0.0
    %1427 = vmatpush1.msra.mxu0 0.0
    %1428 = vmatprep.mubr.f32.mxu0 0.0
    %1429 = vmatmul.mubr.f32.gmra.mrb[0].mxu0 %v1362
    %v1430 = vpop.f32.mrb[0].mxu0
    %v1431 = vadd.f32 0.0, %v1430
    %v1432 = vpop.f32.mrb[0].mxu0
    %1433 = vdwg.mxu0
    %1434 = vmatprep.subr.mxu0 0.0
    %1435 = vmatpush1.msra.mxu0 %v364
    %1436 = vmatprep.subr.mxu0 0.0
    %1437 = vmatpush1.msra.mxu0 %v365
    %1438 = vmatprep.subr.mxu0 0.0
    %1439 = vmatpush1.msra.mxu0 %v366
    %1440 = vmatprep.subr.mxu0 0.0
    %1441 = vmatpush1.msra.mxu0 %v367
    %1442 = vmatprep.subr.mxu0 0.0
    %1443 = vmatpush1.msra.mxu0 0.0
    %1444 = vmatprep.subr.mxu0 0.0
    %1445 = vmatpush1.msra.mxu0 0.0
    %1446 = vmatprep.subr.mxu0 0.0
    %1447 = vmatpush1.msra.mxu0 0.0
    %1448 = vmatprep.subr.mxu0 0.0
    %1449 = vmatpush1.msra.mxu0 0.0
    %1450 = vmatprep.subr.mxu0 0.0
    %1451 = vmatpush1.msra.mxu0 0.0
    %1452 = vmatprep.subr.mxu0 0.0
    %1453 = vmatpush1.msra.mxu0 0.0
    %1454 = vmatprep.subr.mxu0 0.0
    %1455 = vmatpush1.msra.mxu0 0.0
    %1456 = vmatprep.subr.mxu0 0.0
    %1457 = vmatpush1.msra.mxu0 0.0
    %1458 = vmatprep.subr.mxu0 0.0
    %1459 = vmatpush1.msra.mxu0 0.0
    %1460 = vmatprep.subr.mxu0 0.0
    %1461 = vmatpush1.msra.mxu0 0.0
    %1462 = vmatprep.subr.mxu0 0.0
    %1463 = vmatpush1.msra.mxu0 0.0
    %1464 = vmatprep.subr.mxu0 0.0
    %1465 = vmatpush1.msra.mxu0 0.0
    %1466 = vmatprep.subr.mxu0 0.0
    %1467 = vmatpush1.msra.mxu0 0.0
    %1468 = vmatprep.subr.mxu0 0.0
    %1469 = vmatpush1.msra.mxu0 0.0
    %1470 = vmatprep.subr.mxu0 0.0
    %1471 = vmatpush1.msra.mxu0 0.0
    %1472 = vmatprep.subr.mxu0 0.0
    %1473 = vmatpush1.msra.mxu0 0.0
    %1474 = vmatprep.subr.mxu0 0.0
    %1475 = vmatpush1.msra.mxu0 0.0
    %1476 = vmatprep.subr.mxu0 0.0
    %1477 = vmatpush1.msra.mxu0 0.0
    %1478 = vmatprep.subr.mxu0 0.0
    %1479 = vmatpush1.msra.mxu0 0.0
    %1480 = vmatprep.subr.mxu0 0.0
    %1481 = vmatpush1.msra.mxu0 0.0
    %1482 = vmatprep.subr.mxu0 0.0
    %1483 = vmatpush1.msra.mxu0 0.0
    %1484 = vmatprep.subr.mxu0 0.0
    %1485 = vmatpush1.msra.mxu0 0.0
    %1486 = vmatprep.subr.mxu0 0.0
    %1487 = vmatpush1.msra.mxu0 0.0
    %1488 = vmatprep.subr.mxu0 0.0
    %1489 = vmatpush1.msra.mxu0 0.0
    %1490 = vmatprep.subr.mxu0 0.0
    %1491 = vmatpush1.msra.mxu0 0.0
    %1492 = vmatprep.subr.mxu0 0.0
    %1493 = vmatpush1.msra.mxu0 0.0
    %1494 = vmatprep.subr.mxu0 0.0
    %1495 = vmatpush1.msra.mxu0 0.0
    %1496 = vmatprep.subr.mxu0 0.0
    %1497 = vmatpush1.msra.mxu0 0.0
    %1498 = vmatprep.mubr.f32.mxu0 0.0
    %1499 = vmatmul.mubr.f32.gmra.mrb[0].mxu0 %v1362
    %v1500 = vpop.f32.mrb[0].mxu0
    %v1501 = vadd.f32 0.0, %v1500
    %v1502 = vpop.f32.mrb[0].mxu0
    %1503 = vdwg.mxu0
    %1504 = vmatprep.subr.mxu0 0.0
    %1505 = vmatpush1.msra.mxu0 %v369
    %1506 = vmatprep.subr.mxu0 0.0
    %1507 = vmatpush1.msra.mxu0 %v370
    %1508 = vmatprep.subr.mxu0 0.0
    %1509 = vmatpush1.msra.mxu0 %v371
    %1510 = vmatprep.subr.mxu0 0.0
    %1511 = vmatpush1.msra.mxu0 %v372
    %1512 = vmatprep.subr.mxu0 0.0
    %1513 = vmatpush1.msra.mxu0 0.0
    %1514 = vmatprep.subr.mxu0 0.0
    %1515 = vmatpush1.msra.mxu0 0.0
    %1516 = vmatprep.subr.mxu0 0.0
    %1517 = vmatpush1.msra.mxu0 0.0
    %1518 = vmatprep.subr.mxu0 0.0
    %1519 = vmatpush1.msra.mxu0 0.0
    %1520 = vmatprep.subr.mxu0 0.0
    %1521 = vmatpush1.msra.mxu0 0.0
    %1522 = vmatprep.subr.mxu0 0.0
    %1523 = vmatpush1.msra.mxu0 0.0
    %1524 = vmatprep.subr.mxu0 0.0
    %1525 = vmatpush1.msra.mxu0 0.0
    %1526 = vmatprep.subr.mxu0 0.0
    %1527 = vmatpush1.msra.mxu0 0.0
    %1528 = vmatprep.subr.mxu0 0.0
    %1529 = vmatpush1.msra.mxu0 0.0
    %1530 = vmatprep.subr.mxu0 0.0
    %1531 = vmatpush1.msra.mxu0 0.0
    %1532 = vmatprep.subr.mxu0 0.0
    %1533 = vmatpush1.msra.mxu0 0.0
    %1534 = vmatprep.subr.mxu0 0.0
    %1535 = vmatpush1.msra.mxu0 0.0
    %1536 = vmatprep.subr.mxu0 0.0
    %1537 = vmatpush1.msra.mxu0 0.0
    %1538 = vmatprep.subr.mxu0 0.0
    %1539 = vmatpush1.msra.mxu0 0.0
    %1540 = vmatprep.subr.mxu0 0.0
    %1541 = vmatpush1.msra.mxu0 0.0
    %1542 = vmatprep.subr.mxu0 0.0
    %1543 = vmatpush1.msra.mxu0 0.0
    %1544 = vmatprep.subr.mxu0 0.0
    %1545 = vmatpush1.msra.mxu0 0.0
    %1546 = vmatprep.subr.mxu0 0.0
    %1547 = vmatpush1.msra.mxu0 0.0
    %1548 = vmatprep.subr.mxu0 0.0
    %1549 = vmatpush1.msra.mxu0 0.0
    %1550 = vmatprep.subr.mxu0 0.0
    %1551 = vmatpush1.msra.mxu0 0.0
    %1552 = vmatprep.subr.mxu0 0.0
    %1553 = vmatpush1.msra.mxu0 0.0
    %1554 = vmatprep.subr.mxu0 0.0
    %1555 = vmatpush1.msra.mxu0 0.0
    %1556 = vmatprep.subr.mxu0 0.0
    %1557 = vmatpush1.msra.mxu0 0.0
    %1558 = vmatprep.subr.mxu0 0.0
    %1559 = vmatpush1.msra.mxu0 0.0
    %1560 = vmatprep.subr.mxu0 0.0
    %1561 = vmatpush1.msra.mxu0 0.0
    %1562 = vmatprep.subr.mxu0 0.0
    %1563 = vmatpush1.msra.mxu0 0.0
    %1564 = vmatprep.subr.mxu0 0.0
    %1565 = vmatpush1.msra.mxu0 0.0
    %1566 = vmatprep.subr.mxu0 0.0
    %1567 = vmatpush1.msra.mxu0 0.0
    %1568 = vmatprep.mubr.f32.mxu0 0.0
    %1569 = vmatmul.mubr.f32.gmra.mrb[0].mxu0 %v1362
    %v1570 = vpop.f32.mrb[0].mxu0
    %v1571 = vadd.f32 %v522, %v1570
    %v1572 = vpop.f32.mrb[0].mxu0
    %1573 = vdwg.mxu0
    %v1574 = vadd.f32 %v184, %v1431
    %v1575 = vxor.u32 %v1574, 2147483648
    %v1576 = vmul.f32 %v1575, 1.442695
    %v1577 = vpow.pop %v1576
    %v1578 = vadd.f32 %v1577, 1.0
    %v1579 = vrcp.pop %v1578
    %v1580 = vmul.f32 1.0, %v1579
    %v1581 = vadd.f32 %v270, %v1501
    %v1582 = vxor.u32 %v1581, 2147483648
    %v1583 = vmul.f32 %v1582, 1.442695
    %v1584 = vpow.pop %v1583
    %v1585 = vadd.f32 %v1584, 1.0
    %v1586 = vrcp.pop %v1585
    %v1587 = vmul.f32 1.0, %v1586
    %v1588 = vmul.f32 %v1580, %v1571
    %v1589 = vadd.f32 %v356, %v1588
    %v1590 = vtanh.pop %v1589
    %v1591 = vsub.f32 1.0, %v1587
    %v1592 = vmul.f32 %v1591, %v1590
    %v1594 = vmul.f32 %v1587, %v1361
    %v1595 = vadd.f32 %v1592, %v1594
    %1596 = vst.msk [vmem:[#allocation2 + $0x8] sm:$0x3] %vm615, %v1595
    %v1598 = vsel %vm374, %v1595, 0
    %1600 = vmatprep.subr.mxu0 0.0
    %1601 = vmatpush1.msra.mxu0 %v359
    %1602 = vmatprep.subr.mxu0 0.0
    %1603 = vmatpush1.msra.mxu0 %v360
    %1604 = vmatprep.subr.mxu0 0.0
    %1605 = vmatpush1.msra.mxu0 %v361
    %1606 = vmatprep.subr.mxu0 0.0
    %1607 = vmatpush1.msra.mxu0 %v362
    %1608 = vmatprep.subr.mxu0 0.0
    %1609 = vmatpush1.msra.mxu0 0.0
    %1610 = vmatprep.subr.mxu0 0.0
    %1611 = vmatpush1.msra.mxu0 0.0
    %1612 = vmatprep.subr.mxu0 0.0
    %1613 = vmatpush1.msra.mxu0 0.0
    %1614 = vmatprep.subr.mxu0 0.0
    %1615 = vmatpush1.msra.mxu0 0.0
    %1616 = vmatprep.subr.mxu0 0.0
    %1617 = vmatpush1.msra.mxu0 0.0
    %1618 = vmatprep.subr.mxu0 0.0
    %1619 = vmatpush1.msra.mxu0 0.0
    %1620 = vmatprep.subr.mxu0 0.0
    %1621 = vmatpush1.msra.mxu0 0.0
    %1622 = vmatprep.subr.mxu0 0.0
    %1623 = vmatpush1.msra.mxu0 0.0
    %1624 = vmatprep.subr.mxu0 0.0
    %1625 = vmatpush1.msra.mxu0 0.0
    %1626 = vmatprep.subr.mxu0 0.0
    %1627 = vmatpush1.msra.mxu0 0.0
    %1628 = vmatprep.subr.mxu0 0.0
    %1629 = vmatpush1.msra.mxu0 0.0
    %1630 = vmatprep.subr.mxu0 0.0
    %1631 = vmatpush1.msra.mxu0 0.0
    %1632 = vmatprep.subr.mxu0 0.0
    %1633 = vmatpush1.msra.mxu0 0.0
    %1634 = vmatprep.subr.mxu0 0.0
    %1635 = vmatpush1.msra.mxu0 0.0
    %1636 = vmatprep.subr.mxu0 0.0
    %1637 = vmatpush1.msra.mxu0 0.0
    %1638 = vmatprep.subr.mxu0 0.0
    %1639 = vmatpush1.msra.mxu0 0.0
    %1640 = vmatprep.subr.mxu0 0.0
    %1641 = vmatpush1.msra.mxu0 0.0
    %1642 = vmatprep.subr.mxu0 0.0
    %1643 = vmatpush1.msra.mxu0 0.0
    %1644 = vmatprep.subr.mxu0 0.0
    %1645 = vmatpush1.msra.mxu0 0.0
    %1646 = vmatprep.subr.mxu0 0.0
    %1647 = vmatpush1.msra.mxu0 0.0
    %1648 = vmatprep.subr.mxu0 0.0
    %1649 = vmatpush1.msra.mxu0 0.0
    %1650 = vmatprep.subr.mxu0 0.0
    %1651 = vmatpush1.msra.mxu0 0.0
    %1652 = vmatprep.subr.mxu0 0.0
    %1653 = vmatpush1.msra.mxu0 0.0
    %1654 = vmatprep.subr.mxu0 0.0
    %1655 = vmatpush1.msra.mxu0 0.0
    %1656 = vmatprep.subr.mxu0 0.0
    %1657 = vmatpush1.msra.mxu0 0.0
    %1658 = vmatprep.subr.mxu0 0.0
    %1659 = vmatpush1.msra.mxu0 0.0
    %1660 = vmatprep.subr.mxu0 0.0
    %1661 = vmatpush1.msra.mxu0 0.0
    %1662 = vmatprep.subr.mxu0 0.0
    %1663 = vmatpush1.msra.mxu0 0.0
    %1664 = vmatprep.mubr.f32.mxu0 0.0
    %1665 = vmatmul.mubr.f32.gmra.mrb[0].mxu0 %v1598
    %v1666 = vpop.f32.mrb[0].mxu0
    %v1667 = vadd.f32 0.0, %v1666
    %v1668 = vpop.f32.mrb[0].mxu0
    %1669 = vdwg.mxu0
    %1670 = vmatprep.subr.mxu0 0.0
    %1671 = vmatpush1.msra.mxu0 %v364
    %1672 = vmatprep.subr.mxu0 0.0
    %1673 = vmatpush1.msra.mxu0 %v365
    %1674 = vmatprep.subr.mxu0 0.0
    %1675 = vmatpush1.msra.mxu0 %v366
    %1676 = vmatprep.subr.mxu0 0.0
    %1677 = vmatpush1.msra.mxu0 %v367
    %1678 = vmatprep.subr.mxu0 0.0
    %1679 = vmatpush1.msra.mxu0 0.0
    %1680 = vmatprep.subr.mxu0 0.0
    %1681 = vmatpush1.msra.mxu0 0.0
    %1682 = vmatprep.subr.mxu0 0.0
    %1683 = vmatpush1.msra.mxu0 0.0
    %1684 = vmatprep.subr.mxu0 0.0
    %1685 = vmatpush1.msra.mxu0 0.0
    %1686 = vmatprep.subr.mxu0 0.0
    %1687 = vmatpush1.msra.mxu0 0.0
    %1688 = vmatprep.subr.mxu0 0.0
    %1689 = vmatpush1.msra.mxu0 0.0
    %1690 = vmatprep.subr.mxu0 0.0
    %1691 = vmatpush1.msra.mxu0 0.0
    %1692 = vmatprep.subr.mxu0 0.0
    %1693 = vmatpush1.msra.mxu0 0.0
    %1694 = vmatprep.subr.mxu0 0.0
    %1695 = vmatpush1.msra.mxu0 0.0
    %1696 = vmatprep.subr.mxu0 0.0
    %1697 = vmatpush1.msra.mxu0 0.0
    %1698 = vmatprep.subr.mxu0 0.0
    %1699 = vmatpush1.msra.mxu0 0.0
    %1700 = vmatprep.subr.mxu0 0.0
    %1701 = vmatpush1.msra.mxu0 0.0
    %1702 = vmatprep.subr.mxu0 0.0
    %1703 = vmatpush1.msra.mxu0 0.0
    %1704 = vmatprep.subr.mxu0 0.0
    %1705 = vmatpush1.msra.mxu0 0.0
    %1706 = vmatprep.subr.mxu0 0.0
    %1707 = vmatpush1.msra.mxu0 0.0
    %1708 = vmatprep.subr.mxu0 0.0
    %1709 = vmatpush1.msra.mxu0 0.0
    %1710 = vmatprep.subr.mxu0 0.0
    %1711 = vmatpush1.msra.mxu0 0.0
    %1712 = vmatprep.subr.mxu0 0.0
    %1713 = vmatpush1.msra.mxu0 0.0
    %1714 = vmatprep.subr.mxu0 0.0
    %1715 = vmatpush1.msra.mxu0 0.0
    %1716 = vmatprep.subr.mxu0 0.0
    %1717 = vmatpush1.msra.mxu0 0.0
    %1718 = vmatprep.subr.mxu0 0.0
    %1719 = vmatpush1.msra.mxu0 0.0
    %1720 = vmatprep.subr.mxu0 0.0
    %1721 = vmatpush1.msra.mxu0 0.0
    %1722 = vmatprep.subr.mxu0 0.0
    %1723 = vmatpush1.msra.mxu0 0.0
    %1724 = vmatprep.subr.mxu0 0.0
    %1725 = vmatpush1.msra.mxu0 0.0
    %1726 = vmatprep.subr.mxu0 0.0
    %1727 = vmatpush1.msra.mxu0 0.0
    %1728 = vmatprep.subr.mxu0 0.0
    %1729 = vmatpush1.msra.mxu0 0.0
    %1730 = vmatprep.subr.mxu0 0.0
    %1731 = vmatpush1.msra.mxu0 0.0
    %1732 = vmatprep.subr.mxu0 0.0
    %1733 = vmatpush1.msra.mxu0 0.0
    %1734 = vmatprep.mubr.f32.mxu0 0.0
    %1735 = vmatmul.mubr.f32.gmra.mrb[0].mxu0 %v1598
    %v1736 = vpop.f32.mrb[0].mxu0
    %v1737 = vadd.f32 0.0, %v1736
    %v1738 = vpop.f32.mrb[0].mxu0
    %1739 = vdwg.mxu0
    %1740 = vmatprep.subr.mxu0 0.0
    %1741 = vmatpush1.msra.mxu0 %v369
    %1742 = vmatprep.subr.mxu0 0.0
    %1743 = vmatpush1.msra.mxu0 %v370
    %1744 = vmatprep.subr.mxu0 0.0
    %1745 = vmatpush1.msra.mxu0 %v371
    %1746 = vmatprep.subr.mxu0 0.0
    %1747 = vmatpush1.msra.mxu0 %v372
    %1748 = vmatprep.subr.mxu0 0.0
    %1749 = vmatpush1.msra.mxu0 0.0
    %1750 = vmatprep.subr.mxu0 0.0
    %1751 = vmatpush1.msra.mxu0 0.0
    %1752 = vmatprep.subr.mxu0 0.0
    %1753 = vmatpush1.msra.mxu0 0.0
    %1754 = vmatprep.subr.mxu0 0.0
    %1755 = vmatpush1.msra.mxu0 0.0
    %1756 = vmatprep.subr.mxu0 0.0
    %1757 = vmatpush1.msra.mxu0 0.0
    %1758 = vmatprep.subr.mxu0 0.0
    %1759 = vmatpush1.msra.mxu0 0.0
    %1760 = vmatprep.subr.mxu0 0.0
    %1761 = vmatpush1.msra.mxu0 0.0
    %1762 = vmatprep.subr.mxu0 0.0
    %1763 = vmatpush1.msra.mxu0 0.0
    %1764 = vmatprep.subr.mxu0 0.0
    %1765 = vmatpush1.msra.mxu0 0.0
    %1766 = vmatprep.subr.mxu0 0.0
    %1767 = vmatpush1.msra.mxu0 0.0
    %1768 = vmatprep.subr.mxu0 0.0
    %1769 = vmatpush1.msra.mxu0 0.0
    %1770 = vmatprep.subr.mxu0 0.0
    %1771 = vmatpush1.msra.mxu0 0.0
    %1772 = vmatprep.subr.mxu0 0.0
    %1773 = vmatpush1.msra.mxu0 0.0
    %1774 = vmatprep.subr.mxu0 0.0
    %1775 = vmatpush1.msra.mxu0 0.0
    %1776 = vmatprep.subr.mxu0 0.0
    %1777 = vmatpush1.msra.mxu0 0.0
    %1778 = vmatprep.subr.mxu0 0.0
    %1779 = vmatpush1.msra.mxu0 0.0
    %1780 = vmatprep.subr.mxu0 0.0
    %1781 = vmatpush1.msra.mxu0 0.0
    %1782 = vmatprep.subr.mxu0 0.0
    %1783 = vmatpush1.msra.mxu0 0.0
    %1784 = vmatprep.subr.mxu0 0.0
    %1785 = vmatpush1.msra.mxu0 0.0
    %1786 = vmatprep.subr.mxu0 0.0
    %1787 = vmatpush1.msra.mxu0 0.0
    %1788 = vmatprep.subr.mxu0 0.0
    %1789 = vmatpush1.msra.mxu0 0.0
    %1790 = vmatprep.subr.mxu0 0.0
    %1791 = vmatpush1.msra.mxu0 0.0
    %1792 = vmatprep.subr.mxu0 0.0
    %1793 = vmatpush1.msra.mxu0 0.0
    %1794 = vmatprep.subr.mxu0 0.0
    %1795 = vmatpush1.msra.mxu0 0.0
    %1796 = vmatprep.subr.mxu0 0.0
    %1797 = vmatpush1.msra.mxu0 0.0
    %1798 = vmatprep.subr.mxu0 0.0
    %1799 = vmatpush1.msra.mxu0 0.0
    %1800 = vmatprep.subr.mxu0 0.0
    %1801 = vmatpush1.msra.mxu0 0.0
    %1802 = vmatprep.subr.mxu0 0.0
    %1803 = vmatpush1.msra.mxu0 0.0
    %1804 = vmatprep.mubr.f32.mxu0 0.0
    %1805 = vmatmul.mubr.f32.gmra.mrb[0].mxu0 %v1598
    %v1806 = vpop.f32.mrb[0].mxu0
    %v1807 = vadd.f32 %v522, %v1806
    %v1808 = vpop.f32.mrb[0].mxu0
    %1809 = vdwg.mxu0
    %v1811 = vrot.slane %v1667, 6
    %v1813 = vadd.f32 %v184, %v1811
    %v1814 = vxor.u32 %v1813, 2147483648
    %v1815 = vmul.f32 %v1814, 1.442695
    %v1816 = vpow.pop %v1815
    %v1817 = vadd.f32 %v1816, 1.0
    %v1818 = vrcp.pop %v1817
    %v1819 = vmul.f32 1.0, %v1818
    %v1821 = vrot.slane %v1737, 6
    %v1823 = vadd.f32 %v270, %v1821
    %v1824 = vxor.u32 %v1823, 2147483648
    %v1825 = vmul.f32 %v1824, 1.442695
    %v1826 = vpow.pop %v1825
    %v1827 = vadd.f32 %v1826, 1.0
    %v1828 = vrcp.pop %v1827
    %v1829 = vmul.f32 1.0, %v1828
    %v1831 = vrot.slane %v1807, 6
    %v1833 = vmul.f32 %v1819, %v1831
    %v1834 = vadd.f32 %v356, %v1833
    %v1835 = vtanh.pop %v1834
    %v1836 = vsub.f32 1.0, %v1829
    %v1837 = vmul.f32 %v1836, %v1835
    %v1838 = vrot.slane %v1595, 6
    %v1840 = vmul.f32 %v1829, %v1838
    %v1841 = vadd.f32 %v1837, %v1840
    %1842 = vst.msk [vmem:[#allocation2 + $0x8] sm:$0xc] %vm862, %v1841
    %v1844 = vrot.slane %v1841, 2
    %v1845 = vsel %vm374, %v1844, 0
    %1847 = vmatprep.subr.mxu0 0.0
    %1848 = vmatpush1.msra.mxu0 %v359
    %1849 = vmatprep.subr.mxu0 0.0
    %1850 = vmatpush1.msra.mxu0 %v360
    %1851 = vmatprep.subr.mxu0 0.0
    %1852 = vmatpush1.msra.mxu0 %v361
    %1853 = vmatprep.subr.mxu0 0.0
    %1854 = vmatpush1.msra.mxu0 %v362
    %1855 = vmatprep.subr.mxu0 0.0
    %1856 = vmatpush1.msra.mxu0 0.0
    %1857 = vmatprep.subr.mxu0 0.0
    %1858 = vmatpush1.msra.mxu0 0.0
    %1859 = vmatprep.subr.mxu0 0.0
    %1860 = vmatpush1.msra.mxu0 0.0
    %1861 = vmatprep.subr.mxu0 0.0
    %1862 = vmatpush1.msra.mxu0 0.0
    %1863 = vmatprep.subr.mxu0 0.0
    %1864 = vmatpush1.msra.mxu0 0.0
    %1865 = vmatprep.subr.mxu0 0.0
    %1866 = vmatpush1.msra.mxu0 0.0
    %1867 = vmatprep.subr.mxu0 0.0
    %1868 = vmatpush1.msra.mxu0 0.0
    %1869 = vmatprep.subr.mxu0 0.0
    %1870 = vmatpush1.msra.mxu0 0.0
    %1871 = vmatprep.subr.mxu0 0.0
    %1872 = vmatpush1.msra.mxu0 0.0
    %1873 = vmatprep.subr.mxu0 0.0
    %1874 = vmatpush1.msra.mxu0 0.0
    %1875 = vmatprep.subr.mxu0 0.0
    %1876 = vmatpush1.msra.mxu0 0.0
    %1877 = vmatprep.subr.mxu0 0.0
    %1878 = vmatpush1.msra.mxu0 0.0
    %1879 = vmatprep.subr.mxu0 0.0
    %1880 = vmatpush1.msra.mxu0 0.0
    %1881 = vmatprep.subr.mxu0 0.0
    %1882 = vmatpush1.msra.mxu0 0.0
    %1883 = vmatprep.subr.mxu0 0.0
    %1884 = vmatpush1.msra.mxu0 0.0
    %1885 = vmatprep.subr.mxu0 0.0
    %1886 = vmatpush1.msra.mxu0 0.0
    %1887 = vmatprep.subr.mxu0 0.0
    %1888 = vmatpush1.msra.mxu0 0.0
    %1889 = vmatprep.subr.mxu0 0.0
    %1890 = vmatpush1.msra.mxu0 0.0
    %1891 = vmatprep.subr.mxu0 0.0
    %1892 = vmatpush1.msra.mxu0 0.0
    %1893 = vmatprep.subr.mxu0 0.0
    %1894 = vmatpush1.msra.mxu0 0.0
    %1895 = vmatprep.subr.mxu0 0.0
    %1896 = vmatpush1.msra.mxu0 0.0
    %1897 = vmatprep.subr.mxu0 0.0
    %1898 = vmatpush1.msra.mxu0 0.0
    %1899 = vmatprep.subr.mxu0 0.0
    %1900 = vmatpush1.msra.mxu0 0.0
    %1901 = vmatprep.subr.mxu0 0.0
    %1902 = vmatpush1.msra.mxu0 0.0
    %1903 = vmatprep.subr.mxu0 0.0
    %1904 = vmatpush1.msra.mxu0 0.0
    %1905 = vmatprep.subr.mxu0 0.0
    %1906 = vmatpush1.msra.mxu0 0.0
    %1907 = vmatprep.subr.mxu0 0.0
    %1908 = vmatpush1.msra.mxu0 0.0
    %1909 = vmatprep.subr.mxu0 0.0
    %1910 = vmatpush1.msra.mxu0 0.0
    %1911 = vmatprep.mubr.f32.mxu0 0.0
    %1912 = vmatmul.mubr.f32.gmra.mrb[0].mxu0 %v1845
    %v1913 = vpop.f32.mrb[0].mxu0
    %v1914 = vadd.f32 0.0, %v1913
    %v1915 = vpop.f32.mrb[0].mxu0
    %1916 = vdwg.mxu0
    %1917 = vmatprep.subr.mxu0 0.0
    %1918 = vmatpush1.msra.mxu0 %v364
    %1919 = vmatprep.subr.mxu0 0.0
    %1920 = vmatpush1.msra.mxu0 %v365
    %1921 = vmatprep.subr.mxu0 0.0
    %1922 = vmatpush1.msra.mxu0 %v366
    %1923 = vmatprep.subr.mxu0 0.0
    %1924 = vmatpush1.msra.mxu0 %v367
    %1925 = vmatprep.subr.mxu0 0.0
    %1926 = vmatpush1.msra.mxu0 0.0
    %1927 = vmatprep.subr.mxu0 0.0
    %1928 = vmatpush1.msra.mxu0 0.0
    %1929 = vmatprep.subr.mxu0 0.0
    %1930 = vmatpush1.msra.mxu0 0.0
    %1931 = vmatprep.subr.mxu0 0.0
    %1932 = vmatpush1.msra.mxu0 0.0
    %1933 = vmatprep.subr.mxu0 0.0
    %1934 = vmatpush1.msra.mxu0 0.0
    %1935 = vmatprep.subr.mxu0 0.0
    %1936 = vmatpush1.msra.mxu0 0.0
    %1937 = vmatprep.subr.mxu0 0.0
    %1938 = vmatpush1.msra.mxu0 0.0
    %1939 = vmatprep.subr.mxu0 0.0
    %1940 = vmatpush1.msra.mxu0 0.0
    %1941 = vmatprep.subr.mxu0 0.0
    %1942 = vmatpush1.msra.mxu0 0.0
    %1943 = vmatprep.subr.mxu0 0.0
    %1944 = vmatpush1.msra.mxu0 0.0
    %1945 = vmatprep.subr.mxu0 0.0
    %1946 = vmatpush1.msra.mxu0 0.0
    %1947 = vmatprep.subr.mxu0 0.0
    %1948 = vmatpush1.msra.mxu0 0.0
    %1949 = vmatprep.subr.mxu0 0.0
    %1950 = vmatpush1.msra.mxu0 0.0
    %1951 = vmatprep.subr.mxu0 0.0
    %1952 = vmatpush1.msra.mxu0 0.0
    %1953 = vmatprep.subr.mxu0 0.0
    %1954 = vmatpush1.msra.mxu0 0.0
    %1955 = vmatprep.subr.mxu0 0.0
    %1956 = vmatpush1.msra.mxu0 0.0
    %1957 = vmatprep.subr.mxu0 0.0
    %1958 = vmatpush1.msra.mxu0 0.0
    %1959 = vmatprep.subr.mxu0 0.0
    %1960 = vmatpush1.msra.mxu0 0.0
    %1961 = vmatprep.subr.mxu0 0.0
    %1962 = vmatpush1.msra.mxu0 0.0
    %1963 = vmatprep.subr.mxu0 0.0
    %1964 = vmatpush1.msra.mxu0 0.0
    %1965 = vmatprep.subr.mxu0 0.0
    %1966 = vmatpush1.msra.mxu0 0.0
    %1967 = vmatprep.subr.mxu0 0.0
    %1968 = vmatpush1.msra.mxu0 0.0
    %1969 = vmatprep.subr.mxu0 0.0
    %1970 = vmatpush1.msra.mxu0 0.0
    %1971 = vmatprep.subr.mxu0 0.0
    %1972 = vmatpush1.msra.mxu0 0.0
    %1973 = vmatprep.subr.mxu0 0.0
    %1974 = vmatpush1.msra.mxu0 0.0
    %1975 = vmatprep.subr.mxu0 0.0
    %1976 = vmatpush1.msra.mxu0 0.0
    %1977 = vmatprep.subr.mxu0 0.0
    %1978 = vmatpush1.msra.mxu0 0.0
    %1979 = vmatprep.subr.mxu0 0.0
    %1980 = vmatpush1.msra.mxu0 0.0
    %1981 = vmatprep.mubr.f32.mxu0 0.0
    %1982 = vmatmul.mubr.f32.gmra.mrb[0].mxu0 %v1845
    %v1983 = vpop.f32.mrb[0].mxu0
    %v1984 = vadd.f32 0.0, %v1983
    %v1985 = vpop.f32.mrb[0].mxu0
    %1986 = vdwg.mxu0
    %1987 = vmatprep.subr.mxu0 0.0
    %1988 = vmatpush1.msra.mxu0 %v369
    %1989 = vmatprep.subr.mxu0 0.0
    %1990 = vmatpush1.msra.mxu0 %v370
    %1991 = vmatprep.subr.mxu0 0.0
    %1992 = vmatpush1.msra.mxu0 %v371
    %1993 = vmatprep.subr.mxu0 0.0
    %1994 = vmatpush1.msra.mxu0 %v372
    %1995 = vmatprep.subr.mxu0 0.0
    %1996 = vmatpush1.msra.mxu0 0.0
    %1997 = vmatprep.subr.mxu0 0.0
    %1998 = vmatpush1.msra.mxu0 0.0
    %1999 = vmatprep.subr.mxu0 0.0
    %2000 = vmatpush1.msra.mxu0 0.0
    %2001 = vmatprep.subr.mxu0 0.0
    %2002 = vmatpush1.msra.mxu0 0.0
    %2003 = vmatprep.subr.mxu0 0.0
    %2004 = vmatpush1.msra.mxu0 0.0
    %2005 = vmatprep.subr.mxu0 0.0
    %2006 = vmatpush1.msra.mxu0 0.0
    %2007 = vmatprep.subr.mxu0 0.0
    %2008 = vmatpush1.msra.mxu0 0.0
    %2009 = vmatprep.subr.mxu0 0.0
    %2010 = vmatpush1.msra.mxu0 0.0
    %2011 = vmatprep.subr.mxu0 0.0
    %2012 = vmatpush1.msra.mxu0 0.0
    %2013 = vmatprep.subr.mxu0 0.0
    %2014 = vmatpush1.msra.mxu0 0.0
    %2015 = vmatprep.subr.mxu0 0.0
    %2016 = vmatpush1.msra.mxu0 0.0
    %2017 = vmatprep.subr.mxu0 0.0
    %2018 = vmatpush1.msra.mxu0 0.0
    %2019 = vmatprep.subr.mxu0 0.0
    %2020 = vmatpush1.msra.mxu0 0.0
    %2021 = vmatprep.subr.mxu0 0.0
    %2022 = vmatpush1.msra.mxu0 0.0
    %2023 = vmatprep.subr.mxu0 0.0
    %2024 = vmatpush1.msra.mxu0 0.0
    %2025 = vmatprep.subr.mxu0 0.0
    %2026 = vmatpush1.msra.mxu0 0.0
    %2027 = vmatprep.subr.mxu0 0.0
    %2028 = vmatpush1.msra.mxu0 0.0
    %2029 = vmatprep.subr.mxu0 0.0
    %2030 = vmatpush1.msra.mxu0 0.0
    %2031 = vmatprep.subr.mxu0 0.0
    %2032 = vmatpush1.msra.mxu0 0.0
    %2033 = vmatprep.subr.mxu0 0.0
    %2034 = vmatpush1.msra.mxu0 0.0
    %2035 = vmatprep.subr.mxu0 0.0
    %2036 = vmatpush1.msra.mxu0 0.0
    %2037 = vmatprep.subr.mxu0 0.0
    %2038 = vmatpush1.msra.mxu0 0.0
    %2039 = vmatprep.subr.mxu0 0.0
    %2040 = vmatpush1.msra.mxu0 0.0
    %2041 = vmatprep.subr.mxu0 0.0
    %2042 = vmatpush1.msra.mxu0 0.0
    %2043 = vmatprep.subr.mxu0 0.0
    %2044 = vmatpush1.msra.mxu0 0.0
    %2045 = vmatprep.subr.mxu0 0.0
    %2046 = vmatpush1.msra.mxu0 0.0
    %2047 = vmatprep.subr.mxu0 0.0
    %2048 = vmatpush1.msra.mxu0 0.0
    %2049 = vmatprep.subr.mxu0 0.0
    %2050 = vmatpush1.msra.mxu0 0.0
    %2051 = vmatprep.mubr.f32.mxu0 0.0
    %2052 = vmatmul.mubr.f32.gmra.mrb[0].mxu0 %v1845
    %v2053 = vpop.f32.mrb[0].mxu0
    %v2054 = vadd.f32 %v522, %v2053
    %v2055 = vpop.f32.mrb[0].mxu0
    %2056 = vdwg.mxu0
    %v2058 = vrot.slane %v1914, 4
    %v2060 = vadd.f32 %v184, %v2058
    %v2061 = vxor.u32 %v2060, 2147483648
    %v2062 = vmul.f32 %v2061, 1.442695
    %v2063 = vpow.pop %v2062
    %v2064 = vadd.f32 %v2063, 1.0
    %v2065 = vrcp.pop %v2064
    %v2066 = vmul.f32 1.0, %v2065
    %v2068 = vrot.slane %v1984, 4
    %v2070 = vadd.f32 %v270, %v2068
    %v2071 = vxor.u32 %v2070, 2147483648
    %v2072 = vmul.f32 %v2071, 1.442695
    %v2073 = vpow.pop %v2072
    %v2074 = vadd.f32 %v2073, 1.0
    %v2075 = vrcp.pop %v2074
    %v2076 = vmul.f32 1.0, %v2075
    %v2078 = vrot.slane %v2054, 4
    %v2080 = vmul.f32 %v2066, %v2078
    %v2081 = vadd.f32 %v356, %v2080
    %v2082 = vtanh.pop %v2081
    %v2083 = vsub.f32 1.0, %v2076
    %v2084 = vmul.f32 %v2083, %v2082
    %v2085 = vrot.slane %v1841, 6
    %v2087 = vmul.f32 %v2076, %v2085
    %v2088 = vadd.f32 %v2084, %v2087
    %2089 = vst.msk [vmem:[#allocation2 + $0x8] sm:$0x30] %vm1110, %v2088
    %v2091 = vrot.slane %v2088, 4
    %v2092 = vsel %vm374, %v2091, 0
    %2094 = vmatprep.subr.mxu0 0.0
    %2095 = vmatpush1.msra.mxu0 %v359
    %2096 = vmatprep.subr.mxu0 0.0
    %2097 = vmatpush1.msra.mxu0 %v360
    %2098 = vmatprep.subr.mxu0 0.0
    %2099 = vmatpush1.msra.mxu0 %v361
    %2100 = vmatprep.subr.mxu0 0.0
    %2101 = vmatpush1.msra.mxu0 %v362
    %2102 = vmatprep.subr.mxu0 0.0
    %2103 = vmatpush1.msra.mxu0 0.0
    %2104 = vmatprep.subr.mxu0 0.0
    %2105 = vmatpush1.msra.mxu0 0.0
    %2106 = vmatprep.subr.mxu0 0.0
    %2107 = vmatpush1.msra.mxu0 0.0
    %2108 = vmatprep.subr.mxu0 0.0
    %2109 = vmatpush1.msra.mxu0 0.0
    %2110 = vmatprep.subr.mxu0 0.0
    %2111 = vmatpush1.msra.mxu0 0.0
    %2112 = vmatprep.subr.mxu0 0.0
    %2113 = vmatpush1.msra.mxu0 0.0
    %2114 = vmatprep.subr.mxu0 0.0
    %2115 = vmatpush1.msra.mxu0 0.0
    %2116 = vmatprep.subr.mxu0 0.0
    %2117 = vmatpush1.msra.mxu0 0.0
    %2118 = vmatprep.subr.mxu0 0.0
    %2119 = vmatpush1.msra.mxu0 0.0
    %2120 = vmatprep.subr.mxu0 0.0
    %2121 = vmatpush1.msra.mxu0 0.0
    %2122 = vmatprep.subr.mxu0 0.0
    %2123 = vmatpush1.msra.mxu0 0.0
    %2124 = vmatprep.subr.mxu0 0.0
    %2125 = vmatpush1.msra.mxu0 0.0
    %2126 = vmatprep.subr.mxu0 0.0
    %2127 = vmatpush1.msra.mxu0 0.0
    %2128 = vmatprep.subr.mxu0 0.0
    %2129 = vmatpush1.msra.mxu0 0.0
    %2130 = vmatprep.subr.mxu0 0.0
    %2131 = vmatpush1.msra.mxu0 0.0
    %2132 = vmatprep.subr.mxu0 0.0
    %2133 = vmatpush1.msra.mxu0 0.0
    %2134 = vmatprep.subr.mxu0 0.0
    %2135 = vmatpush1.msra.mxu0 0.0
    %2136 = vmatprep.subr.mxu0 0.0
    %2137 = vmatpush1.msra.mxu0 0.0
    %2138 = vmatprep.subr.mxu0 0.0
    %2139 = vmatpush1.msra.mxu0 0.0
    %2140 = vmatprep.subr.mxu0 0.0
    %2141 = vmatpush1.msra.mxu0 0.0
    %2142 = vmatprep.subr.mxu0 0.0
    %2143 = vmatpush1.msra.mxu0 0.0
    %2144 = vmatprep.subr.mxu0 0.0
    %2145 = vmatpush1.msra.mxu0 0.0
    %2146 = vmatprep.subr.mxu0 0.0
    %2147 = vmatpush1.msra.mxu0 0.0
    %2148 = vmatprep.subr.mxu0 0.0
    %2149 = vmatpush1.msra.mxu0 0.0
    %2150 = vmatprep.subr.mxu0 0.0
    %2151 = vmatpush1.msra.mxu0 0.0
    %2152 = vmatprep.subr.mxu0 0.0
    %2153 = vmatpush1.msra.mxu0 0.0
    %2154 = vmatprep.subr.mxu0 0.0
    %2155 = vmatpush1.msra.mxu0 0.0
    %2156 = vmatprep.subr.mxu0 0.0
    %2157 = vmatpush1.msra.mxu0 0.0
    %2158 = vmatprep.mubr.f32.mxu0 0.0
    %2159 = vmatmul.mubr.f32.gmra.mrb[0].mxu0 %v2092
    %v2160 = vpop.f32.mrb[0].mxu0
    %v2161 = vadd.f32 0.0, %v2160
    %v2162 = vpop.f32.mrb[0].mxu0
    %2163 = vdwg.mxu0
    %2164 = vmatprep.subr.mxu0 0.0
    %2165 = vmatpush1.msra.mxu0 %v364
    %2166 = vmatprep.subr.mxu0 0.0
    %2167 = vmatpush1.msra.mxu0 %v365
    %2168 = vmatprep.subr.mxu0 0.0
    %2169 = vmatpush1.msra.mxu0 %v366
    %2170 = vmatprep.subr.mxu0 0.0
    %2171 = vmatpush1.msra.mxu0 %v367
    %2172 = vmatprep.subr.mxu0 0.0
    %2173 = vmatpush1.msra.mxu0 0.0
    %2174 = vmatprep.subr.mxu0 0.0
    %2175 = vmatpush1.msra.mxu0 0.0
    %2176 = vmatprep.subr.mxu0 0.0
    %2177 = vmatpush1.msra.mxu0 0.0
    %2178 = vmatprep.subr.mxu0 0.0
    %2179 = vmatpush1.msra.mxu0 0.0
    %2180 = vmatprep.subr.mxu0 0.0
    %2181 = vmatpush1.msra.mxu0 0.0
    %2182 = vmatprep.subr.mxu0 0.0
    %2183 = vmatpush1.msra.mxu0 0.0
    %2184 = vmatprep.subr.mxu0 0.0
    %2185 = vmatpush1.msra.mxu0 0.0
    %2186 = vmatprep.subr.mxu0 0.0
    %2187 = vmatpush1.msra.mxu0 0.0
    %2188 = vmatprep.subr.mxu0 0.0
    %2189 = vmatpush1.msra.mxu0 0.0
    %2190 = vmatprep.subr.mxu0 0.0
    %2191 = vmatpush1.msra.mxu0 0.0
    %2192 = vmatprep.subr.mxu0 0.0
    %2193 = vmatpush1.msra.mxu0 0.0
    %2194 = vmatprep.subr.mxu0 0.0
    %2195 = vmatpush1.msra.mxu0 0.0
    %2196 = vmatprep.subr.mxu0 0.0
    %2197 = vmatpush1.msra.mxu0 0.0
    %2198 = vmatprep.subr.mxu0 0.0
    %2199 = vmatpush1.msra.mxu0 0.0
    %2200 = vmatprep.subr.mxu0 0.0
    %2201 = vmatpush1.msra.mxu0 0.0
    %2202 = vmatprep.subr.mxu0 0.0
    %2203 = vmatpush1.msra.mxu0 0.0
    %2204 = vmatprep.subr.mxu0 0.0
    %2205 = vmatpush1.msra.mxu0 0.0
    %2206 = vmatprep.subr.mxu0 0.0
    %2207 = vmatpush1.msra.mxu0 0.0
    %2208 = vmatprep.subr.mxu0 0.0
    %2209 = vmatpush1.msra.mxu0 0.0
    %2210 = vmatprep.subr.mxu0 0.0
    %2211 = vmatpush1.msra.mxu0 0.0
    %2212 = vmatprep.subr.mxu0 0.0
    %2213 = vmatpush1.msra.mxu0 0.0
    %2214 = vmatprep.subr.mxu0 0.0
    %2215 = vmatpush1.msra.mxu0 0.0
    %2216 = vmatprep.subr.mxu0 0.0
    %2217 = vmatpush1.msra.mxu0 0.0
    %2218 = vmatprep.subr.mxu0 0.0
    %2219 = vmatpush1.msra.mxu0 0.0
    %2220 = vmatprep.subr.mxu0 0.0
    %2221 = vmatpush1.msra.mxu0 0.0
    %2222 = vmatprep.subr.mxu0 0.0
    %2223 = vmatpush1.msra.mxu0 0.0
    %2224 = vmatprep.subr.mxu0 0.0
    %2225 = vmatpush1.msra.mxu0 0.0
    %2226 = vmatprep.subr.mxu0 0.0
    %2227 = vmatpush1.msra.mxu0 0.0
    %2228 = vmatprep.mubr.f32.mxu0 0.0
    %2229 = vmatmul.mubr.f32.gmra.mrb[0].mxu0 %v2092
    %v2230 = vpop.f32.mrb[0].mxu0
    %v2231 = vadd.f32 0.0, %v2230
    %v2232 = vpop.f32.mrb[0].mxu0
    %2233 = vdwg.mxu0
    %2234 = vmatprep.subr.mxu0 0.0
    %2235 = vmatpush1.msra.mxu0 %v369
    %2236 = vmatprep.subr.mxu0 0.0
    %2237 = vmatpush1.msra.mxu0 %v370
    %2238 = vmatprep.subr.mxu0 0.0
    %2239 = vmatpush1.msra.mxu0 %v371
    %2240 = vmatprep.subr.mxu0 0.0
    %2241 = vmatpush1.msra.mxu0 %v372
    %2242 = vmatprep.subr.mxu0 0.0
    %2243 = vmatpush1.msra.mxu0 0.0
    %2244 = vmatprep.subr.mxu0 0.0
    %2245 = vmatpush1.msra.mxu0 0.0
    %2246 = vmatprep.subr.mxu0 0.0
    %2247 = vmatpush1.msra.mxu0 0.0
    %2248 = vmatprep.subr.mxu0 0.0
    %2249 = vmatpush1.msra.mxu0 0.0
    %2250 = vmatprep.subr.mxu0 0.0
    %2251 = vmatpush1.msra.mxu0 0.0
    %2252 = vmatprep.subr.mxu0 0.0
    %2253 = vmatpush1.msra.mxu0 0.0
    %2254 = vmatprep.subr.mxu0 0.0
    %2255 = vmatpush1.msra.mxu0 0.0
    %2256 = vmatprep.subr.mxu0 0.0
    %2257 = vmatpush1.msra.mxu0 0.0
    %2258 = vmatprep.subr.mxu0 0.0
    %2259 = vmatpush1.msra.mxu0 0.0
    %2260 = vmatprep.subr.mxu0 0.0
    %2261 = vmatpush1.msra.mxu0 0.0
    %2262 = vmatprep.subr.mxu0 0.0
    %2263 = vmatpush1.msra.mxu0 0.0
    %2264 = vmatprep.subr.mxu0 0.0
    %2265 = vmatpush1.msra.mxu0 0.0
    %2266 = vmatprep.subr.mxu0 0.0
    %2267 = vmatpush1.msra.mxu0 0.0
    %2268 = vmatprep.subr.mxu0 0.0
    %2269 = vmatpush1.msra.mxu0 0.0
    %2270 = vmatprep.subr.mxu0 0.0
    %2271 = vmatpush1.msra.mxu0 0.0
    %2272 = vmatprep.subr.mxu0 0.0
    %2273 = vmatpush1.msra.mxu0 0.0
    %2274 = vmatprep.subr.mxu0 0.0
    %2275 = vmatpush1.msra.mxu0 0.0
    %2276 = vmatprep.subr.mxu0 0.0
    %2277 = vmatpush1.msra.mxu0 0.0
    %2278 = vmatprep.subr.mxu0 0.0
    %2279 = vmatpush1.msra.mxu0 0.0
    %2280 = vmatprep.subr.mxu0 0.0
    %2281 = vmatpush1.msra.mxu0 0.0
    %2282 = vmatprep.subr.mxu0 0.0
    %2283 = vmatpush1.msra.mxu0 0.0
    %2284 = vmatprep.subr.mxu0 0.0
    %2285 = vmatpush1.msra.mxu0 0.0
    %2286 = vmatprep.subr.mxu0 0.0
    %2287 = vmatpush1.msra.mxu0 0.0
    %2288 = vmatprep.subr.mxu0 0.0
    %2289 = vmatpush1.msra.mxu0 0.0
    %2290 = vmatprep.subr.mxu0 0.0
    %2291 = vmatpush1.msra.mxu0 0.0
    %2292 = vmatprep.subr.mxu0 0.0
    %2293 = vmatpush1.msra.mxu0 0.0
    %2294 = vmatprep.subr.mxu0 0.0
    %2295 = vmatpush1.msra.mxu0 0.0
    %2296 = vmatprep.subr.mxu0 0.0
    %2297 = vmatpush1.msra.mxu0 0.0
    %2298 = vmatprep.mubr.f32.mxu0 0.0
    %2299 = vmatmul.mubr.f32.gmra.mrb[0].mxu0 %v2092
    %v2300 = vpop.f32.mrb[0].mxu0
    %v2301 = vadd.f32 %v522, %v2300
    %v2302 = vpop.f32.mrb[0].mxu0
    %2303 = vdwg.mxu0
    %v2305 = vrot.slane %v2161, 2
    %v2307 = vadd.f32 %v184, %v2305
    %v2308 = vxor.u32 %v2307, 2147483648
    %v2309 = vmul.f32 %v2308, 1.442695
    %v2310 = vpow.pop %v2309
    %v2311 = vadd.f32 %v2310, 1.0
    %v2312 = vrcp.pop %v2311
    %v2313 = vmul.f32 1.0, %v2312
    %v2315 = vrot.slane %v2231, 2
    %v2317 = vadd.f32 %v270, %v2315
    %v2318 = vxor.u32 %v2317, 2147483648
    %v2319 = vmul.f32 %v2318, 1.442695
    %v2320 = vpow.pop %v2319
    %v2321 = vadd.f32 %v2320, 1.0
    %v2322 = vrcp.pop %v2321
    %v2323 = vmul.f32 1.0, %v2322
    %v2325 = vrot.slane %v2301, 2
    %v2327 = vmul.f32 %v2313, %v2325
    %v2328 = vadd.f32 %v356, %v2327
    %v2329 = vtanh.pop %v2328
    %v2330 = vsub.f32 1.0, %v2323
    %v2331 = vmul.f32 %v2330, %v2329
    %v2332 = vrot.slane %v2088, 6
    %v2334 = vmul.f32 %v2323, %v2332
    %v2335 = vadd.f32 %v2331, %v2334
    %2336 = vst.msk [vmem:[#allocation2 + $0x8] sm:$0xc0] %vm1358, %v2335
    %v2337 = vld [vmem:[#allocation2] sm:$0xff]
    %v2338 = vld [vmem:[#allocation2 + $0x8] sm:$0xff]
    %v2339 = vld [vmem:[#allocation8] sm:$0xff]
    %v2340 = vld [vmem:[#allocation8 + $0x8] sm:$0xff]
    %v2341 = vld [vmem:[#allocation8 + $0x10] sm:$0xff]
    %v2342 = vld [vmem:[#allocation8 + $0x18] sm:$0xff]
    %v2343 = vld [vmem:[%s7] sm:$0x1]
    %v2345 = vlaneseq
    %v2346 = vshrl.u32 %v2345, 7
    %v2347 = vsub.s32 0, %v2346
    %v2348 = vrot.slane %v2343, %v2347
    %v2351 = vsel %vm374, %v2337, 0
    %v2354 = vsel %vm374, %v2338, 0
    %2356 = vmatprep.subr.mxu0 0.0
    %2357 = vmatpush1.msra.mxu0 %v2339
    %2358 = vmatprep.subr.mxu0 0.0
    %2359 = vmatpush1.msra.mxu0 %v2340
    %2360 = vmatprep.subr.mxu0 0.0
    %2361 = vmatpush1.msra.mxu0 %v2341
    %2362 = vmatprep.subr.mxu0 0.0
    %2363 = vmatpush1.msra.mxu0 %v2342
    %2364 = vmatprep.subr.mxu0 0.0
    %2365 = vmatpush1.msra.mxu0 0.0
    %2366 = vmatprep.subr.mxu0 0.0
    %2367 = vmatpush1.msra.mxu0 0.0
    %2368 = vmatprep.subr.mxu0 0.0
    %2369 = vmatpush1.msra.mxu0 0.0
    %2370 = vmatprep.subr.mxu0 0.0
    %2371 = vmatpush1.msra.mxu0 0.0
    %2372 = vmatprep.subr.mxu0 0.0
    %2373 = vmatpush1.msra.mxu0 0.0
    %2374 = vmatprep.subr.mxu0 0.0
    %2375 = vmatpush1.msra.mxu0 0.0
    %2376 = vmatprep.subr.mxu0 0.0
    %2377 = vmatpush1.msra.mxu0 0.0
    %2378 = vmatprep.subr.mxu0 0.0
    %2379 = vmatpush1.msra.mxu0 0.0
    %2380 = vmatprep.subr.mxu0 0.0
    %2381 = vmatpush1.msra.mxu0 0.0
    %2382 = vmatprep.subr.mxu0 0.0
    %2383 = vmatpush1.msra.mxu0 0.0
    %2384 = vmatprep.subr.mxu0 0.0
    %2385 = vmatpush1.msra.mxu0 0.0
    %2386 = vmatprep.subr.mxu0 0.0
    %2387 = vmatpush1.msra.mxu0 0.0
    %2388 = vmatprep.subr.mxu0 0.0
    %2389 = vmatpush1.msra.mxu0 0.0
    %2390 = vmatprep.subr.mxu0 0.0
    %2391 = vmatpush1.msra.mxu0 0.0
    %2392 = vmatprep.subr.mxu0 0.0
    %2393 = vmatpush1.msra.mxu0 0.0
    %2394 = vmatprep.subr.mxu0 0.0
    %2395 = vmatpush1.msra.mxu0 0.0
    %2396 = vmatprep.subr.mxu0 0.0
    %2397 = vmatpush1.msra.mxu0 0.0
    %2398 = vmatprep.subr.mxu0 0.0
    %2399 = vmatpush1.msra.mxu0 0.0
    %2400 = vmatprep.subr.mxu0 0.0
    %2401 = vmatpush1.msra.mxu0 0.0
    %2402 = vmatprep.subr.mxu0 0.0
    %2403 = vmatpush1.msra.mxu0 0.0
    %2404 = vmatprep.subr.mxu0 0.0
    %2405 = vmatpush1.msra.mxu0 0.0
    %2406 = vmatprep.subr.mxu0 0.0
    %2407 = vmatpush1.msra.mxu0 0.0
    %2408 = vmatprep.subr.mxu0 0.0
    %2409 = vmatpush1.msra.mxu0 0.0
    %2410 = vmatprep.subr.mxu0 0.0
    %2411 = vmatpush1.msra.mxu0 0.0
    %2412 = vmatprep.subr.mxu0 0.0
    %2413 = vmatpush1.msra.mxu0 0.0
    %2414 = vmatprep.subr.mxu0 0.0
    %2415 = vmatpush1.msra.mxu0 0.0
    %2416 = vmatprep.subr.mxu0 0.0
    %2417 = vmatpush1.msra.mxu0 0.0
    %2418 = vmatprep.subr.mxu0 0.0
    %2419 = vmatpush1.msra.mxu0 0.0
    %2420 = vmatprep.mubr.f32.mxu0 0.0
    %2421 = vmatmul.mubr.f32.gmra.mrb[0].mxu0 %v2351
    %v2422 = vpop.f32.mrb[0].mxu0
    %v2423 = vadd.f32 %v2348, %v2422
    %v2424 = vpop.f32.mrb[0].mxu0
    %2425 = vmatprep.mubr.f32.mxu0 0.0
    %2426 = vmatmul.mubr.f32.gmra.mrb[0].mxu0 %v2354
    %v2427 = vpop.f32.mrb[0].mxu0
    %v2428 = vadd.f32 %v2348, %v2427
    %v2429 = vpop.f32.mrb[0].mxu0
    %2430 = vdwg.mxu0
    %s2431 = scalar_lea.vmem [#allocation8], 32
    %v2432 = vld [vmem:[%s2431] sm:$0xff]
    %v2433 = vld [vmem:[%s2431 + $0x8] sm:$0xff]
    %v2434 = vld [vmem:[%s2431 + $0x10] sm:$0xff]
    %v2435 = vld [vmem:[%s2431 + $0x18] sm:$0xff]
    %s2436 = scalar_lea.vmem %s7, 1
    %v2437 = vld [vmem:[%s2436] sm:$0x1]
    %v2439 = vlaneseq
    %v2440 = vshrl.u32 %v2439, 7
    %v2441 = vsub.s32 0, %v2440
    %v2442 = vrot.slane %v2437, %v2441
    %2444 = vmatprep.subr.mxu0 0.0
    %2445 = vmatpush1.msra.mxu0 %v2432
    %2446 = vmatprep.subr.mxu0 0.0
    %2447 = vmatpush1.msra.mxu0 %v2433
    %2448 = vmatprep.subr.mxu0 0.0
    %2449 = vmatpush1.msra.mxu0 %v2434
    %2450 = vmatprep.subr.mxu0 0.0
    %2451 = vmatpush1.msra.mxu0 %v2435
    %2452 = vmatprep.subr.mxu0 0.0
    %2453 = vmatpush1.msra.mxu0 0.0
    %2454 = vmatprep.subr.mxu0 0.0
    %2455 = vmatpush1.msra.mxu0 0.0
    %2456 = vmatprep.subr.mxu0 0.0
    %2457 = vmatpush1.msra.mxu0 0.0
    %2458 = vmatprep.subr.mxu0 0.0
    %2459 = vmatpush1.msra.mxu0 0.0
    %2460 = vmatprep.subr.mxu0 0.0
    %2461 = vmatpush1.msra.mxu0 0.0
    %2462 = vmatprep.subr.mxu0 0.0
    %2463 = vmatpush1.msra.mxu0 0.0
    %2464 = vmatprep.subr.mxu0 0.0
    %2465 = vmatpush1.msra.mxu0 0.0
    %2466 = vmatprep.subr.mxu0 0.0
    %2467 = vmatpush1.msra.mxu0 0.0
    %2468 = vmatprep.subr.mxu0 0.0
    %2469 = vmatpush1.msra.mxu0 0.0
    %2470 = vmatprep.subr.mxu0 0.0
    %2471 = vmatpush1.msra.mxu0 0.0
    %2472 = vmatprep.subr.mxu0 0.0
    %2473 = vmatpush1.msra.mxu0 0.0
    %2474 = vmatprep.subr.mxu0 0.0
    %2475 = vmatpush1.msra.mxu0 0.0
    %2476 = vmatprep.subr.mxu0 0.0
    %2477 = vmatpush1.msra.mxu0 0.0
    %2478 = vmatprep.subr.mxu0 0.0
    %2479 = vmatpush1.msra.mxu0 0.0
    %2480 = vmatprep.subr.mxu0 0.0
    %2481 = vmatpush1.msra.mxu0 0.0
    %2482 = vmatprep.subr.mxu0 0.0
    %2483 = vmatpush1.msra.mxu0 0.0
    %2484 = vmatprep.subr.mxu0 0.0
    %2485 = vmatpush1.msra.mxu0 0.0
    %2486 = vmatprep.subr.mxu0 0.0
    %2487 = vmatpush1.msra.mxu0 0.0
    %2488 = vmatprep.subr.mxu0 0.0
    %2489 = vmatpush1.msra.mxu0 0.0
    %2490 = vmatprep.subr.mxu0 0.0
    %2491 = vmatpush1.msra.mxu0 0.0
    %2492 = vmatprep.subr.mxu0 0.0
    %2493 = vmatpush1.msra.mxu0 0.0
    %2494 = vmatprep.subr.mxu0 0.0
    %2495 = vmatpush1.msra.mxu0 0.0
    %2496 = vmatprep.subr.mxu0 0.0
    %2497 = vmatpush1.msra.mxu0 0.0
    %2498 = vmatprep.subr.mxu0 0.0
    %2499 = vmatpush1.msra.mxu0 0.0
    %2500 = vmatprep.subr.mxu0 0.0
    %2501 = vmatpush1.msra.mxu0 0.0
    %2502 = vmatprep.subr.mxu0 0.0
    %2503 = vmatpush1.msra.mxu0 0.0
    %2504 = vmatprep.subr.mxu0 0.0
    %2505 = vmatpush1.msra.mxu0 0.0
    %2506 = vmatprep.subr.mxu0 0.0
    %2507 = vmatpush1.msra.mxu0 0.0
    %2508 = vmatprep.mubr.f32.mxu0 0.0
    %2509 = vmatmul.mubr.f32.gmra.mrb[0].mxu0 %v2351
    %v2510 = vpop.f32.mrb[0].mxu0
    %v2511 = vadd.f32 %v2442, %v2510
    %v2512 = vpop.f32.mrb[0].mxu0
    %2513 = vmatprep.mubr.f32.mxu0 0.0
    %2514 = vmatmul.mubr.f32.gmra.mrb[0].mxu0 %v2354
    %v2515 = vpop.f32.mrb[0].mxu0
    %v2516 = vadd.f32 %v2442, %v2515
    %v2517 = vpop.f32.mrb[0].mxu0
    %2518 = vdwg.mxu0
    %s2519 = scalar_lea.vmem [#allocation8], 64
    %v2520 = vld [vmem:[%s2519] sm:$0xff]
    %v2521 = vld [vmem:[%s2519 + $0x8] sm:$0xff]
    %v2522 = vld [vmem:[%s2519 + $0x10] sm:$0xff]
    %v2523 = vld [vmem:[%s2519 + $0x18] sm:$0xff]
    %s2524 = scalar_lea.vmem %s7, 2
    %v2525 = vld [vmem:[%s2524] sm:$0x1]
    %v2527 = vlaneseq
    %v2528 = vshrl.u32 %v2527, 7
    %v2529 = vsub.s32 0, %v2528
    %v2530 = vrot.slane %v2525, %v2529
    %2532 = vmatprep.subr.mxu0 0.0
    %2533 = vmatpush1.msra.mxu0 %v2520
    %2534 = vmatprep.subr.mxu0 0.0
    %2535 = vmatpush1.msra.mxu0 %v2521
    %2536 = vmatprep.subr.mxu0 0.0
    %2537 = vmatpush1.msra.mxu0 %v2522
    %2538 = vmatprep.subr.mxu0 0.0
    %2539 = vmatpush1.msra.mxu0 %v2523
    %2540 = vmatprep.subr.mxu0 0.0
    %2541 = vmatpush1.msra.mxu0 0.0
    %2542 = vmatprep.subr.mxu0 0.0
    %2543 = vmatpush1.msra.mxu0 0.0
    %2544 = vmatprep.subr.mxu0 0.0
    %2545 = vmatpush1.msra.mxu0 0.0
    %2546 = vmatprep.subr.mxu0 0.0
    %2547 = vmatpush1.msra.mxu0 0.0
    %2548 = vmatprep.subr.mxu0 0.0
    %2549 = vmatpush1.msra.mxu0 0.0
    %2550 = vmatprep.subr.mxu0 0.0
    %2551 = vmatpush1.msra.mxu0 0.0
    %2552 = vmatprep.subr.mxu0 0.0
    %2553 = vmatpush1.msra.mxu0 0.0
    %2554 = vmatprep.subr.mxu0 0.0
    %2555 = vmatpush1.msra.mxu0 0.0
    %2556 = vmatprep.subr.mxu0 0.0
    %2557 = vmatpush1.msra.mxu0 0.0
    %2558 = vmatprep.subr.mxu0 0.0
    %2559 = vmatpush1.msra.mxu0 0.0
    %2560 = vmatprep.subr.mxu0 0.0
    %2561 = vmatpush1.msra.mxu0 0.0
    %2562 = vmatprep.subr.mxu0 0.0
    %2563 = vmatpush1.msra.mxu0 0.0
    %2564 = vmatprep.subr.mxu0 0.0
    %2565 = vmatpush1.msra.mxu0 0.0
    %2566 = vmatprep.subr.mxu0 0.0
    %2567 = vmatpush1.msra.mxu0 0.0
    %2568 = vmatprep.subr.mxu0 0.0
    %2569 = vmatpush1.msra.mxu0 0.0
    %2570 = vmatprep.subr.mxu0 0.0
    %2571 = vmatpush1.msra.mxu0 0.0
    %2572 = vmatprep.subr.mxu0 0.0
    %2573 = vmatpush1.msra.mxu0 0.0
    %2574 = vmatprep.subr.mxu0 0.0
    %2575 = vmatpush1.msra.mxu0 0.0
    %2576 = vmatprep.subr.mxu0 0.0
    %2577 = vmatpush1.msra.mxu0 0.0
    %2578 = vmatprep.subr.mxu0 0.0
    %2579 = vmatpush1.msra.mxu0 0.0
    %2580 = vmatprep.subr.mxu0 0.0
    %2581 = vmatpush1.msra.mxu0 0.0
    %2582 = vmatprep.subr.mxu0 0.0
    %2583 = vmatpush1.msra.mxu0 0.0
    %2584 = vmatprep.subr.mxu0 0.0
    %2585 = vmatpush1.msra.mxu0 0.0
    %2586 = vmatprep.subr.mxu0 0.0
    %2587 = vmatpush1.msra.mxu0 0.0
    %2588 = vmatprep.subr.mxu0 0.0
    %2589 = vmatpush1.msra.mxu0 0.0
    %2590 = vmatprep.subr.mxu0 0.0
    %2591 = vmatpush1.msra.mxu0 0.0
    %2592 = vmatprep.subr.mxu0 0.0
    %2593 = vmatpush1.msra.mxu0 0.0
    %2594 = vmatprep.subr.mxu0 0.0
    %2595 = vmatpush1.msra.mxu0 0.0
    %2596 = vmatprep.mubr.f32.mxu0 0.0
    %2597 = vmatmul.mubr.f32.gmra.mrb[0].mxu0 %v2351
    %v2598 = vpop.f32.mrb[0].mxu0
    %v2599 = vadd.f32 %v2530, %v2598
    %v2600 = vpop.f32.mrb[0].mxu0
    %2601 = vmatprep.mubr.f32.mxu0 0.0
    %2602 = vmatmul.mubr.f32.gmra.mrb[0].mxu0 %v2354
    %v2603 = vpop.f32.mrb[0].mxu0
    %v2604 = vadd.f32 %v2530, %v2603
    %v2605 = vpop.f32.mrb[0].mxu0
    %2606 = vdwg.mxu0
    %v2607 = vld [vmem:[#allocation9] sm:$0xff]
    %v2608 = vld [vmem:[#allocation9 + $0x8] sm:$0xff]
    %v2609 = vld [vmem:[#allocation9 + $0x10] sm:$0xff]
    %v2610 = vld [vmem:[#allocation9 + $0x18] sm:$0xff]
    %s2611 = scalar_lea.vmem [#allocation9], 32
    %v2612 = vld [vmem:[%s2611] sm:$0xff]
    %v2613 = vld [vmem:[%s2611 + $0x8] sm:$0xff]
    %v2614 = vld [vmem:[%s2611 + $0x10] sm:$0xff]
    %v2615 = vld [vmem:[%s2611 + $0x18] sm:$0xff]
    %s2616 = scalar_lea.vmem [#allocation9], 64
    %v2617 = vld [vmem:[%s2616] sm:$0xff]
    %v2618 = vld [vmem:[%s2616 + $0x8] sm:$0xff]
    %v2619 = vld [vmem:[%s2616 + $0x10] sm:$0xff]
    %v2620 = vld [vmem:[%s2616 + $0x18] sm:$0xff]
    %v2621 = vld [vmem:[%s8] sm:$0x1]
    %2622 = vmatprep.subr.mxu0 0.0
    %2623 = vmatpush1.msra.mxu0 %v2607
    %2624 = vmatprep.subr.mxu0 0.0
    %2625 = vmatpush1.msra.mxu0 %v2608
    %2626 = vmatprep.subr.mxu0 0.0
    %2627 = vmatpush1.msra.mxu0 %v2609
    %2628 = vmatprep.subr.mxu0 0.0
    %2629 = vmatpush1.msra.mxu0 %v2610
    %2630 = vmatprep.subr.mxu0 0.0
    %2631 = vmatpush1.msra.mxu0 0.0
    %2632 = vmatprep.subr.mxu0 0.0
    %2633 = vmatpush1.msra.mxu0 0.0
    %2634 = vmatprep.subr.mxu0 0.0
    %2635 = vmatpush1.msra.mxu0 0.0
    %2636 = vmatprep.subr.mxu0 0.0
    %2637 = vmatpush1.msra.mxu0 0.0
    %2638 = vmatprep.subr.mxu0 0.0
    %2639 = vmatpush1.msra.mxu0 0.0
    %2640 = vmatprep.subr.mxu0 0.0
    %2641 = vmatpush1.msra.mxu0 0.0
    %2642 = vmatprep.subr.mxu0 0.0
    %2643 = vmatpush1.msra.mxu0 0.0
    %2644 = vmatprep.subr.mxu0 0.0
    %2645 = vmatpush1.msra.mxu0 0.0
    %2646 = vmatprep.subr.mxu0 0.0
    %2647 = vmatpush1.msra.mxu0 0.0
    %2648 = vmatprep.subr.mxu0 0.0
    %2649 = vmatpush1.msra.mxu0 0.0
    %2650 = vmatprep.subr.mxu0 0.0
    %2651 = vmatpush1.msra.mxu0 0.0
    %2652 = vmatprep.subr.mxu0 0.0
    %2653 = vmatpush1.msra.mxu0 0.0
    %2654 = vmatprep.subr.mxu0 0.0
    %2655 = vmatpush1.msra.mxu0 0.0
    %2656 = vmatprep.subr.mxu0 0.0
    %2657 = vmatpush1.msra.mxu0 0.0
    %2658 = vmatprep.subr.mxu0 0.0
    %2659 = vmatpush1.msra.mxu0 0.0
    %2660 = vmatprep.subr.mxu0 0.0
    %2661 = vmatpush1.msra.mxu0 0.0
    %2662 = vmatprep.subr.mxu0 0.0
    %2663 = vmatpush1.msra.mxu0 0.0
    %2664 = vmatprep.subr.mxu0 0.0
    %2665 = vmatpush1.msra.mxu0 0.0
    %2666 = vmatprep.subr.mxu0 0.0
    %2667 = vmatpush1.msra.mxu0 0.0
    %2668 = vmatprep.subr.mxu0 0.0
    %2669 = vmatpush1.msra.mxu0 0.0
    %2670 = vmatprep.subr.mxu0 0.0
    %2671 = vmatpush1.msra.mxu0 0.0
    %2672 = vmatprep.subr.mxu0 0.0
    %2673 = vmatpush1.msra.mxu0 0.0
    %2674 = vmatprep.subr.mxu0 0.0
    %2675 = vmatpush1.msra.mxu0 0.0
    %2676 = vmatprep.subr.mxu0 0.0
    %2677 = vmatpush1.msra.mxu0 0.0
    %2678 = vmatprep.subr.mxu0 0.0
    %2679 = vmatpush1.msra.mxu0 0.0
    %2680 = vmatprep.subr.mxu0 0.0
    %2681 = vmatpush1.msra.mxu0 0.0
    %2682 = vmatprep.subr.mxu0 0.0
    %2683 = vmatpush1.msra.mxu0 0.0
    %2684 = vmatprep.subr.mxu0 0.0
    %2685 = vmatpush1.msra.mxu0 0.0
    %2686 = vmatprep.mubr.f32.mxu0 0.0
    %2687 = vmatmul.mubr.f32.gmra.mrb[0].mxu0 %v376
    %v2688 = vpop.f32.mrb[0].mxu0
    %v2689 = vadd.f32 0.0, %v2688
    %v2690 = vpop.f32.mrb[0].mxu0
    %2691 = vdwg.mxu0
    %2692 = vmatprep.subr.mxu0 0.0
    %2693 = vmatpush1.msra.mxu0 %v2612
    %2694 = vmatprep.subr.mxu0 0.0
    %2695 = vmatpush1.msra.mxu0 %v2613
    %2696 = vmatprep.subr.mxu0 0.0
    %2697 = vmatpush1.msra.mxu0 %v2614
    %2698 = vmatprep.subr.mxu0 0.0
    %2699 = vmatpush1.msra.mxu0 %v2615
    %2700 = vmatprep.subr.mxu0 0.0
    %2701 = vmatpush1.msra.mxu0 0.0
    %2702 = vmatprep.subr.mxu0 0.0
    %2703 = vmatpush1.msra.mxu0 0.0
    %2704 = vmatprep.subr.mxu0 0.0
    %2705 = vmatpush1.msra.mxu0 0.0
    %2706 = vmatprep.subr.mxu0 0.0
    %2707 = vmatpush1.msra.mxu0 0.0
    %2708 = vmatprep.subr.mxu0 0.0
    %2709 = vmatpush1.msra.mxu0 0.0
    %2710 = vmatprep.subr.mxu0 0.0
    %2711 = vmatpush1.msra.mxu0 0.0
    %2712 = vmatprep.subr.mxu0 0.0
    %2713 = vmatpush1.msra.mxu0 0.0
    %2714 = vmatprep.subr.mxu0 0.0
    %2715 = vmatpush1.msra.mxu0 0.0
    %2716 = vmatprep.subr.mxu0 0.0
    %2717 = vmatpush1.msra.mxu0 0.0
    %2718 = vmatprep.subr.mxu0 0.0
    %2719 = vmatpush1.msra.mxu0 0.0
    %2720 = vmatprep.subr.mxu0 0.0
    %2721 = vmatpush1.msra.mxu0 0.0
    %2722 = vmatprep.subr.mxu0 0.0
    %2723 = vmatpush1.msra.mxu0 0.0
    %2724 = vmatprep.subr.mxu0 0.0
    %2725 = vmatpush1.msra.mxu0 0.0
    %2726 = vmatprep.subr.mxu0 0.0
    %2727 = vmatpush1.msra.mxu0 0.0
    %2728 = vmatprep.subr.mxu0 0.0
    %2729 = vmatpush1.msra.mxu0 0.0
    %2730 = vmatprep.subr.mxu0 0.0
    %2731 = vmatpush1.msra.mxu0 0.0
    %2732 = vmatprep.subr.mxu0 0.0
    %2733 = vmatpush1.msra.mxu0 0.0
    %2734 = vmatprep.subr.mxu0 0.0
    %2735 = vmatpush1.msra.mxu0 0.0
    %2736 = vmatprep.subr.mxu0 0.0
    %2737 = vmatpush1.msra.mxu0 0.0
    %2738 = vmatprep.subr.mxu0 0.0
    %2739 = vmatpush1.msra.mxu0 0.0
    %2740 = vmatprep.subr.mxu0 0.0
    %2741 = vmatpush1.msra.mxu0 0.0
    %2742 = vmatprep.subr.mxu0 0.0
    %2743 = vmatpush1.msra.mxu0 0.0
    %2744 = vmatprep.subr.mxu0 0.0
    %2745 = vmatpush1.msra.mxu0 0.0
    %2746 = vmatprep.subr.mxu0 0.0
    %2747 = vmatpush1.msra.mxu0 0.0
    %2748 = vmatprep.subr.mxu0 0.0
    %2749 = vmatpush1.msra.mxu0 0.0
    %2750 = vmatprep.subr.mxu0 0.0
    %2751 = vmatpush1.msra.mxu0 0.0
    %2752 = vmatprep.subr.mxu0 0.0
    %2753 = vmatpush1.msra.mxu0 0.0
    %2754 = vmatprep.subr.mxu0 0.0
    %2755 = vmatpush1.msra.mxu0 0.0
    %2756 = vmatprep.mubr.f32.mxu0 0.0
    %2757 = vmatmul.mubr.f32.gmra.mrb[0].mxu0 %v376
    %v2758 = vpop.f32.mrb[0].mxu0
    %v2759 = vadd.f32 0.0, %v2758
    %v2760 = vpop.f32.mrb[0].mxu0
    %2761 = vdwg.mxu0
    %v2763 = vlaneseq
    %v2764 = vshrl.u32 %v2763, 7
    %v2765 = vsub.s32 0, %v2764
    %v2766 = vrot.slane %v2621, %v2765
    %2768 = vmatprep.subr.mxu0 0.0
    %2769 = vmatpush1.msra.mxu0 %v2617
    %2770 = vmatprep.subr.mxu0 0.0
    %2771 = vmatpush1.msra.mxu0 %v2618
    %2772 = vmatprep.subr.mxu0 0.0
    %2773 = vmatpush1.msra.mxu0 %v2619
    %2774 = vmatprep.subr.mxu0 0.0
    %2775 = vmatpush1.msra.mxu0 %v2620
    %2776 = vmatprep.subr.mxu0 0.0
    %2777 = vmatpush1.msra.mxu0 0.0
    %2778 = vmatprep.subr.mxu0 0.0
    %2779 = vmatpush1.msra.mxu0 0.0
    %2780 = vmatprep.subr.mxu0 0.0
    %2781 = vmatpush1.msra.mxu0 0.0
    %2782 = vmatprep.subr.mxu0 0.0
    %2783 = vmatpush1.msra.mxu0 0.0
    %2784 = vmatprep.subr.mxu0 0.0
    %2785 = vmatpush1.msra.mxu0 0.0
    %2786 = vmatprep.subr.mxu0 0.0
    %2787 = vmatpush1.msra.mxu0 0.0
    %2788 = vmatprep.subr.mxu0 0.0
    %2789 = vmatpush1.msra.mxu0 0.0
    %2790 = vmatprep.subr.mxu0 0.0
    %2791 = vmatpush1.msra.mxu0 0.0
    %2792 = vmatprep.subr.mxu0 0.0
    %2793 = vmatpush1.msra.mxu0 0.0
    %2794 = vmatprep.subr.mxu0 0.0
    %2795 = vmatpush1.msra.mxu0 0.0
    %2796 = vmatprep.subr.mxu0 0.0
    %2797 = vmatpush1.msra.mxu0 0.0
    %2798 = vmatprep.subr.mxu0 0.0
    %2799 = vmatpush1.msra.mxu0 0.0
    %2800 = vmatprep.subr.mxu0 0.0
    %2801 = vmatpush1.msra.mxu0 0.0
    %2802 = vmatprep.subr.mxu0 0.0
    %2803 = vmatpush1.msra.mxu0 0.0
    %2804 = vmatprep.subr.mxu0 0.0
    %2805 = vmatpush1.msra.mxu0 0.0
    %2806 = vmatprep.subr.mxu0 0.0
    %2807 = vmatpush1.msra.mxu0 0.0
    %2808 = vmatprep.subr.mxu0 0.0
    %2809 = vmatpush1.msra.mxu0 0.0
    %2810 = vmatprep.subr.mxu0 0.0
    %2811 = vmatpush1.msra.mxu0 0.0
    %2812 = vmatprep.subr.mxu0 0.0
    %2813 = vmatpush1.msra.mxu0 0.0
    %2814 = vmatprep.subr.mxu0 0.0
    %2815 = vmatpush1.msra.mxu0 0.0
    %2816 = vmatprep.subr.mxu0 0.0
    %2817 = vmatpush1.msra.mxu0 0.0
    %2818 = vmatprep.subr.mxu0 0.0
    %2819 = vmatpush1.msra.mxu0 0.0
    %2820 = vmatprep.subr.mxu0 0.0
    %2821 = vmatpush1.msra.mxu0 0.0
    %2822 = vmatprep.subr.mxu0 0.0
    %2823 = vmatpush1.msra.mxu0 0.0
    %2824 = vmatprep.subr.mxu0 0.0
    %2825 = vmatpush1.msra.mxu0 0.0
    %2826 = vmatprep.subr.mxu0 0.0
    %2827 = vmatpush1.msra.mxu0 0.0
    %2828 = vmatprep.subr.mxu0 0.0
    %2829 = vmatpush1.msra.mxu0 0.0
    %2830 = vmatprep.subr.mxu0 0.0
    %2831 = vmatpush1.msra.mxu0 0.0
    %2832 = vmatprep.mubr.f32.mxu0 0.0
    %2833 = vmatmul.mubr.f32.gmra.mrb[0].mxu0 %v376
    %v2834 = vpop.f32.mrb[0].mxu0
    %v2835 = vadd.f32 %v2766, %v2834
    %v2836 = vpop.f32.mrb[0].mxu0
    %2837 = vdwg.mxu0
    %v2838 = vadd.f32 %v2423, %v2689
    %v2839 = vxor.u32 %v2838, 2147483648
    %v2840 = vmul.f32 %v2839, 1.442695
    %v2841 = vpow.pop %v2840
    %v2842 = vadd.f32 %v2841, 1.0
    %v2843 = vrcp.pop %v2842
    %v2844 = vmul.f32 1.0, %v2843
    %v2845 = vadd.f32 %v2511, %v2759
    %v2846 = vxor.u32 %v2845, 2147483648
    %v2847 = vmul.f32 %v2846, 1.442695
    %v2848 = vpow.pop %v2847
    %v2849 = vadd.f32 %v2848, 1.0
    %v2850 = vrcp.pop %v2849
    %v2851 = vmul.f32 1.0, %v2850
    %v2852 = vmul.f32 %v2844, %v2835
    %v2853 = vadd.f32 %v2599, %v2852
    %v2854 = vtanh.pop %v2853
    %v2855 = vsub.f32 1.0, %v2851
    %v2856 = vmul.f32 %v2855, %v2854
    %v2857 = vmul.f32 %v2851, 0.0
    %v2858 = vadd.f32 %v2856, %v2857
    %v2859 = vadd.f32 %v2858, 0.0
    %v2861 = vsel %vm374, %v2858, 0
    %2863 = vmatprep.subr.mxu0 0.0
    %2864 = vmatpush1.msra.mxu0 %v2607
    %2865 = vmatprep.subr.mxu0 0.0
    %2866 = vmatpush1.msra.mxu0 %v2608
    %2867 = vmatprep.subr.mxu0 0.0
    %2868 = vmatpush1.msra.mxu0 %v2609
    %2869 = vmatprep.subr.mxu0 0.0
    %2870 = vmatpush1.msra.mxu0 %v2610
    %2871 = vmatprep.subr.mxu0 0.0
    %2872 = vmatpush1.msra.mxu0 0.0
    %2873 = vmatprep.subr.mxu0 0.0
    %2874 = vmatpush1.msra.mxu0 0.0
    %2875 = vmatprep.subr.mxu0 0.0
    %2876 = vmatpush1.msra.mxu0 0.0
    %2877 = vmatprep.subr.mxu0 0.0
    %2878 = vmatpush1.msra.mxu0 0.0
    %2879 = vmatprep.subr.mxu0 0.0
    %2880 = vmatpush1.msra.mxu0 0.0
    %2881 = vmatprep.subr.mxu0 0.0
    %2882 = vmatpush1.msra.mxu0 0.0
    %2883 = vmatprep.subr.mxu0 0.0
    %2884 = vmatpush1.msra.mxu0 0.0
    %2885 = vmatprep.subr.mxu0 0.0
    %2886 = vmatpush1.msra.mxu0 0.0
    %2887 = vmatprep.subr.mxu0 0.0
    %2888 = vmatpush1.msra.mxu0 0.0
    %2889 = vmatprep.subr.mxu0 0.0
    %2890 = vmatpush1.msra.mxu0 0.0
    %2891 = vmatprep.subr.mxu0 0.0
    %2892 = vmatpush1.msra.mxu0 0.0
    %2893 = vmatprep.subr.mxu0 0.0
    %2894 = vmatpush1.msra.mxu0 0.0
    %2895 = vmatprep.subr.mxu0 0.0
    %2896 = vmatpush1.msra.mxu0 0.0
    %2897 = vmatprep.subr.mxu0 0.0
    %2898 = vmatpush1.msra.mxu0 0.0
    %2899 = vmatprep.subr.mxu0 0.0
    %2900 = vmatpush1.msra.mxu0 0.0
    %2901 = vmatprep.subr.mxu0 0.0
    %2902 = vmatpush1.msra.mxu0 0.0
    %2903 = vmatprep.subr.mxu0 0.0
    %2904 = vmatpush1.msra.mxu0 0.0
    %2905 = vmatprep.subr.mxu0 0.0
    %2906 = vmatpush1.msra.mxu0 0.0
    %2907 = vmatprep.subr.mxu0 0.0
    %2908 = vmatpush1.msra.mxu0 0.0
    %2909 = vmatprep.subr.mxu0 0.0
    %2910 = vmatpush1.msra.mxu0 0.0
    %2911 = vmatprep.subr.mxu0 0.0
    %2912 = vmatpush1.msra.mxu0 0.0
    %2913 = vmatprep.subr.mxu0 0.0
    %2914 = vmatpush1.msra.mxu0 0.0
    %2915 = vmatprep.subr.mxu0 0.0
    %2916 = vmatpush1.msra.mxu0 0.0
    %2917 = vmatprep.subr.mxu0 0.0
    %2918 = vmatpush1.msra.mxu0 0.0
    %2919 = vmatprep.subr.mxu0 0.0
    %2920 = vmatpush1.msra.mxu0 0.0
    %2921 = vmatprep.subr.mxu0 0.0
    %2922 = vmatpush1.msra.mxu0 0.0
    %2923 = vmatprep.subr.mxu0 0.0
    %2924 = vmatpush1.msra.mxu0 0.0
    %2925 = vmatprep.subr.mxu0 0.0
    %2926 = vmatpush1.msra.mxu0 0.0
    %2927 = vmatprep.mubr.f32.mxu0 0.0
    %2928 = vmatmul.mubr.f32.gmra.mrb[0].mxu0 %v2861
    %v2929 = vpop.f32.mrb[0].mxu0
    %v2930 = vadd.f32 0.0, %v2929
    %v2931 = vpop.f32.mrb[0].mxu0
    %2932 = vdwg.mxu0
    %2933 = vmatprep.subr.mxu0 0.0
    %2934 = vmatpush1.msra.mxu0 %v2612
    %2935 = vmatprep.subr.mxu0 0.0
    %2936 = vmatpush1.msra.mxu0 %v2613
    %2937 = vmatprep.subr.mxu0 0.0
    %2938 = vmatpush1.msra.mxu0 %v2614
    %2939 = vmatprep.subr.mxu0 0.0
    %2940 = vmatpush1.msra.mxu0 %v2615
    %2941 = vmatprep.subr.mxu0 0.0
    %2942 = vmatpush1.msra.mxu0 0.0
    %2943 = vmatprep.subr.mxu0 0.0
    %2944 = vmatpush1.msra.mxu0 0.0
    %2945 = vmatprep.subr.mxu0 0.0
    %2946 = vmatpush1.msra.mxu0 0.0
    %2947 = vmatprep.subr.mxu0 0.0
    %2948 = vmatpush1.msra.mxu0 0.0
    %2949 = vmatprep.subr.mxu0 0.0
    %2950 = vmatpush1.msra.mxu0 0.0
    %2951 = vmatprep.subr.mxu0 0.0
    %2952 = vmatpush1.msra.mxu0 0.0
    %2953 = vmatprep.subr.mxu0 0.0
    %2954 = vmatpush1.msra.mxu0 0.0
    %2955 = vmatprep.subr.mxu0 0.0
    %2956 = vmatpush1.msra.mxu0 0.0
    %2957 = vmatprep.subr.mxu0 0.0
    %2958 = vmatpush1.msra.mxu0 0.0
    %2959 = vmatprep.subr.mxu0 0.0
    %2960 = vmatpush1.msra.mxu0 0.0
    %2961 = vmatprep.subr.mxu0 0.0
    %2962 = vmatpush1.msra.mxu0 0.0
    %2963 = vmatprep.subr.mxu0 0.0
    %2964 = vmatpush1.msra.mxu0 0.0
    %2965 = vmatprep.subr.mxu0 0.0
    %2966 = vmatpush1.msra.mxu0 0.0
    %2967 = vmatprep.subr.mxu0 0.0
    %2968 = vmatpush1.msra.mxu0 0.0
    %2969 = vmatprep.subr.mxu0 0.0
    %2970 = vmatpush1.msra.mxu0 0.0
    %2971 = vmatprep.subr.mxu0 0.0
    %2972 = vmatpush1.msra.mxu0 0.0
    %2973 = vmatprep.subr.mxu0 0.0
    %2974 = vmatpush1.msra.mxu0 0.0
    %2975 = vmatprep.subr.mxu0 0.0
    %2976 = vmatpush1.msra.mxu0 0.0
    %2977 = vmatprep.subr.mxu0 0.0
    %2978 = vmatpush1.msra.mxu0 0.0
    %2979 = vmatprep.subr.mxu0 0.0
    %2980 = vmatpush1.msra.mxu0 0.0
    %2981 = vmatprep.subr.mxu0 0.0
    %2982 = vmatpush1.msra.mxu0 0.0
    %2983 = vmatprep.subr.mxu0 0.0
    %2984 = vmatpush1.msra.mxu0 0.0
    %2985 = vmatprep.subr.mxu0 0.0
    %2986 = vmatpush1.msra.mxu0 0.0
    %2987 = vmatprep.subr.mxu0 0.0
    %2988 = vmatpush1.msra.mxu0 0.0
    %2989 = vmatprep.subr.mxu0 0.0
    %2990 = vmatpush1.msra.mxu0 0.0
    %2991 = vmatprep.subr.mxu0 0.0
    %2992 = vmatpush1.msra.mxu0 0.0
    %2993 = vmatprep.subr.mxu0 0.0
    %2994 = vmatpush1.msra.mxu0 0.0
    %2995 = vmatprep.subr.mxu0 0.0
    %2996 = vmatpush1.msra.mxu0 0.0
    %2997 = vmatprep.mubr.f32.mxu0 0.0
    %2998 = vmatmul.mubr.f32.gmra.mrb[0].mxu0 %v2861
    %v2999 = vpop.f32.mrb[0].mxu0
    %v3000 = vadd.f32 0.0, %v2999
    %v3001 = vpop.f32.mrb[0].mxu0
    %3002 = vdwg.mxu0
    %3003 = vmatprep.subr.mxu0 0.0
    %3004 = vmatpush1.msra.mxu0 %v2617
    %3005 = vmatprep.subr.mxu0 0.0
    %3006 = vmatpush1.msra.mxu0 %v2618
    %3007 = vmatprep.subr.mxu0 0.0
    %3008 = vmatpush1.msra.mxu0 %v2619
    %3009 = vmatprep.subr.mxu0 0.0
    %3010 = vmatpush1.msra.mxu0 %v2620
    %3011 = vmatprep.subr.mxu0 0.0
    %3012 = vmatpush1.msra.mxu0 0.0
    %3013 = vmatprep.subr.mxu0 0.0
    %3014 = vmatpush1.msra.mxu0 0.0
    %3015 = vmatprep.subr.mxu0 0.0
    %3016 = vmatpush1.msra.mxu0 0.0
    %3017 = vmatprep.subr.mxu0 0.0
    %3018 = vmatpush1.msra.mxu0 0.0
    %3019 = vmatprep.subr.mxu0 0.0
    %3020 = vmatpush1.msra.mxu0 0.0
    %3021 = vmatprep.subr.mxu0 0.0
    %3022 = vmatpush1.msra.mxu0 0.0
    %3023 = vmatprep.subr.mxu0 0.0
    %3024 = vmatpush1.msra.mxu0 0.0
    %3025 = vmatprep.subr.mxu0 0.0
    %3026 = vmatpush1.msra.mxu0 0.0
    %3027 = vmatprep.subr.mxu0 0.0
    %3028 = vmatpush1.msra.mxu0 0.0
    %3029 = vmatprep.subr.mxu0 0.0
    %3030 = vmatpush1.msra.mxu0 0.0
    %3031 = vmatprep.subr.mxu0 0.0
    %3032 = vmatpush1.msra.mxu0 0.0
    %3033 = vmatprep.subr.mxu0 0.0
    %3034 = vmatpush1.msra.mxu0 0.0
    %3035 = vmatprep.subr.mxu0 0.0
    %3036 = vmatpush1.msra.mxu0 0.0
    %3037 = vmatprep.subr.mxu0 0.0
    %3038 = vmatpush1.msra.mxu0 0.0
    %3039 = vmatprep.subr.mxu0 0.0
    %3040 = vmatpush1.msra.mxu0 0.0
    %3041 = vmatprep.subr.mxu0 0.0
    %3042 = vmatpush1.msra.mxu0 0.0
    %3043 = vmatprep.subr.mxu0 0.0
    %3044 = vmatpush1.msra.mxu0 0.0
    %3045 = vmatprep.subr.mxu0 0.0
    %3046 = vmatpush1.msra.mxu0 0.0
    %3047 = vmatprep.subr.mxu0 0.0
    %3048 = vmatpush1.msra.mxu0 0.0
    %3049 = vmatprep.subr.mxu0 0.0
    %3050 = vmatpush1.msra.mxu0 0.0
    %3051 = vmatprep.subr.mxu0 0.0
    %3052 = vmatpush1.msra.mxu0 0.0
    %3053 = vmatprep.subr.mxu0 0.0
    %3054 = vmatpush1.msra.mxu0 0.0
    %3055 = vmatprep.subr.mxu0 0.0
    %3056 = vmatpush1.msra.mxu0 0.0
    %3057 = vmatprep.subr.mxu0 0.0
    %3058 = vmatpush1.msra.mxu0 0.0
    %3059 = vmatprep.subr.mxu0 0.0
    %3060 = vmatpush1.msra.mxu0 0.0
    %3061 = vmatprep.subr.mxu0 0.0
    %3062 = vmatpush1.msra.mxu0 0.0
    %3063 = vmatprep.subr.mxu0 0.0
    %3064 = vmatpush1.msra.mxu0 0.0
    %3065 = vmatprep.subr.mxu0 0.0
    %3066 = vmatpush1.msra.mxu0 0.0
    %3067 = vmatprep.mubr.f32.mxu0 0.0
    %3068 = vmatmul.mubr.f32.gmra.mrb[0].mxu0 %v2861
    %v3069 = vpop.f32.mrb[0].mxu0
    %v3070 = vadd.f32 %v2766, %v3069
    %v3071 = vpop.f32.mrb[0].mxu0
    %3072 = vdwg.mxu0
    %v3074 = vrot.slane %v2930, 6
    %v3076 = vadd.f32 %v2423, %v3074
    %v3077 = vxor.u32 %v3076, 2147483648
    %v3078 = vmul.f32 %v3077, 1.442695
    %v3079 = vpow.pop %v3078
    %v3080 = vadd.f32 %v3079, 1.0
    %v3081 = vrcp.pop %v3080
    %v3082 = vmul.f32 1.0, %v3081
    %v3084 = vrot.slane %v3000, 6
    %v3086 = vadd.f32 %v2511, %v3084
    %v3087 = vxor.u32 %v3086, 2147483648
    %v3088 = vmul.f32 %v3087, 1.442695
    %v3089 = vpow.pop %v3088
    %v3090 = vadd.f32 %v3089, 1.0
    %v3091 = vrcp.pop %v3090
    %v3092 = vmul.f32 1.0, %v3091
    %v3094 = vrot.slane %v3070, 6
    %v3096 = vmul.f32 %v3082, %v3094
    %v3097 = vadd.f32 %v2599, %v3096
    %v3098 = vtanh.pop %v3097
    %v3099 = vsub.f32 1.0, %v3092
    %v3100 = vmul.f32 %v3099, %v3098
    %v3101 = vrot.slane %v2858, 6
    %v3103 = vmul.f32 %v3092, %v3101
    %v3104 = vadd.f32 %v3100, %v3103
    %v3106 = vrot.slane %v3104, 2
    %v3108 = vadd.f32 %v2859, %v3106
    %v3109 = vsel %vm374, %v3106, 0
    %3111 = vmatprep.subr.mxu0 0.0
    %3112 = vmatpush1.msra.mxu0 %v2607
    %3113 = vmatprep.subr.mxu0 0.0
    %3114 = vmatpush1.msra.mxu0 %v2608
    %3115 = vmatprep.subr.mxu0 0.0
    %3116 = vmatpush1.msra.mxu0 %v2609
    %3117 = vmatprep.subr.mxu0 0.0
    %3118 = vmatpush1.msra.mxu0 %v2610
    %3119 = vmatprep.subr.mxu0 0.0
    %3120 = vmatpush1.msra.mxu0 0.0
    %3121 = vmatprep.subr.mxu0 0.0
    %3122 = vmatpush1.msra.mxu0 0.0
    %3123 = vmatprep.subr.mxu0 0.0
    %3124 = vmatpush1.msra.mxu0 0.0
    %3125 = vmatprep.subr.mxu0 0.0
    %3126 = vmatpush1.msra.mxu0 0.0
    %3127 = vmatprep.subr.mxu0 0.0
    %3128 = vmatpush1.msra.mxu0 0.0
    %3129 = vmatprep.subr.mxu0 0.0
    %3130 = vmatpush1.msra.mxu0 0.0
    %3131 = vmatprep.subr.mxu0 0.0
    %3132 = vmatpush1.msra.mxu0 0.0
    %3133 = vmatprep.subr.mxu0 0.0
    %3134 = vmatpush1.msra.mxu0 0.0
    %3135 = vmatprep.subr.mxu0 0.0
    %3136 = vmatpush1.msra.mxu0 0.0
    %3137 = vmatprep.subr.mxu0 0.0
    %3138 = vmatpush1.msra.mxu0 0.0
    %3139 = vmatprep.subr.mxu0 0.0
    %3140 = vmatpush1.msra.mxu0 0.0
    %3141 = vmatprep.subr.mxu0 0.0
    %3142 = vmatpush1.msra.mxu0 0.0
    %3143 = vmatprep.subr.mxu0 0.0
    %3144 = vmatpush1.msra.mxu0 0.0
    %3145 = vmatprep.subr.mxu0 0.0
    %3146 = vmatpush1.msra.mxu0 0.0
    %3147 = vmatprep.subr.mxu0 0.0
    %3148 = vmatpush1.msra.mxu0 0.0
    %3149 = vmatprep.subr.mxu0 0.0
    %3150 = vmatpush1.msra.mxu0 0.0
    %3151 = vmatprep.subr.mxu0 0.0
    %3152 = vmatpush1.msra.mxu0 0.0
    %3153 = vmatprep.subr.mxu0 0.0
    %3154 = vmatpush1.msra.mxu0 0.0
    %3155 = vmatprep.subr.mxu0 0.0
    %3156 = vmatpush1.msra.mxu0 0.0
    %3157 = vmatprep.subr.mxu0 0.0
    %3158 = vmatpush1.msra.mxu0 0.0
    %3159 = vmatprep.subr.mxu0 0.0
    %3160 = vmatpush1.msra.mxu0 0.0
    %3161 = vmatprep.subr.mxu0 0.0
    %3162 = vmatpush1.msra.mxu0 0.0
    %3163 = vmatprep.subr.mxu0 0.0
    %3164 = vmatpush1.msra.mxu0 0.0
    %3165 = vmatprep.subr.mxu0 0.0
    %3166 = vmatpush1.msra.mxu0 0.0
    %3167 = vmatprep.subr.mxu0 0.0
    %3168 = vmatpush1.msra.mxu0 0.0
    %3169 = vmatprep.subr.mxu0 0.0
    %3170 = vmatpush1.msra.mxu0 0.0
    %3171 = vmatprep.subr.mxu0 0.0
    %3172 = vmatpush1.msra.mxu0 0.0
    %3173 = vmatprep.subr.mxu0 0.0
    %3174 = vmatpush1.msra.mxu0 0.0
    %3175 = vmatprep.mubr.f32.mxu0 0.0
    %3176 = vmatmul.mubr.f32.gmra.mrb[0].mxu0 %v3109
    %v3177 = vpop.f32.mrb[0].mxu0
    %v3178 = vadd.f32 0.0, %v3177
    %v3179 = vpop.f32.mrb[0].mxu0
    %3180 = vdwg.mxu0
    %3181 = vmatprep.subr.mxu0 0.0
    %3182 = vmatpush1.msra.mxu0 %v2612
    %3183 = vmatprep.subr.mxu0 0.0
    %3184 = vmatpush1.msra.mxu0 %v2613
    %3185 = vmatprep.subr.mxu0 0.0
    %3186 = vmatpush1.msra.mxu0 %v2614
    %3187 = vmatprep.subr.mxu0 0.0
    %3188 = vmatpush1.msra.mxu0 %v2615
    %3189 = vmatprep.subr.mxu0 0.0
    %3190 = vmatpush1.msra.mxu0 0.0
    %3191 = vmatprep.subr.mxu0 0.0
    %3192 = vmatpush1.msra.mxu0 0.0
    %3193 = vmatprep.subr.mxu0 0.0
    %3194 = vmatpush1.msra.mxu0 0.0
    %3195 = vmatprep.subr.mxu0 0.0
    %3196 = vmatpush1.msra.mxu0 0.0
    %3197 = vmatprep.subr.mxu0 0.0
    %3198 = vmatpush1.msra.mxu0 0.0
    %3199 = vmatprep.subr.mxu0 0.0
    %3200 = vmatpush1.msra.mxu0 0.0
    %3201 = vmatprep.subr.mxu0 0.0
    %3202 = vmatpush1.msra.mxu0 0.0
    %3203 = vmatprep.subr.mxu0 0.0
    %3204 = vmatpush1.msra.mxu0 0.0
    %3205 = vmatprep.subr.mxu0 0.0
    %3206 = vmatpush1.msra.mxu0 0.0
    %3207 = vmatprep.subr.mxu0 0.0
    %3208 = vmatpush1.msra.mxu0 0.0
    %3209 = vmatprep.subr.mxu0 0.0
    %3210 = vmatpush1.msra.mxu0 0.0
    %3211 = vmatprep.subr.mxu0 0.0
    %3212 = vmatpush1.msra.mxu0 0.0
    %3213 = vmatprep.subr.mxu0 0.0
    %3214 = vmatpush1.msra.mxu0 0.0
    %3215 = vmatprep.subr.mxu0 0.0
    %3216 = vmatpush1.msra.mxu0 0.0
    %3217 = vmatprep.subr.mxu0 0.0
    %3218 = vmatpush1.msra.mxu0 0.0
    %3219 = vmatprep.subr.mxu0 0.0
    %3220 = vmatpush1.msra.mxu0 0.0
    %3221 = vmatprep.subr.mxu0 0.0
    %3222 = vmatpush1.msra.mxu0 0.0
    %3223 = vmatprep.subr.mxu0 0.0
    %3224 = vmatpush1.msra.mxu0 0.0
    %3225 = vmatprep.subr.mxu0 0.0
    %3226 = vmatpush1.msra.mxu0 0.0
    %3227 = vmatprep.subr.mxu0 0.0
    %3228 = vmatpush1.msra.mxu0 0.0
    %3229 = vmatprep.subr.mxu0 0.0
    %3230 = vmatpush1.msra.mxu0 0.0
    %3231 = vmatprep.subr.mxu0 0.0
    %3232 = vmatpush1.msra.mxu0 0.0
    %3233 = vmatprep.subr.mxu0 0.0
    %3234 = vmatpush1.msra.mxu0 0.0
    %3235 = vmatprep.subr.mxu0 0.0
    %3236 = vmatpush1.msra.mxu0 0.0
    %3237 = vmatprep.subr.mxu0 0.0
    %3238 = vmatpush1.msra.mxu0 0.0
    %3239 = vmatprep.subr.mxu0 0.0
    %3240 = vmatpush1.msra.mxu0 0.0
    %3241 = vmatprep.subr.mxu0 0.0
    %3242 = vmatpush1.msra.mxu0 0.0
    %3243 = vmatprep.subr.mxu0 0.0
    %3244 = vmatpush1.msra.mxu0 0.0
    %3245 = vmatprep.mubr.f32.mxu0 0.0
    %3246 = vmatmul.mubr.f32.gmra.mrb[0].mxu0 %v3109
    %v3247 = vpop.f32.mrb[0].mxu0
    %v3248 = vadd.f32 0.0, %v3247
    %v3249 = vpop.f32.mrb[0].mxu0
    %3250 = vdwg.mxu0
    %3251 = vmatprep.subr.mxu0 0.0
    %3252 = vmatpush1.msra.mxu0 %v2617
    %3253 = vmatprep.subr.mxu0 0.0
    %3254 = vmatpush1.msra.mxu0 %v2618
    %3255 = vmatprep.subr.mxu0 0.0
    %3256 = vmatpush1.msra.mxu0 %v2619
    %3257 = vmatprep.subr.mxu0 0.0
    %3258 = vmatpush1.msra.mxu0 %v2620
    %3259 = vmatprep.subr.mxu0 0.0
    %3260 = vmatpush1.msra.mxu0 0.0
    %3261 = vmatprep.subr.mxu0 0.0
    %3262 = vmatpush1.msra.mxu0 0.0
    %3263 = vmatprep.subr.mxu0 0.0
    %3264 = vmatpush1.msra.mxu0 0.0
    %3265 = vmatprep.subr.mxu0 0.0
    %3266 = vmatpush1.msra.mxu0 0.0
    %3267 = vmatprep.subr.mxu0 0.0
    %3268 = vmatpush1.msra.mxu0 0.0
    %3269 = vmatprep.subr.mxu0 0.0
    %3270 = vmatpush1.msra.mxu0 0.0
    %3271 = vmatprep.subr.mxu0 0.0
    %3272 = vmatpush1.msra.mxu0 0.0
    %3273 = vmatprep.subr.mxu0 0.0
    %3274 = vmatpush1.msra.mxu0 0.0
    %3275 = vmatprep.subr.mxu0 0.0
    %3276 = vmatpush1.msra.mxu0 0.0
    %3277 = vmatprep.subr.mxu0 0.0
    %3278 = vmatpush1.msra.mxu0 0.0
    %3279 = vmatprep.subr.mxu0 0.0
    %3280 = vmatpush1.msra.mxu0 0.0
    %3281 = vmatprep.subr.mxu0 0.0
    %3282 = vmatpush1.msra.mxu0 0.0
    %3283 = vmatprep.subr.mxu0 0.0
    %3284 = vmatpush1.msra.mxu0 0.0
    %3285 = vmatprep.subr.mxu0 0.0
    %3286 = vmatpush1.msra.mxu0 0.0
    %3287 = vmatprep.subr.mxu0 0.0
    %3288 = vmatpush1.msra.mxu0 0.0
    %3289 = vmatprep.subr.mxu0 0.0
    %3290 = vmatpush1.msra.mxu0 0.0
    %3291 = vmatprep.subr.mxu0 0.0
    %3292 = vmatpush1.msra.mxu0 0.0
    %3293 = vmatprep.subr.mxu0 0.0
    %3294 = vmatpush1.msra.mxu0 0.0
    %3295 = vmatprep.subr.mxu0 0.0
    %3296 = vmatpush1.msra.mxu0 0.0
    %3297 = vmatprep.subr.mxu0 0.0
    %3298 = vmatpush1.msra.mxu0 0.0
    %3299 = vmatprep.subr.mxu0 0.0
    %3300 = vmatpush1.msra.mxu0 0.0
    %3301 = vmatprep.subr.mxu0 0.0
    %3302 = vmatpush1.msra.mxu0 0.0
    %3303 = vmatprep.subr.mxu0 0.0
    %3304 = vmatpush1.msra.mxu0 0.0
    %3305 = vmatprep.subr.mxu0 0.0
    %3306 = vmatpush1.msra.mxu0 0.0
    %3307 = vmatprep.subr.mxu0 0.0
    %3308 = vmatpush1.msra.mxu0 0.0
    %3309 = vmatprep.subr.mxu0 0.0
    %3310 = vmatpush1.msra.mxu0 0.0
    %3311 = vmatprep.subr.mxu0 0.0
    %3312 = vmatpush1.msra.mxu0 0.0
    %3313 = vmatprep.subr.mxu0 0.0
    %3314 = vmatpush1.msra.mxu0 0.0
    %3315 = vmatprep.mubr.f32.mxu0 0.0
    %3316 = vmatmul.mubr.f32.gmra.mrb[0].mxu0 %v3109
    %v3317 = vpop.f32.mrb[0].mxu0
    %v3318 = vadd.f32 %v2766, %v3317
    %v3319 = vpop.f32.mrb[0].mxu0
    %3320 = vdwg.mxu0
    %v3322 = vrot.slane %v3178, 4
    %v3324 = vadd.f32 %v2423, %v3322
    %v3325 = vxor.u32 %v3324, 2147483648
    %v3326 = vmul.f32 %v3325, 1.442695
    %v3327 = vpow.pop %v3326
    %v3328 = vadd.f32 %v3327, 1.0
    %v3329 = vrcp.pop %v3328
    %v3330 = vmul.f32 1.0, %v3329
    %v3332 = vrot.slane %v3248, 4
    %v3334 = vadd.f32 %v2511, %v3332
    %v3335 = vxor.u32 %v3334, 2147483648
    %v3336 = vmul.f32 %v3335, 1.442695
    %v3337 = vpow.pop %v3336
    %v3338 = vadd.f32 %v3337, 1.0
    %v3339 = vrcp.pop %v3338
    %v3340 = vmul.f32 1.0, %v3339
    %v3342 = vrot.slane %v3318, 4
    %v3344 = vmul.f32 %v3330, %v3342
    %v3345 = vadd.f32 %v2599, %v3344
    %v3346 = vtanh.pop %v3345
    %v3347 = vsub.f32 1.0, %v3340
    %v3348 = vmul.f32 %v3347, %v3346
    %v3349 = vrot.slane %v3104, 6
    %v3351 = vmul.f32 %v3340, %v3349
    %v3352 = vadd.f32 %v3348, %v3351
    %v3354 = vrot.slane %v3352, 4
    %v3356 = vadd.f32 %v3108, %v3354
    %v3357 = vsel %vm374, %v3354, 0
    %3359 = vmatprep.subr.mxu0 0.0
    %3360 = vmatpush1.msra.mxu0 %v2607
    %3361 = vmatprep.subr.mxu0 0.0
    %3362 = vmatpush1.msra.mxu0 %v2608
    %3363 = vmatprep.subr.mxu0 0.0
    %3364 = vmatpush1.msra.mxu0 %v2609
    %3365 = vmatprep.subr.mxu0 0.0
    %3366 = vmatpush1.msra.mxu0 %v2610
    %3367 = vmatprep.subr.mxu0 0.0
    %3368 = vmatpush1.msra.mxu0 0.0
    %3369 = vmatprep.subr.mxu0 0.0
    %3370 = vmatpush1.msra.mxu0 0.0
    %3371 = vmatprep.subr.mxu0 0.0
    %3372 = vmatpush1.msra.mxu0 0.0
    %3373 = vmatprep.subr.mxu0 0.0
    %3374 = vmatpush1.msra.mxu0 0.0
    %3375 = vmatprep.subr.mxu0 0.0
    %3376 = vmatpush1.msra.mxu0 0.0
    %3377 = vmatprep.subr.mxu0 0.0
    %3378 = vmatpush1.msra.mxu0 0.0
    %3379 = vmatprep.subr.mxu0 0.0
    %3380 = vmatpush1.msra.mxu0 0.0
    %3381 = vmatprep.subr.mxu0 0.0
    %3382 = vmatpush1.msra.mxu0 0.0
    %3383 = vmatprep.subr.mxu0 0.0
    %3384 = vmatpush1.msra.mxu0 0.0
    %3385 = vmatprep.subr.mxu0 0.0
    %3386 = vmatpush1.msra.mxu0 0.0
    %3387 = vmatprep.subr.mxu0 0.0
    %3388 = vmatpush1.msra.mxu0 0.0
    %3389 = vmatprep.subr.mxu0 0.0
    %3390 = vmatpush1.msra.mxu0 0.0
    %3391 = vmatprep.subr.mxu0 0.0
    %3392 = vmatpush1.msra.mxu0 0.0
    %3393 = vmatprep.subr.mxu0 0.0
    %3394 = vmatpush1.msra.mxu0 0.0
    %3395 = vmatprep.subr.mxu0 0.0
    %3396 = vmatpush1.msra.mxu0 0.0
    %3397 = vmatprep.subr.mxu0 0.0
    %3398 = vmatpush1.msra.mxu0 0.0
    %3399 = vmatprep.subr.mxu0 0.0
    %3400 = vmatpush1.msra.mxu0 0.0
    %3401 = vmatprep.subr.mxu0 0.0
    %3402 = vmatpush1.msra.mxu0 0.0
    %3403 = vmatprep.subr.mxu0 0.0
    %3404 = vmatpush1.msra.mxu0 0.0
    %3405 = vmatprep.subr.mxu0 0.0
    %3406 = vmatpush1.msra.mxu0 0.0
    %3407 = vmatprep.subr.mxu0 0.0
    %3408 = vmatpush1.msra.mxu0 0.0
    %3409 = vmatprep.subr.mxu0 0.0
    %3410 = vmatpush1.msra.mxu0 0.0
    %3411 = vmatprep.subr.mxu0 0.0
    %3412 = vmatpush1.msra.mxu0 0.0
    %3413 = vmatprep.subr.mxu0 0.0
    %3414 = vmatpush1.msra.mxu0 0.0
    %3415 = vmatprep.subr.mxu0 0.0
    %3416 = vmatpush1.msra.mxu0 0.0
    %3417 = vmatprep.subr.mxu0 0.0
    %3418 = vmatpush1.msra.mxu0 0.0
    %3419 = vmatprep.subr.mxu0 0.0
    %3420 = vmatpush1.msra.mxu0 0.0
    %3421 = vmatprep.subr.mxu0 0.0
    %3422 = vmatpush1.msra.mxu0 0.0
    %3423 = vmatprep.mubr.f32.mxu0 0.0
    %3424 = vmatmul.mubr.f32.gmra.mrb[0].mxu0 %v3357
    %v3425 = vpop.f32.mrb[0].mxu0
    %v3426 = vadd.f32 0.0, %v3425
    %v3427 = vpop.f32.mrb[0].mxu0
    %3428 = vdwg.mxu0
    %3429 = vmatprep.subr.mxu0 0.0
    %3430 = vmatpush1.msra.mxu0 %v2612
    %3431 = vmatprep.subr.mxu0 0.0
    %3432 = vmatpush1.msra.mxu0 %v2613
    %3433 = vmatprep.subr.mxu0 0.0
    %3434 = vmatpush1.msra.mxu0 %v2614
    %3435 = vmatprep.subr.mxu0 0.0
    %3436 = vmatpush1.msra.mxu0 %v2615
    %3437 = vmatprep.subr.mxu0 0.0
    %3438 = vmatpush1.msra.mxu0 0.0
    %3439 = vmatprep.subr.mxu0 0.0
    %3440 = vmatpush1.msra.mxu0 0.0
    %3441 = vmatprep.subr.mxu0 0.0
    %3442 = vmatpush1.msra.mxu0 0.0
    %3443 = vmatprep.subr.mxu0 0.0
    %3444 = vmatpush1.msra.mxu0 0.0
    %3445 = vmatprep.subr.mxu0 0.0
    %3446 = vmatpush1.msra.mxu0 0.0
    %3447 = vmatprep.subr.mxu0 0.0
    %3448 = vmatpush1.msra.mxu0 0.0
    %3449 = vmatprep.subr.mxu0 0.0
    %3450 = vmatpush1.msra.mxu0 0.0
    %3451 = vmatprep.subr.mxu0 0.0
    %3452 = vmatpush1.msra.mxu0 0.0
    %3453 = vmatprep.subr.mxu0 0.0
    %3454 = vmatpush1.msra.mxu0 0.0
    %3455 = vmatprep.subr.mxu0 0.0
    %3456 = vmatpush1.msra.mxu0 0.0
    %3457 = vmatprep.subr.mxu0 0.0
    %3458 = vmatpush1.msra.mxu0 0.0
    %3459 = vmatprep.subr.mxu0 0.0
    %3460 = vmatpush1.msra.mxu0 0.0
    %3461 = vmatprep.subr.mxu0 0.0
    %3462 = vmatpush1.msra.mxu0 0.0
    %3463 = vmatprep.subr.mxu0 0.0
    %3464 = vmatpush1.msra.mxu0 0.0
    %3465 = vmatprep.subr.mxu0 0.0
    %3466 = vmatpush1.msra.mxu0 0.0
    %3467 = vmatprep.subr.mxu0 0.0
    %3468 = vmatpush1.msra.mxu0 0.0
    %3469 = vmatprep.subr.mxu0 0.0
    %3470 = vmatpush1.msra.mxu0 0.0
    %3471 = vmatprep.subr.mxu0 0.0
    %3472 = vmatpush1.msra.mxu0 0.0
    %3473 = vmatprep.subr.mxu0 0.0
    %3474 = vmatpush1.msra.mxu0 0.0
    %3475 = vmatprep.subr.mxu0 0.0
    %3476 = vmatpush1.msra.mxu0 0.0
    %3477 = vmatprep.subr.mxu0 0.0
    %3478 = vmatpush1.msra.mxu0 0.0
    %3479 = vmatprep.subr.mxu0 0.0
    %3480 = vmatpush1.msra.mxu0 0.0
    %3481 = vmatprep.subr.mxu0 0.0
    %3482 = vmatpush1.msra.mxu0 0.0
    %3483 = vmatprep.subr.mxu0 0.0
    %3484 = vmatpush1.msra.mxu0 0.0
    %3485 = vmatprep.subr.mxu0 0.0
    %3486 = vmatpush1.msra.mxu0 0.0
    %3487 = vmatprep.subr.mxu0 0.0
    %3488 = vmatpush1.msra.mxu0 0.0
    %3489 = vmatprep.subr.mxu0 0.0
    %3490 = vmatpush1.msra.mxu0 0.0
    %3491 = vmatprep.subr.mxu0 0.0
    %3492 = vmatpush1.msra.mxu0 0.0
    %3493 = vmatprep.mubr.f32.mxu0 0.0
    %3494 = vmatmul.mubr.f32.gmra.mrb[0].mxu0 %v3357
    %v3495 = vpop.f32.mrb[0].mxu0
    %v3496 = vadd.f32 0.0, %v3495
    %v3497 = vpop.f32.mrb[0].mxu0
    %3498 = vdwg.mxu0
    %3499 = vmatprep.subr.mxu0 0.0
    %3500 = vmatpush1.msra.mxu0 %v2617
    %3501 = vmatprep.subr.mxu0 0.0
    %3502 = vmatpush1.msra.mxu0 %v2618
    %3503 = vmatprep.subr.mxu0 0.0
    %3504 = vmatpush1.msra.mxu0 %v2619
    %3505 = vmatprep.subr.mxu0 0.0
    %3506 = vmatpush1.msra.mxu0 %v2620
    %3507 = vmatprep.subr.mxu0 0.0
    %3508 = vmatpush1.msra.mxu0 0.0
    %3509 = vmatprep.subr.mxu0 0.0
    %3510 = vmatpush1.msra.mxu0 0.0
    %3511 = vmatprep.subr.mxu0 0.0
    %3512 = vmatpush1.msra.mxu0 0.0
    %3513 = vmatprep.subr.mxu0 0.0
    %3514 = vmatpush1.msra.mxu0 0.0
    %3515 = vmatprep.subr.mxu0 0.0
    %3516 = vmatpush1.msra.mxu0 0.0
    %3517 = vmatprep.subr.mxu0 0.0
    %3518 = vmatpush1.msra.mxu0 0.0
    %3519 = vmatprep.subr.mxu0 0.0
    %3520 = vmatpush1.msra.mxu0 0.0
    %3521 = vmatprep.subr.mxu0 0.0
    %3522 = vmatpush1.msra.mxu0 0.0
    %3523 = vmatprep.subr.mxu0 0.0
    %3524 = vmatpush1.msra.mxu0 0.0
    %3525 = vmatprep.subr.mxu0 0.0
    %3526 = vmatpush1.msra.mxu0 0.0
    %3527 = vmatprep.subr.mxu0 0.0
    %3528 = vmatpush1.msra.mxu0 0.0
    %3529 = vmatprep.subr.mxu0 0.0
    %3530 = vmatpush1.msra.mxu0 0.0
    %3531 = vmatprep.subr.mxu0 0.0
    %3532 = vmatpush1.msra.mxu0 0.0
    %3533 = vmatprep.subr.mxu0 0.0
    %3534 = vmatpush1.msra.mxu0 0.0
    %3535 = vmatprep.subr.mxu0 0.0
    %3536 = vmatpush1.msra.mxu0 0.0
    %3537 = vmatprep.subr.mxu0 0.0
    %3538 = vmatpush1.msra.mxu0 0.0
    %3539 = vmatprep.subr.mxu0 0.0
    %3540 = vmatpush1.msra.mxu0 0.0
    %3541 = vmatprep.subr.mxu0 0.0
    %3542 = vmatpush1.msra.mxu0 0.0
    %3543 = vmatprep.subr.mxu0 0.0
    %3544 = vmatpush1.msra.mxu0 0.0
    %3545 = vmatprep.subr.mxu0 0.0
    %3546 = vmatpush1.msra.mxu0 0.0
    %3547 = vmatprep.subr.mxu0 0.0
    %3548 = vmatpush1.msra.mxu0 0.0
    %3549 = vmatprep.subr.mxu0 0.0
    %3550 = vmatpush1.msra.mxu0 0.0
    %3551 = vmatprep.subr.mxu0 0.0
    %3552 = vmatpush1.msra.mxu0 0.0
    %3553 = vmatprep.subr.mxu0 0.0
    %3554 = vmatpush1.msra.mxu0 0.0
    %3555 = vmatprep.subr.mxu0 0.0
    %3556 = vmatpush1.msra.mxu0 0.0
    %3557 = vmatprep.subr.mxu0 0.0
    %3558 = vmatpush1.msra.mxu0 0.0
    %3559 = vmatprep.subr.mxu0 0.0
    %3560 = vmatpush1.msra.mxu0 0.0
    %3561 = vmatprep.subr.mxu0 0.0
    %3562 = vmatpush1.msra.mxu0 0.0
    %3563 = vmatprep.mubr.f32.mxu0 0.0
    %3564 = vmatmul.mubr.f32.gmra.mrb[0].mxu0 %v3357
    %v3565 = vpop.f32.mrb[0].mxu0
    %v3566 = vadd.f32 %v2766, %v3565
    %v3567 = vpop.f32.mrb[0].mxu0
    %3568 = vdwg.mxu0
    %v3570 = vrot.slane %v3426, 2
    %v3572 = vadd.f32 %v2423, %v3570
    %v3573 = vxor.u32 %v3572, 2147483648
    %v3574 = vmul.f32 %v3573, 1.442695
    %v3575 = vpow.pop %v3574
    %v3576 = vadd.f32 %v3575, 1.0
    %v3577 = vrcp.pop %v3576
    %v3578 = vmul.f32 1.0, %v3577
    %v3580 = vrot.slane %v3496, 2
    %v3582 = vadd.f32 %v2511, %v3580
    %v3583 = vxor.u32 %v3582, 2147483648
    %v3584 = vmul.f32 %v3583, 1.442695
    %v3585 = vpow.pop %v3584
    %v3586 = vadd.f32 %v3585, 1.0
    %v3587 = vrcp.pop %v3586
    %v3588 = vmul.f32 1.0, %v3587
    %v3590 = vrot.slane %v3566, 2
    %v3592 = vmul.f32 %v3578, %v3590
    %v3593 = vadd.f32 %v2599, %v3592
    %v3594 = vtanh.pop %v3593
    %v3595 = vsub.f32 1.0, %v3588
    %v3596 = vmul.f32 %v3595, %v3594
    %v3597 = vrot.slane %v3352, 6
    %v3599 = vmul.f32 %v3588, %v3597
    %v3600 = vadd.f32 %v3596, %v3599
    %v3602 = vrot.slane %v3600, 6
    %v3604 = vadd.f32 %v3356, %v3602
    %v3605 = vsel %vm374, %v3602, 0
    %3607 = vmatprep.subr.mxu0 0.0
    %3608 = vmatpush1.msra.mxu0 %v2607
    %3609 = vmatprep.subr.mxu0 0.0
    %3610 = vmatpush1.msra.mxu0 %v2608
    %3611 = vmatprep.subr.mxu0 0.0
    %3612 = vmatpush1.msra.mxu0 %v2609
    %3613 = vmatprep.subr.mxu0 0.0
    %3614 = vmatpush1.msra.mxu0 %v2610
    %3615 = vmatprep.subr.mxu0 0.0
    %3616 = vmatpush1.msra.mxu0 0.0
    %3617 = vmatprep.subr.mxu0 0.0
    %3618 = vmatpush1.msra.mxu0 0.0
    %3619 = vmatprep.subr.mxu0 0.0
    %3620 = vmatpush1.msra.mxu0 0.0
    %3621 = vmatprep.subr.mxu0 0.0
    %3622 = vmatpush1.msra.mxu0 0.0
    %3623 = vmatprep.subr.mxu0 0.0
    %3624 = vmatpush1.msra.mxu0 0.0
    %3625 = vmatprep.subr.mxu0 0.0
    %3626 = vmatpush1.msra.mxu0 0.0
    %3627 = vmatprep.subr.mxu0 0.0
    %3628 = vmatpush1.msra.mxu0 0.0
    %3629 = vmatprep.subr.mxu0 0.0
    %3630 = vmatpush1.msra.mxu0 0.0
    %3631 = vmatprep.subr.mxu0 0.0
    %3632 = vmatpush1.msra.mxu0 0.0
    %3633 = vmatprep.subr.mxu0 0.0
    %3634 = vmatpush1.msra.mxu0 0.0
    %3635 = vmatprep.subr.mxu0 0.0
    %3636 = vmatpush1.msra.mxu0 0.0
    %3637 = vmatprep.subr.mxu0 0.0
    %3638 = vmatpush1.msra.mxu0 0.0
    %3639 = vmatprep.subr.mxu0 0.0
    %3640 = vmatpush1.msra.mxu0 0.0
    %3641 = vmatprep.subr.mxu0 0.0
    %3642 = vmatpush1.msra.mxu0 0.0
    %3643 = vmatprep.subr.mxu0 0.0
    %3644 = vmatpush1.msra.mxu0 0.0
    %3645 = vmatprep.subr.mxu0 0.0
    %3646 = vmatpush1.msra.mxu0 0.0
    %3647 = vmatprep.subr.mxu0 0.0
    %3648 = vmatpush1.msra.mxu0 0.0
    %3649 = vmatprep.subr.mxu0 0.0
    %3650 = vmatpush1.msra.mxu0 0.0
    %3651 = vmatprep.subr.mxu0 0.0
    %3652 = vmatpush1.msra.mxu0 0.0
    %3653 = vmatprep.subr.mxu0 0.0
    %3654 = vmatpush1.msra.mxu0 0.0
    %3655 = vmatprep.subr.mxu0 0.0
    %3656 = vmatpush1.msra.mxu0 0.0
    %3657 = vmatprep.subr.mxu0 0.0
    %3658 = vmatpush1.msra.mxu0 0.0
    %3659 = vmatprep.subr.mxu0 0.0
    %3660 = vmatpush1.msra.mxu0 0.0
    %3661 = vmatprep.subr.mxu0 0.0
    %3662 = vmatpush1.msra.mxu0 0.0
    %3663 = vmatprep.subr.mxu0 0.0
    %3664 = vmatpush1.msra.mxu0 0.0
    %3665 = vmatprep.subr.mxu0 0.0
    %3666 = vmatpush1.msra.mxu0 0.0
    %3667 = vmatprep.subr.mxu0 0.0
    %3668 = vmatpush1.msra.mxu0 0.0
    %3669 = vmatprep.subr.mxu0 0.0
    %3670 = vmatpush1.msra.mxu0 0.0
    %3671 = vmatprep.mubr.f32.mxu0 0.0
    %3672 = vmatmul.mubr.f32.gmra.mrb[0].mxu0 %v3605
    %v3673 = vpop.f32.mrb[0].mxu0
    %v3674 = vadd.f32 0.0, %v3673
    %v3675 = vpop.f32.mrb[0].mxu0
    %3676 = vdwg.mxu0
    %3677 = vmatprep.subr.mxu0 0.0
    %3678 = vmatpush1.msra.mxu0 %v2612
    %3679 = vmatprep.subr.mxu0 0.0
    %3680 = vmatpush1.msra.mxu0 %v2613
    %3681 = vmatprep.subr.mxu0 0.0
    %3682 = vmatpush1.msra.mxu0 %v2614
    %3683 = vmatprep.subr.mxu0 0.0
    %3684 = vmatpush1.msra.mxu0 %v2615
    %3685 = vmatprep.subr.mxu0 0.0
    %3686 = vmatpush1.msra.mxu0 0.0
    %3687 = vmatprep.subr.mxu0 0.0
    %3688 = vmatpush1.msra.mxu0 0.0
    %3689 = vmatprep.subr.mxu0 0.0
    %3690 = vmatpush1.msra.mxu0 0.0
    %3691 = vmatprep.subr.mxu0 0.0
    %3692 = vmatpush1.msra.mxu0 0.0
    %3693 = vmatprep.subr.mxu0 0.0
    %3694 = vmatpush1.msra.mxu0 0.0
    %3695 = vmatprep.subr.mxu0 0.0
    %3696 = vmatpush1.msra.mxu0 0.0
    %3697 = vmatprep.subr.mxu0 0.0
    %3698 = vmatpush1.msra.mxu0 0.0
    %3699 = vmatprep.subr.mxu0 0.0
    %3700 = vmatpush1.msra.mxu0 0.0
    %3701 = vmatprep.subr.mxu0 0.0
    %3702 = vmatpush1.msra.mxu0 0.0
    %3703 = vmatprep.subr.mxu0 0.0
    %3704 = vmatpush1.msra.mxu0 0.0
    %3705 = vmatprep.subr.mxu0 0.0
    %3706 = vmatpush1.msra.mxu0 0.0
    %3707 = vmatprep.subr.mxu0 0.0
    %3708 = vmatpush1.msra.mxu0 0.0
    %3709 = vmatprep.subr.mxu0 0.0
    %3710 = vmatpush1.msra.mxu0 0.0
    %3711 = vmatprep.subr.mxu0 0.0
    %3712 = vmatpush1.msra.mxu0 0.0
    %3713 = vmatprep.subr.mxu0 0.0
    %3714 = vmatpush1.msra.mxu0 0.0
    %3715 = vmatprep.subr.mxu0 0.0
    %3716 = vmatpush1.msra.mxu0 0.0
    %3717 = vmatprep.subr.mxu0 0.0
    %3718 = vmatpush1.msra.mxu0 0.0
    %3719 = vmatprep.subr.mxu0 0.0
    %3720 = vmatpush1.msra.mxu0 0.0
    %3721 = vmatprep.subr.mxu0 0.0
    %3722 = vmatpush1.msra.mxu0 0.0
    %3723 = vmatprep.subr.mxu0 0.0
    %3724 = vmatpush1.msra.mxu0 0.0
    %3725 = vmatprep.subr.mxu0 0.0
    %3726 = vmatpush1.msra.mxu0 0.0
    %3727 = vmatprep.subr.mxu0 0.0
    %3728 = vmatpush1.msra.mxu0 0.0
    %3729 = vmatprep.subr.mxu0 0.0
    %3730 = vmatpush1.msra.mxu0 0.0
    %3731 = vmatprep.subr.mxu0 0.0
    %3732 = vmatpush1.msra.mxu0 0.0
    %3733 = vmatprep.subr.mxu0 0.0
    %3734 = vmatpush1.msra.mxu0 0.0
    %3735 = vmatprep.subr.mxu0 0.0
    %3736 = vmatpush1.msra.mxu0 0.0
    %3737 = vmatprep.subr.mxu0 0.0
    %3738 = vmatpush1.msra.mxu0 0.0
    %3739 = vmatprep.subr.mxu0 0.0
    %3740 = vmatpush1.msra.mxu0 0.0
    %3741 = vmatprep.mubr.f32.mxu0 0.0
    %3742 = vmatmul.mubr.f32.gmra.mrb[0].mxu0 %v3605
    %v3743 = vpop.f32.mrb[0].mxu0
    %v3744 = vadd.f32 0.0, %v3743
    %v3745 = vpop.f32.mrb[0].mxu0
    %3746 = vdwg.mxu0
    %3747 = vmatprep.subr.mxu0 0.0
    %3748 = vmatpush1.msra.mxu0 %v2617
    %3749 = vmatprep.subr.mxu0 0.0
    %3750 = vmatpush1.msra.mxu0 %v2618
    %3751 = vmatprep.subr.mxu0 0.0
    %3752 = vmatpush1.msra.mxu0 %v2619
    %3753 = vmatprep.subr.mxu0 0.0
    %3754 = vmatpush1.msra.mxu0 %v2620
    %3755 = vmatprep.subr.mxu0 0.0
    %3756 = vmatpush1.msra.mxu0 0.0
    %3757 = vmatprep.subr.mxu0 0.0
    %3758 = vmatpush1.msra.mxu0 0.0
    %3759 = vmatprep.subr.mxu0 0.0
    %3760 = vmatpush1.msra.mxu0 0.0
    %3761 = vmatprep.subr.mxu0 0.0
    %3762 = vmatpush1.msra.mxu0 0.0
    %3763 = vmatprep.subr.mxu0 0.0
    %3764 = vmatpush1.msra.mxu0 0.0
    %3765 = vmatprep.subr.mxu0 0.0
    %3766 = vmatpush1.msra.mxu0 0.0
    %3767 = vmatprep.subr.mxu0 0.0
    %3768 = vmatpush1.msra.mxu0 0.0
    %3769 = vmatprep.subr.mxu0 0.0
    %3770 = vmatpush1.msra.mxu0 0.0
    %3771 = vmatprep.subr.mxu0 0.0
    %3772 = vmatpush1.msra.mxu0 0.0
    %3773 = vmatprep.subr.mxu0 0.0
    %3774 = vmatpush1.msra.mxu0 0.0
    %3775 = vmatprep.subr.mxu0 0.0
    %3776 = vmatpush1.msra.mxu0 0.0
    %3777 = vmatprep.subr.mxu0 0.0
    %3778 = vmatpush1.msra.mxu0 0.0
    %3779 = vmatprep.subr.mxu0 0.0
    %3780 = vmatpush1.msra.mxu0 0.0
    %3781 = vmatprep.subr.mxu0 0.0
    %3782 = vmatpush1.msra.mxu0 0.0
    %3783 = vmatprep.subr.mxu0 0.0
    %3784 = vmatpush1.msra.mxu0 0.0
    %3785 = vmatprep.subr.mxu0 0.0
    %3786 = vmatpush1.msra.mxu0 0.0
    %3787 = vmatprep.subr.mxu0 0.0
    %3788 = vmatpush1.msra.mxu0 0.0
    %3789 = vmatprep.subr.mxu0 0.0
    %3790 = vmatpush1.msra.mxu0 0.0
    %3791 = vmatprep.subr.mxu0 0.0
    %3792 = vmatpush1.msra.mxu0 0.0
    %3793 = vmatprep.subr.mxu0 0.0
    %3794 = vmatpush1.msra.mxu0 0.0
    %3795 = vmatprep.subr.mxu0 0.0
    %3796 = vmatpush1.msra.mxu0 0.0
    %3797 = vmatprep.subr.mxu0 0.0
    %3798 = vmatpush1.msra.mxu0 0.0
    %3799 = vmatprep.subr.mxu0 0.0
    %3800 = vmatpush1.msra.mxu0 0.0
    %3801 = vmatprep.subr.mxu0 0.0
    %3802 = vmatpush1.msra.mxu0 0.0
    %3803 = vmatprep.subr.mxu0 0.0
    %3804 = vmatpush1.msra.mxu0 0.0
    %3805 = vmatprep.subr.mxu0 0.0
    %3806 = vmatpush1.msra.mxu0 0.0
    %3807 = vmatprep.subr.mxu0 0.0
    %3808 = vmatpush1.msra.mxu0 0.0
    %3809 = vmatprep.subr.mxu0 0.0
    %3810 = vmatpush1.msra.mxu0 0.0
    %3811 = vmatprep.mubr.f32.mxu0 0.0
    %3812 = vmatmul.mubr.f32.gmra.mrb[0].mxu0 %v3605
    %v3813 = vpop.f32.mrb[0].mxu0
    %v3814 = vadd.f32 %v2766, %v3813
    %v3815 = vpop.f32.mrb[0].mxu0
    %3816 = vdwg.mxu0
    %v3817 = vadd.f32 %v2428, %v3674
    %v3818 = vxor.u32 %v3817, 2147483648
    %v3819 = vmul.f32 %v3818, 1.442695
    %v3820 = vpow.pop %v3819
    %v3821 = vadd.f32 %v3820, 1.0
    %v3822 = vrcp.pop %v3821
    %v3823 = vmul.f32 1.0, %v3822
    %v3824 = vadd.f32 %v2516, %v3744
    %v3825 = vxor.u32 %v3824, 2147483648
    %v3826 = vmul.f32 %v3825, 1.442695
    %v3827 = vpow.pop %v3826
    %v3828 = vadd.f32 %v3827, 1.0
    %v3829 = vrcp.pop %v3828
    %v3830 = vmul.f32 1.0, %v3829
    %v3831 = vmul.f32 %v3823, %v3814
    %v3832 = vadd.f32 %v2604, %v3831
    %v3833 = vtanh.pop %v3832
    %v3834 = vsub.f32 1.0, %v3830
    %v3835 = vmul.f32 %v3834, %v3833
    %v3836 = vmul.f32 %v3830, %v3602
    %v3837 = vadd.f32 %v3835, %v3836
    %v3838 = vadd.f32 %v3604, %v3837
    %v3840 = vsel %vm374, %v3837, 0
    %3842 = vmatprep.subr.mxu0 0.0
    %3843 = vmatpush1.msra.mxu0 %v2607
    %3844 = vmatprep.subr.mxu0 0.0
    %3845 = vmatpush1.msra.mxu0 %v2608
    %3846 = vmatprep.subr.mxu0 0.0
    %3847 = vmatpush1.msra.mxu0 %v2609
    %3848 = vmatprep.subr.mxu0 0.0
    %3849 = vmatpush1.msra.mxu0 %v2610
    %3850 = vmatprep.subr.mxu0 0.0
    %3851 = vmatpush1.msra.mxu0 0.0
    %3852 = vmatprep.subr.mxu0 0.0
    %3853 = vmatpush1.msra.mxu0 0.0
    %3854 = vmatprep.subr.mxu0 0.0
    %3855 = vmatpush1.msra.mxu0 0.0
    %3856 = vmatprep.subr.mxu0 0.0
    %3857 = vmatpush1.msra.mxu0 0.0
    %3858 = vmatprep.subr.mxu0 0.0
    %3859 = vmatpush1.msra.mxu0 0.0
    %3860 = vmatprep.subr.mxu0 0.0
    %3861 = vmatpush1.msra.mxu0 0.0
    %3862 = vmatprep.subr.mxu0 0.0
    %3863 = vmatpush1.msra.mxu0 0.0
    %3864 = vmatprep.subr.mxu0 0.0
    %3865 = vmatpush1.msra.mxu0 0.0
    %3866 = vmatprep.subr.mxu0 0.0
    %3867 = vmatpush1.msra.mxu0 0.0
    %3868 = vmatprep.subr.mxu0 0.0
    %3869 = vmatpush1.msra.mxu0 0.0
    %3870 = vmatprep.subr.mxu0 0.0
    %3871 = vmatpush1.msra.mxu0 0.0
    %3872 = vmatprep.subr.mxu0 0.0
    %3873 = vmatpush1.msra.mxu0 0.0
    %3874 = vmatprep.subr.mxu0 0.0
    %3875 = vmatpush1.msra.mxu0 0.0
    %3876 = vmatprep.subr.mxu0 0.0
    %3877 = vmatpush1.msra.mxu0 0.0
    %3878 = vmatprep.subr.mxu0 0.0
    %3879 = vmatpush1.msra.mxu0 0.0
    %3880 = vmatprep.subr.mxu0 0.0
    %3881 = vmatpush1.msra.mxu0 0.0
    %3882 = vmatprep.subr.mxu0 0.0
    %3883 = vmatpush1.msra.mxu0 0.0
    %3884 = vmatprep.subr.mxu0 0.0
    %3885 = vmatpush1.msra.mxu0 0.0
    %3886 = vmatprep.subr.mxu0 0.0
    %3887 = vmatpush1.msra.mxu0 0.0
    %3888 = vmatprep.subr.mxu0 0.0
    %3889 = vmatpush1.msra.mxu0 0.0
    %3890 = vmatprep.subr.mxu0 0.0
    %3891 = vmatpush1.msra.mxu0 0.0
    %3892 = vmatprep.subr.mxu0 0.0
    %3893 = vmatpush1.msra.mxu0 0.0
    %3894 = vmatprep.subr.mxu0 0.0
    %3895 = vmatpush1.msra.mxu0 0.0
    %3896 = vmatprep.subr.mxu0 0.0
    %3897 = vmatpush1.msra.mxu0 0.0
    %3898 = vmatprep.subr.mxu0 0.0
    %3899 = vmatpush1.msra.mxu0 0.0
    %3900 = vmatprep.subr.mxu0 0.0
    %3901 = vmatpush1.msra.mxu0 0.0
    %3902 = vmatprep.subr.mxu0 0.0
    %3903 = vmatpush1.msra.mxu0 0.0
    %3904 = vmatprep.subr.mxu0 0.0
    %3905 = vmatpush1.msra.mxu0 0.0
    %3906 = vmatprep.mubr.f32.mxu0 0.0
    %3907 = vmatmul.mubr.f32.gmra.mrb[0].mxu0 %v3840
    %v3908 = vpop.f32.mrb[0].mxu0
    %v3909 = vadd.f32 0.0, %v3908
    %v3910 = vpop.f32.mrb[0].mxu0
    %3911 = vdwg.mxu0
    %3912 = vmatprep.subr.mxu0 0.0
    %3913 = vmatpush1.msra.mxu0 %v2612
    %3914 = vmatprep.subr.mxu0 0.0
    %3915 = vmatpush1.msra.mxu0 %v2613
    %3916 = vmatprep.subr.mxu0 0.0
    %3917 = vmatpush1.msra.mxu0 %v2614
    %3918 = vmatprep.subr.mxu0 0.0
    %3919 = vmatpush1.msra.mxu0 %v2615
    %3920 = vmatprep.subr.mxu0 0.0
    %3921 = vmatpush1.msra.mxu0 0.0
    %3922 = vmatprep.subr.mxu0 0.0
    %3923 = vmatpush1.msra.mxu0 0.0
    %3924 = vmatprep.subr.mxu0 0.0
    %3925 = vmatpush1.msra.mxu0 0.0
    %3926 = vmatprep.subr.mxu0 0.0
    %3927 = vmatpush1.msra.mxu0 0.0
    %3928 = vmatprep.subr.mxu0 0.0
    %3929 = vmatpush1.msra.mxu0 0.0
    %3930 = vmatprep.subr.mxu0 0.0
    %3931 = vmatpush1.msra.mxu0 0.0
    %3932 = vmatprep.subr.mxu0 0.0
    %3933 = vmatpush1.msra.mxu0 0.0
    %3934 = vmatprep.subr.mxu0 0.0
    %3935 = vmatpush1.msra.mxu0 0.0
    %3936 = vmatprep.subr.mxu0 0.0
    %3937 = vmatpush1.msra.mxu0 0.0
    %3938 = vmatprep.subr.mxu0 0.0
    %3939 = vmatpush1.msra.mxu0 0.0
    %3940 = vmatprep.subr.mxu0 0.0
    %3941 = vmatpush1.msra.mxu0 0.0
    %3942 = vmatprep.subr.mxu0 0.0
    %3943 = vmatpush1.msra.mxu0 0.0
    %3944 = vmatprep.subr.mxu0 0.0
    %3945 = vmatpush1.msra.mxu0 0.0
    %3946 = vmatprep.subr.mxu0 0.0
    %3947 = vmatpush1.msra.mxu0 0.0
    %3948 = vmatprep.subr.mxu0 0.0
    %3949 = vmatpush1.msra.mxu0 0.0
    %3950 = vmatprep.subr.mxu0 0.0
    %3951 = vmatpush1.msra.mxu0 0.0
    %3952 = vmatprep.subr.mxu0 0.0
    %3953 = vmatpush1.msra.mxu0 0.0
    %3954 = vmatprep.subr.mxu0 0.0
    %3955 = vmatpush1.msra.mxu0 0.0
    %3956 = vmatprep.subr.mxu0 0.0
    %3957 = vmatpush1.msra.mxu0 0.0
    %3958 = vmatprep.subr.mxu0 0.0
    %3959 = vmatpush1.msra.mxu0 0.0
    %3960 = vmatprep.subr.mxu0 0.0
    %3961 = vmatpush1.msra.mxu0 0.0
    %3962 = vmatprep.subr.mxu0 0.0
    %3963 = vmatpush1.msra.mxu0 0.0
    %3964 = vmatprep.subr.mxu0 0.0
    %3965 = vmatpush1.msra.mxu0 0.0
    %3966 = vmatprep.subr.mxu0 0.0
    %3967 = vmatpush1.msra.mxu0 0.0
    %3968 = vmatprep.subr.mxu0 0.0
    %3969 = vmatpush1.msra.mxu0 0.0
    %3970 = vmatprep.subr.mxu0 0.0
    %3971 = vmatpush1.msra.mxu0 0.0
    %3972 = vmatprep.subr.mxu0 0.0
    %3973 = vmatpush1.msra.mxu0 0.0
    %3974 = vmatprep.subr.mxu0 0.0
    %3975 = vmatpush1.msra.mxu0 0.0
    %3976 = vmatprep.mubr.f32.mxu0 0.0
    %3977 = vmatmul.mubr.f32.gmra.mrb[0].mxu0 %v3840
    %v3978 = vpop.f32.mrb[0].mxu0
    %v3979 = vadd.f32 0.0, %v3978
    %v3980 = vpop.f32.mrb[0].mxu0
    %3981 = vdwg.mxu0
    %3982 = vmatprep.subr.mxu0 0.0
    %3983 = vmatpush1.msra.mxu0 %v2617
    %3984 = vmatprep.subr.mxu0 0.0
    %3985 = vmatpush1.msra.mxu0 %v2618
    %3986 = vmatprep.subr.mxu0 0.0
    %3987 = vmatpush1.msra.mxu0 %v2619
    %3988 = vmatprep.subr.mxu0 0.0
    %3989 = vmatpush1.msra.mxu0 %v2620
    %3990 = vmatprep.subr.mxu0 0.0
    %3991 = vmatpush1.msra.mxu0 0.0
    %3992 = vmatprep.subr.mxu0 0.0
    %3993 = vmatpush1.msra.mxu0 0.0
    %3994 = vmatprep.subr.mxu0 0.0
    %3995 = vmatpush1.msra.mxu0 0.0
    %3996 = vmatprep.subr.mxu0 0.0
    %3997 = vmatpush1.msra.mxu0 0.0
    %3998 = vmatprep.subr.mxu0 0.0
    %3999 = vmatpush1.msra.mxu0 0.0
    %4000 = vmatprep.subr.mxu0 0.0
    %4001 = vmatpush1.msra.mxu0 0.0
    %4002 = vmatprep.subr.mxu0 0.0
    %4003 = vmatpush1.msra.mxu0 0.0
    %4004 = vmatprep.subr.mxu0 0.0
    %4005 = vmatpush1.msra.mxu0 0.0
    %4006 = vmatprep.subr.mxu0 0.0
    %4007 = vmatpush1.msra.mxu0 0.0
    %4008 = vmatprep.subr.mxu0 0.0
    %4009 = vmatpush1.msra.mxu0 0.0
    %4010 = vmatprep.subr.mxu0 0.0
    %4011 = vmatpush1.msra.mxu0 0.0
    %4012 = vmatprep.subr.mxu0 0.0
    %4013 = vmatpush1.msra.mxu0 0.0
    %4014 = vmatprep.subr.mxu0 0.0
    %4015 = vmatpush1.msra.mxu0 0.0
    %4016 = vmatprep.subr.mxu0 0.0
    %4017 = vmatpush1.msra.mxu0 0.0
    %4018 = vmatprep.subr.mxu0 0.0
    %4019 = vmatpush1.msra.mxu0 0.0
    %4020 = vmatprep.subr.mxu0 0.0
    %4021 = vmatpush1.msra.mxu0 0.0
    %4022 = vmatprep.subr.mxu0 0.0
    %4023 = vmatpush1.msra.mxu0 0.0
    %4024 = vmatprep.subr.mxu0 0.0
    %4025 = vmatpush1.msra.mxu0 0.0
    %4026 = vmatprep.subr.mxu0 0.0
    %4027 = vmatpush1.msra.mxu0 0.0
    %4028 = vmatprep.subr.mxu0 0.0
    %4029 = vmatpush1.msra.mxu0 0.0
    %4030 = vmatprep.subr.mxu0 0.0
    %4031 = vmatpush1.msra.mxu0 0.0
    %4032 = vmatprep.subr.mxu0 0.0
    %4033 = vmatpush1.msra.mxu0 0.0
    %4034 = vmatprep.subr.mxu0 0.0
    %4035 = vmatpush1.msra.mxu0 0.0
    %4036 = vmatprep.subr.mxu0 0.0
    %4037 = vmatpush1.msra.mxu0 0.0
    %4038 = vmatprep.subr.mxu0 0.0
    %4039 = vmatpush1.msra.mxu0 0.0
    %4040 = vmatprep.subr.mxu0 0.0
    %4041 = vmatpush1.msra.mxu0 0.0
    %4042 = vmatprep.subr.mxu0 0.0
    %4043 = vmatpush1.msra.mxu0 0.0
    %4044 = vmatprep.subr.mxu0 0.0
    %4045 = vmatpush1.msra.mxu0 0.0
    %4046 = vmatprep.mubr.f32.mxu0 0.0
    %4047 = vmatmul.mubr.f32.gmra.mrb[0].mxu0 %v3840
    %v4048 = vpop.f32.mrb[0].mxu0
    %v4049 = vadd.f32 %v2766, %v4048
    %v4050 = vpop.f32.mrb[0].mxu0
    %4051 = vdwg.mxu0
    %v4053 = vrot.slane %v3909, 6
    %v4055 = vadd.f32 %v2428, %v4053
    %v4056 = vxor.u32 %v4055, 2147483648
    %v4057 = vmul.f32 %v4056, 1.442695
    %v4058 = vpow.pop %v4057
    %v4059 = vadd.f32 %v4058, 1.0
    %v4060 = vrcp.pop %v4059
    %v4061 = vmul.f32 1.0, %v4060
    %v4063 = vrot.slane %v3979, 6
    %v4065 = vadd.f32 %v2516, %v4063
    %v4066 = vxor.u32 %v4065, 2147483648
    %v4067 = vmul.f32 %v4066, 1.442695
    %v4068 = vpow.pop %v4067
    %v4069 = vadd.f32 %v4068, 1.0
    %v4070 = vrcp.pop %v4069
    %v4071 = vmul.f32 1.0, %v4070
    %v4073 = vrot.slane %v4049, 6
    %v4075 = vmul.f32 %v4061, %v4073
    %v4076 = vadd.f32 %v2604, %v4075
    %v4077 = vtanh.pop %v4076
    %v4078 = vsub.f32 1.0, %v4071
    %v4079 = vmul.f32 %v4078, %v4077
    %v4080 = vrot.slane %v3837, 6
    %v4082 = vmul.f32 %v4071, %v4080
    %v4083 = vadd.f32 %v4079, %v4082
    %v4085 = vrot.slane %v4083, 2
    %v4087 = vadd.f32 %v3838, %v4085
    %v4088 = vsel %vm374, %v4085, 0
    %4090 = vmatprep.subr.mxu0 0.0
    %4091 = vmatpush1.msra.mxu0 %v2607
    %4092 = vmatprep.subr.mxu0 0.0
    %4093 = vmatpush1.msra.mxu0 %v2608
    %4094 = vmatprep.subr.mxu0 0.0
    %4095 = vmatpush1.msra.mxu0 %v2609
    %4096 = vmatprep.subr.mxu0 0.0
    %4097 = vmatpush1.msra.mxu0 %v2610
    %4098 = vmatprep.subr.mxu0 0.0
    %4099 = vmatpush1.msra.mxu0 0.0
    %4100 = vmatprep.subr.mxu0 0.0
    %4101 = vmatpush1.msra.mxu0 0.0
    %4102 = vmatprep.subr.mxu0 0.0
    %4103 = vmatpush1.msra.mxu0 0.0
    %4104 = vmatprep.subr.mxu0 0.0
    %4105 = vmatpush1.msra.mxu0 0.0
    %4106 = vmatprep.subr.mxu0 0.0
    %4107 = vmatpush1.msra.mxu0 0.0
    %4108 = vmatprep.subr.mxu0 0.0
    %4109 = vmatpush1.msra.mxu0 0.0
    %4110 = vmatprep.subr.mxu0 0.0
    %4111 = vmatpush1.msra.mxu0 0.0
    %4112 = vmatprep.subr.mxu0 0.0
    %4113 = vmatpush1.msra.mxu0 0.0
    %4114 = vmatprep.subr.mxu0 0.0
    %4115 = vmatpush1.msra.mxu0 0.0
    %4116 = vmatprep.subr.mxu0 0.0
    %4117 = vmatpush1.msra.mxu0 0.0
    %4118 = vmatprep.subr.mxu0 0.0
    %4119 = vmatpush1.msra.mxu0 0.0
    %4120 = vmatprep.subr.mxu0 0.0
    %4121 = vmatpush1.msra.mxu0 0.0
    %4122 = vmatprep.subr.mxu0 0.0
    %4123 = vmatpush1.msra.mxu0 0.0
    %4124 = vmatprep.subr.mxu0 0.0
    %4125 = vmatpush1.msra.mxu0 0.0
    %4126 = vmatprep.subr.mxu0 0.0
    %4127 = vmatpush1.msra.mxu0 0.0
    %4128 = vmatprep.subr.mxu0 0.0
    %4129 = vmatpush1.msra.mxu0 0.0
    %4130 = vmatprep.subr.mxu0 0.0
    %4131 = vmatpush1.msra.mxu0 0.0
    %4132 = vmatprep.subr.mxu0 0.0
    %4133 = vmatpush1.msra.mxu0 0.0
    %4134 = vmatprep.subr.mxu0 0.0
    %4135 = vmatpush1.msra.mxu0 0.0
    %4136 = vmatprep.subr.mxu0 0.0
    %4137 = vmatpush1.msra.mxu0 0.0
    %4138 = vmatprep.subr.mxu0 0.0
    %4139 = vmatpush1.msra.mxu0 0.0
    %4140 = vmatprep.subr.mxu0 0.0
    %4141 = vmatpush1.msra.mxu0 0.0
    %4142 = vmatprep.subr.mxu0 0.0
    %4143 = vmatpush1.msra.mxu0 0.0
    %4144 = vmatprep.subr.mxu0 0.0
    %4145 = vmatpush1.msra.mxu0 0.0
    %4146 = vmatprep.subr.mxu0 0.0
    %4147 = vmatpush1.msra.mxu0 0.0
    %4148 = vmatprep.subr.mxu0 0.0
    %4149 = vmatpush1.msra.mxu0 0.0
    %4150 = vmatprep.subr.mxu0 0.0
    %4151 = vmatpush1.msra.mxu0 0.0
    %4152 = vmatprep.subr.mxu0 0.0
    %4153 = vmatpush1.msra.mxu0 0.0
    %4154 = vmatprep.mubr.f32.mxu0 0.0
    %4155 = vmatmul.mubr.f32.gmra.mrb[0].mxu0 %v4088
    %v4156 = vpop.f32.mrb[0].mxu0
    %v4157 = vadd.f32 0.0, %v4156
    %v4158 = vpop.f32.mrb[0].mxu0
    %4159 = vdwg.mxu0
    %4160 = vmatprep.subr.mxu0 0.0
    %4161 = vmatpush1.msra.mxu0 %v2612
    %4162 = vmatprep.subr.mxu0 0.0
    %4163 = vmatpush1.msra.mxu0 %v2613
    %4164 = vmatprep.subr.mxu0 0.0
    %4165 = vmatpush1.msra.mxu0 %v2614
    %4166 = vmatprep.subr.mxu0 0.0
    %4167 = vmatpush1.msra.mxu0 %v2615
    %4168 = vmatprep.subr.mxu0 0.0
    %4169 = vmatpush1.msra.mxu0 0.0
    %4170 = vmatprep.subr.mxu0 0.0
    %4171 = vmatpush1.msra.mxu0 0.0
    %4172 = vmatprep.subr.mxu0 0.0
    %4173 = vmatpush1.msra.mxu0 0.0
    %4174 = vmatprep.subr.mxu0 0.0
    %4175 = vmatpush1.msra.mxu0 0.0
    %4176 = vmatprep.subr.mxu0 0.0
    %4177 = vmatpush1.msra.mxu0 0.0
    %4178 = vmatprep.subr.mxu0 0.0
    %4179 = vmatpush1.msra.mxu0 0.0
    %4180 = vmatprep.subr.mxu0 0.0
    %4181 = vmatpush1.msra.mxu0 0.0
    %4182 = vmatprep.subr.mxu0 0.0
    %4183 = vmatpush1.msra.mxu0 0.0
    %4184 = vmatprep.subr.mxu0 0.0
    %4185 = vmatpush1.msra.mxu0 0.0
    %4186 = vmatprep.subr.mxu0 0.0
    %4187 = vmatpush1.msra.mxu0 0.0
    %4188 = vmatprep.subr.mxu0 0.0
    %4189 = vmatpush1.msra.mxu0 0.0
    %4190 = vmatprep.subr.mxu0 0.0
    %4191 = vmatpush1.msra.mxu0 0.0
    %4192 = vmatprep.subr.mxu0 0.0
    %4193 = vmatpush1.msra.mxu0 0.0
    %4194 = vmatprep.subr.mxu0 0.0
    %4195 = vmatpush1.msra.mxu0 0.0
    %4196 = vmatprep.subr.mxu0 0.0
    %4197 = vmatpush1.msra.mxu0 0.0
    %4198 = vmatprep.subr.mxu0 0.0
    %4199 = vmatpush1.msra.mxu0 0.0
    %4200 = vmatprep.subr.mxu0 0.0
    %4201 = vmatpush1.msra.mxu0 0.0
    %4202 = vmatprep.subr.mxu0 0.0
    %4203 = vmatpush1.msra.mxu0 0.0
    %4204 = vmatprep.subr.mxu0 0.0
    %4205 = vmatpush1.msra.mxu0 0.0
    %4206 = vmatprep.subr.mxu0 0.0
    %4207 = vmatpush1.msra.mxu0 0.0
    %4208 = vmatprep.subr.mxu0 0.0
    %4209 = vmatpush1.msra.mxu0 0.0
    %4210 = vmatprep.subr.mxu0 0.0
    %4211 = vmatpush1.msra.mxu0 0.0
    %4212 = vmatprep.subr.mxu0 0.0
    %4213 = vmatpush1.msra.mxu0 0.0
    %4214 = vmatprep.subr.mxu0 0.0
    %4215 = vmatpush1.msra.mxu0 0.0
    %4216 = vmatprep.subr.mxu0 0.0
    %4217 = vmatpush1.msra.mxu0 0.0
    %4218 = vmatprep.subr.mxu0 0.0
    %4219 = vmatpush1.msra.mxu0 0.0
    %4220 = vmatprep.subr.mxu0 0.0
    %4221 = vmatpush1.msra.mxu0 0.0
    %4222 = vmatprep.subr.mxu0 0.0
    %4223 = vmatpush1.msra.mxu0 0.0
    %4224 = vmatprep.mubr.f32.mxu0 0.0
    %4225 = vmatmul.mubr.f32.gmra.mrb[0].mxu0 %v4088
    %v4226 = vpop.f32.mrb[0].mxu0
    %v4227 = vadd.f32 0.0, %v4226
    %v4228 = vpop.f32.mrb[0].mxu0
    %4229 = vdwg.mxu0
    %4230 = vmatprep.subr.mxu0 0.0
    %4231 = vmatpush1.msra.mxu0 %v2617
    %4232 = vmatprep.subr.mxu0 0.0
    %4233 = vmatpush1.msra.mxu0 %v2618
    %4234 = vmatprep.subr.mxu0 0.0
    %4235 = vmatpush1.msra.mxu0 %v2619
    %4236 = vmatprep.subr.mxu0 0.0
    %4237 = vmatpush1.msra.mxu0 %v2620
    %4238 = vmatprep.subr.mxu0 0.0
    %4239 = vmatpush1.msra.mxu0 0.0
    %4240 = vmatprep.subr.mxu0 0.0
    %4241 = vmatpush1.msra.mxu0 0.0
    %4242 = vmatprep.subr.mxu0 0.0
    %4243 = vmatpush1.msra.mxu0 0.0
    %4244 = vmatprep.subr.mxu0 0.0
    %4245 = vmatpush1.msra.mxu0 0.0
    %4246 = vmatprep.subr.mxu0 0.0
    %4247 = vmatpush1.msra.mxu0 0.0
    %4248 = vmatprep.subr.mxu0 0.0
    %4249 = vmatpush1.msra.mxu0 0.0
    %4250 = vmatprep.subr.mxu0 0.0
    %4251 = vmatpush1.msra.mxu0 0.0
    %4252 = vmatprep.subr.mxu0 0.0
    %4253 = vmatpush1.msra.mxu0 0.0
    %4254 = vmatprep.subr.mxu0 0.0
    %4255 = vmatpush1.msra.mxu0 0.0
    %4256 = vmatprep.subr.mxu0 0.0
    %4257 = vmatpush1.msra.mxu0 0.0
    %4258 = vmatprep.subr.mxu0 0.0
    %4259 = vmatpush1.msra.mxu0 0.0
    %4260 = vmatprep.subr.mxu0 0.0
    %4261 = vmatpush1.msra.mxu0 0.0
    %4262 = vmatprep.subr.mxu0 0.0
    %4263 = vmatpush1.msra.mxu0 0.0
    %4264 = vmatprep.subr.mxu0 0.0
    %4265 = vmatpush1.msra.mxu0 0.0
    %4266 = vmatprep.subr.mxu0 0.0
    %4267 = vmatpush1.msra.mxu0 0.0
    %4268 = vmatprep.subr.mxu0 0.0
    %4269 = vmatpush1.msra.mxu0 0.0
    %4270 = vmatprep.subr.mxu0 0.0
    %4271 = vmatpush1.msra.mxu0 0.0
    %4272 = vmatprep.subr.mxu0 0.0
    %4273 = vmatpush1.msra.mxu0 0.0
    %4274 = vmatprep.subr.mxu0 0.0
    %4275 = vmatpush1.msra.mxu0 0.0
    %4276 = vmatprep.subr.mxu0 0.0
    %4277 = vmatpush1.msra.mxu0 0.0
    %4278 = vmatprep.subr.mxu0 0.0
    %4279 = vmatpush1.msra.mxu0 0.0
    %4280 = vmatprep.subr.mxu0 0.0
    %4281 = vmatpush1.msra.mxu0 0.0
    %4282 = vmatprep.subr.mxu0 0.0
    %4283 = vmatpush1.msra.mxu0 0.0
    %4284 = vmatprep.subr.mxu0 0.0
    %4285 = vmatpush1.msra.mxu0 0.0
    %4286 = vmatprep.subr.mxu0 0.0
    %4287 = vmatpush1.msra.mxu0 0.0
    %4288 = vmatprep.subr.mxu0 0.0
    %4289 = vmatpush1.msra.mxu0 0.0
    %4290 = vmatprep.subr.mxu0 0.0
    %4291 = vmatpush1.msra.mxu0 0.0
    %4292 = vmatprep.subr.mxu0 0.0
    %4293 = vmatpush1.msra.mxu0 0.0
    %4294 = vmatprep.mubr.f32.mxu0 0.0
    %4295 = vmatmul.mubr.f32.gmra.mrb[0].mxu0 %v4088
    %v4296 = vpop.f32.mrb[0].mxu0
    %v4297 = vadd.f32 %v2766, %v4296
    %v4298 = vpop.f32.mrb[0].mxu0
    %4299 = vdwg.mxu0
    %v4301 = vrot.slane %v4157, 4
    %v4303 = vadd.f32 %v2428, %v4301
    %v4304 = vxor.u32 %v4303, 2147483648
    %v4305 = vmul.f32 %v4304, 1.442695
    %v4306 = vpow.pop %v4305
    %v4307 = vadd.f32 %v4306, 1.0
    %v4308 = vrcp.pop %v4307
    %v4309 = vmul.f32 1.0, %v4308
    %v4311 = vrot.slane %v4227, 4
    %v4313 = vadd.f32 %v2516, %v4311
    %v4314 = vxor.u32 %v4313, 2147483648
    %v4315 = vmul.f32 %v4314, 1.442695
    %v4316 = vpow.pop %v4315
    %v4317 = vadd.f32 %v4316, 1.0
    %v4318 = vrcp.pop %v4317
    %v4319 = vmul.f32 1.0, %v4318
    %v4321 = vrot.slane %v4297, 4
    %v4323 = vmul.f32 %v4309, %v4321
    %v4324 = vadd.f32 %v2604, %v4323
    %v4325 = vtanh.pop %v4324
    %v4326 = vsub.f32 1.0, %v4319
    %v4327 = vmul.f32 %v4326, %v4325
    %v4328 = vrot.slane %v4083, 6
    %v4330 = vmul.f32 %v4319, %v4328
    %v4331 = vadd.f32 %v4327, %v4330
    %v4333 = vrot.slane %v4331, 4
    %v4335 = vadd.f32 %v4087, %v4333
    %v4336 = vsel %vm374, %v4333, 0
    %4338 = vmatprep.subr.mxu0 0.0
    %4339 = vmatpush1.msra.mxu0 %v2607
    %4340 = vmatprep.subr.mxu0 0.0
    %4341 = vmatpush1.msra.mxu0 %v2608
    %4342 = vmatprep.subr.mxu0 0.0
    %4343 = vmatpush1.msra.mxu0 %v2609
    %4344 = vmatprep.subr.mxu0 0.0
    %4345 = vmatpush1.msra.mxu0 %v2610
    %4346 = vmatprep.subr.mxu0 0.0
    %4347 = vmatpush1.msra.mxu0 0.0
    %4348 = vmatprep.subr.mxu0 0.0
    %4349 = vmatpush1.msra.mxu0 0.0
    %4350 = vmatprep.subr.mxu0 0.0
    %4351 = vmatpush1.msra.mxu0 0.0
    %4352 = vmatprep.subr.mxu0 0.0
    %4353 = vmatpush1.msra.mxu0 0.0
    %4354 = vmatprep.subr.mxu0 0.0
    %4355 = vmatpush1.msra.mxu0 0.0
    %4356 = vmatprep.subr.mxu0 0.0
    %4357 = vmatpush1.msra.mxu0 0.0
    %4358 = vmatprep.subr.mxu0 0.0
    %4359 = vmatpush1.msra.mxu0 0.0
    %4360 = vmatprep.subr.mxu0 0.0
    %4361 = vmatpush1.msra.mxu0 0.0
    %4362 = vmatprep.subr.mxu0 0.0
    %4363 = vmatpush1.msra.mxu0 0.0
    %4364 = vmatprep.subr.mxu0 0.0
    %4365 = vmatpush1.msra.mxu0 0.0
    %4366 = vmatprep.subr.mxu0 0.0
    %4367 = vmatpush1.msra.mxu0 0.0
    %4368 = vmatprep.subr.mxu0 0.0
    %4369 = vmatpush1.msra.mxu0 0.0
    %4370 = vmatprep.subr.mxu0 0.0
    %4371 = vmatpush1.msra.mxu0 0.0
    %4372 = vmatprep.subr.mxu0 0.0
    %4373 = vmatpush1.msra.mxu0 0.0
    %4374 = vmatprep.subr.mxu0 0.0
    %4375 = vmatpush1.msra.mxu0 0.0
    %4376 = vmatprep.subr.mxu0 0.0
    %4377 = vmatpush1.msra.mxu0 0.0
    %4378 = vmatprep.subr.mxu0 0.0
    %4379 = vmatpush1.msra.mxu0 0.0
    %4380 = vmatprep.subr.mxu0 0.0
    %4381 = vmatpush1.msra.mxu0 0.0
    %4382 = vmatprep.subr.mxu0 0.0
    %4383 = vmatpush1.msra.mxu0 0.0
    %4384 = vmatprep.subr.mxu0 0.0
    %4385 = vmatpush1.msra.mxu0 0.0
    %4386 = vmatprep.subr.mxu0 0.0
    %4387 = vmatpush1.msra.mxu0 0.0
    %4388 = vmatprep.subr.mxu0 0.0
    %4389 = vmatpush1.msra.mxu0 0.0
    %4390 = vmatprep.subr.mxu0 0.0
    %4391 = vmatpush1.msra.mxu0 0.0
    %4392 = vmatprep.subr.mxu0 0.0
    %4393 = vmatpush1.msra.mxu0 0.0
    %4394 = vmatprep.subr.mxu0 0.0
    %4395 = vmatpush1.msra.mxu0 0.0
    %4396 = vmatprep.subr.mxu0 0.0
    %4397 = vmatpush1.msra.mxu0 0.0
    %4398 = vmatprep.subr.mxu0 0.0
    %4399 = vmatpush1.msra.mxu0 0.0
    %4400 = vmatprep.subr.mxu0 0.0
    %4401 = vmatpush1.msra.mxu0 0.0
    %4402 = vmatprep.mubr.f32.mxu0 0.0
    %4403 = vmatmul.mubr.f32.gmra.mrb[0].mxu0 %v4336
    %v4404 = vpop.f32.mrb[0].mxu0
    %v4405 = vadd.f32 0.0, %v4404
    %v4406 = vpop.f32.mrb[0].mxu0
    %4407 = vdwg.mxu0
    %4408 = vmatprep.subr.mxu0 0.0
    %4409 = vmatpush1.msra.mxu0 %v2612
    %4410 = vmatprep.subr.mxu0 0.0
    %4411 = vmatpush1.msra.mxu0 %v2613
    %4412 = vmatprep.subr.mxu0 0.0
    %4413 = vmatpush1.msra.mxu0 %v2614
    %4414 = vmatprep.subr.mxu0 0.0
    %4415 = vmatpush1.msra.mxu0 %v2615
    %4416 = vmatprep.subr.mxu0 0.0
    %4417 = vmatpush1.msra.mxu0 0.0
    %4418 = vmatprep.subr.mxu0 0.0
    %4419 = vmatpush1.msra.mxu0 0.0
    %4420 = vmatprep.subr.mxu0 0.0
    %4421 = vmatpush1.msra.mxu0 0.0
    %4422 = vmatprep.subr.mxu0 0.0
    %4423 = vmatpush1.msra.mxu0 0.0
    %4424 = vmatprep.subr.mxu0 0.0
    %4425 = vmatpush1.msra.mxu0 0.0
    %4426 = vmatprep.subr.mxu0 0.0
    %4427 = vmatpush1.msra.mxu0 0.0
    %4428 = vmatprep.subr.mxu0 0.0
    %4429 = vmatpush1.msra.mxu0 0.0
    %4430 = vmatprep.subr.mxu0 0.0
    %4431 = vmatpush1.msra.mxu0 0.0
    %4432 = vmatprep.subr.mxu0 0.0
    %4433 = vmatpush1.msra.mxu0 0.0
    %4434 = vmatprep.subr.mxu0 0.0
    %4435 = vmatpush1.msra.mxu0 0.0
    %4436 = vmatprep.subr.mxu0 0.0
    %4437 = vmatpush1.msra.mxu0 0.0
    %4438 = vmatprep.subr.mxu0 0.0
    %4439 = vmatpush1.msra.mxu0 0.0
    %4440 = vmatprep.subr.mxu0 0.0
    %4441 = vmatpush1.msra.mxu0 0.0
    %4442 = vmatprep.subr.mxu0 0.0
    %4443 = vmatpush1.msra.mxu0 0.0
    %4444 = vmatprep.subr.mxu0 0.0
    %4445 = vmatpush1.msra.mxu0 0.0
    %4446 = vmatprep.subr.mxu0 0.0
    %4447 = vmatpush1.msra.mxu0 0.0
    %4448 = vmatprep.subr.mxu0 0.0
    %4449 = vmatpush1.msra.mxu0 0.0
    %4450 = vmatprep.subr.mxu0 0.0
    %4451 = vmatpush1.msra.mxu0 0.0
    %4452 = vmatprep.subr.mxu0 0.0
    %4453 = vmatpush1.msra.mxu0 0.0
    %4454 = vmatprep.subr.mxu0 0.0
    %4455 = vmatpush1.msra.mxu0 0.0
    %4456 = vmatprep.subr.mxu0 0.0
    %4457 = vmatpush1.msra.mxu0 0.0
    %4458 = vmatprep.subr.mxu0 0.0
    %4459 = vmatpush1.msra.mxu0 0.0
    %4460 = vmatprep.subr.mxu0 0.0
    %4461 = vmatpush1.msra.mxu0 0.0
    %4462 = vmatprep.subr.mxu0 0.0
    %4463 = vmatpush1.msra.mxu0 0.0
    %4464 = vmatprep.subr.mxu0 0.0
    %4465 = vmatpush1.msra.mxu0 0.0
    %4466 = vmatprep.subr.mxu0 0.0
    %4467 = vmatpush1.msra.mxu0 0.0
    %4468 = vmatprep.subr.mxu0 0.0
    %4469 = vmatpush1.msra.mxu0 0.0
    %4470 = vmatprep.subr.mxu0 0.0
    %4471 = vmatpush1.msra.mxu0 0.0
    %4472 = vmatprep.mubr.f32.mxu0 0.0
    %4473 = vmatmul.mubr.f32.gmra.mrb[0].mxu0 %v4336
    %v4474 = vpop.f32.mrb[0].mxu0
    %v4475 = vadd.f32 0.0, %v4474
    %v4476 = vpop.f32.mrb[0].mxu0
    %4477 = vdwg.mxu0
    %4478 = vmatprep.subr.mxu0 0.0
    %4479 = vmatpush1.msra.mxu0 %v2617
    %4480 = vmatprep.subr.mxu0 0.0
    %4481 = vmatpush1.msra.mxu0 %v2618
    %4482 = vmatprep.subr.mxu0 0.0
    %4483 = vmatpush1.msra.mxu0 %v2619
    %4484 = vmatprep.subr.mxu0 0.0
    %4485 = vmatpush1.msra.mxu0 %v2620
    %4486 = vmatprep.subr.mxu0 0.0
    %4487 = vmatpush1.msra.mxu0 0.0
    %4488 = vmatprep.subr.mxu0 0.0
    %4489 = vmatpush1.msra.mxu0 0.0
    %4490 = vmatprep.subr.mxu0 0.0
    %4491 = vmatpush1.msra.mxu0 0.0
    %4492 = vmatprep.subr.mxu0 0.0
    %4493 = vmatpush1.msra.mxu0 0.0
    %4494 = vmatprep.subr.mxu0 0.0
    %4495 = vmatpush1.msra.mxu0 0.0
    %4496 = vmatprep.subr.mxu0 0.0
    %4497 = vmatpush1.msra.mxu0 0.0
    %4498 = vmatprep.subr.mxu0 0.0
    %4499 = vmatpush1.msra.mxu0 0.0
    %4500 = vmatprep.subr.mxu0 0.0
    %4501 = vmatpush1.msra.mxu0 0.0
    %4502 = vmatprep.subr.mxu0 0.0
    %4503 = vmatpush1.msra.mxu0 0.0
    %4504 = vmatprep.subr.mxu0 0.0
    %4505 = vmatpush1.msra.mxu0 0.0
    %4506 = vmatprep.subr.mxu0 0.0
    %4507 = vmatpush1.msra.mxu0 0.0
    %4508 = vmatprep.subr.mxu0 0.0
    %4509 = vmatpush1.msra.mxu0 0.0
    %4510 = vmatprep.subr.mxu0 0.0
    %4511 = vmatpush1.msra.mxu0 0.0
    %4512 = vmatprep.subr.mxu0 0.0
    %4513 = vmatpush1.msra.mxu0 0.0
    %4514 = vmatprep.subr.mxu0 0.0
    %4515 = vmatpush1.msra.mxu0 0.0
    %4516 = vmatprep.subr.mxu0 0.0
    %4517 = vmatpush1.msra.mxu0 0.0
    %4518 = vmatprep.subr.mxu0 0.0
    %4519 = vmatpush1.msra.mxu0 0.0
    %4520 = vmatprep.subr.mxu0 0.0
    %4521 = vmatpush1.msra.mxu0 0.0
    %4522 = vmatprep.subr.mxu0 0.0
    %4523 = vmatpush1.msra.mxu0 0.0
    %4524 = vmatprep.subr.mxu0 0.0
    %4525 = vmatpush1.msra.mxu0 0.0
    %4526 = vmatprep.subr.mxu0 0.0
    %4527 = vmatpush1.msra.mxu0 0.0
    %4528 = vmatprep.subr.mxu0 0.0
    %4529 = vmatpush1.msra.mxu0 0.0
    %4530 = vmatprep.subr.mxu0 0.0
    %4531 = vmatpush1.msra.mxu0 0.0
    %4532 = vmatprep.subr.mxu0 0.0
    %4533 = vmatpush1.msra.mxu0 0.0
    %4534 = vmatprep.subr.mxu0 0.0
    %4535 = vmatpush1.msra.mxu0 0.0
    %4536 = vmatprep.subr.mxu0 0.0
    %4537 = vmatpush1.msra.mxu0 0.0
    %4538 = vmatprep.subr.mxu0 0.0
    %4539 = vmatpush1.msra.mxu0 0.0
    %4540 = vmatprep.subr.mxu0 0.0
    %4541 = vmatpush1.msra.mxu0 0.0
    %4542 = vmatprep.mubr.f32.mxu0 0.0
    %4543 = vmatmul.mubr.f32.gmra.mrb[0].mxu0 %v4336
    %v4544 = vpop.f32.mrb[0].mxu0
    %v4545 = vadd.f32 %v2766, %v4544
    %v4546 = vpop.f32.mrb[0].mxu0
    %4547 = vdwg.mxu0
    %v4549 = vrot.slane %v4405, 2
    %v4551 = vadd.f32 %v2428, %v4549
    %v4552 = vxor.u32 %v4551, 2147483648
    %v4553 = vmul.f32 %v4552, 1.442695
    %v4554 = vpow.pop %v4553
    %v4555 = vadd.f32 %v4554, 1.0
    %v4556 = vrcp.pop %v4555
    %v4557 = vmul.f32 1.0, %v4556
    %v4559 = vrot.slane %v4475, 2
    %v4561 = vadd.f32 %v2516, %v4559
    %v4562 = vxor.u32 %v4561, 2147483648
    %v4563 = vmul.f32 %v4562, 1.442695
    %v4564 = vpow.pop %v4563
    %v4565 = vadd.f32 %v4564, 1.0
    %v4566 = vrcp.pop %v4565
    %v4567 = vmul.f32 1.0, %v4566
    %v4569 = vrot.slane %v4545, 2
    %v4571 = vmul.f32 %v4557, %v4569
    %v4572 = vadd.f32 %v2604, %v4571
    %v4573 = vtanh.pop %v4572
    %v4574 = vsub.f32 1.0, %v4567
    %v4575 = vmul.f32 %v4574, %v4573
    %v4576 = vrot.slane %v4331, 6
    %v4578 = vmul.f32 %v4567, %v4576
    %v4579 = vadd.f32 %v4575, %v4578
    %v4581 = vrot.slane %v4579, 6
    %v4583 = vadd.f32 %v4335, %v4581
    %v4584 = vmul.f32 %v4583, 0.125
    %v4585 = vld [vmem:[%s9] sm:$0xff]
    %v4586 = vld [vmem:[%s9 + $0x8] sm:$0xff]
    %v4587 = vld [vmem:[%s9 + $0x10] sm:$0xff]
    %v4588 = vld [vmem:[%s9 + $0x18] sm:$0xff]
    %v4589 = vld [vmem:[%s10] sm:$0x1]
    %v4591 = vlaneseq
    %v4592 = vshrl.u32 %v4591, 7
    %v4593 = vsub.s32 0, %v4592
    %v4594 = vrot.slane %v4589, %v4593
    %v4597 = vsel %vm374, %v4584, 0
    %4599 = vmatprep.subr.mxu0 0.0
    %4600 = vmatpush1.msra.mxu0 %v4585
    %4601 = vmatprep.subr.mxu0 0.0
    %4602 = vmatpush1.msra.mxu0 %v4586
    %4603 = vmatprep.subr.mxu0 0.0
    %4604 = vmatpush1.msra.mxu0 %v4587
    %4605 = vmatprep.subr.mxu0 0.0
    %4606 = vmatpush1.msra.mxu0 %v4588
    %4607 = vmatprep.subr.mxu0 0.0
    %4608 = vmatpush1.msra.mxu0 0.0
    %4609 = vmatprep.subr.mxu0 0.0
    %4610 = vmatpush1.msra.mxu0 0.0
    %4611 = vmatprep.subr.mxu0 0.0
    %4612 = vmatpush1.msra.mxu0 0.0
    %4613 = vmatprep.subr.mxu0 0.0
    %4614 = vmatpush1.msra.mxu0 0.0
    %4615 = vmatprep.subr.mxu0 0.0
    %4616 = vmatpush1.msra.mxu0 0.0
    %4617 = vmatprep.subr.mxu0 0.0
    %4618 = vmatpush1.msra.mxu0 0.0
    %4619 = vmatprep.subr.mxu0 0.0
    %4620 = vmatpush1.msra.mxu0 0.0
    %4621 = vmatprep.subr.mxu0 0.0
    %4622 = vmatpush1.msra.mxu0 0.0
    %4623 = vmatprep.subr.mxu0 0.0
    %4624 = vmatpush1.msra.mxu0 0.0
    %4625 = vmatprep.subr.mxu0 0.0
    %4626 = vmatpush1.msra.mxu0 0.0
    %4627 = vmatprep.subr.mxu0 0.0
    %4628 = vmatpush1.msra.mxu0 0.0
    %4629 = vmatprep.subr.mxu0 0.0
    %4630 = vmatpush1.msra.mxu0 0.0
    %4631 = vmatprep.subr.mxu0 0.0
    %4632 = vmatpush1.msra.mxu0 0.0
    %4633 = vmatprep.subr.mxu0 0.0
    %4634 = vmatpush1.msra.mxu0 0.0
    %4635 = vmatprep.subr.mxu0 0.0
    %4636 = vmatpush1.msra.mxu0 0.0
    %4637 = vmatprep.subr.mxu0 0.0
    %4638 = vmatpush1.msra.mxu0 0.0
    %4639 = vmatprep.subr.mxu0 0.0
    %4640 = vmatpush1.msra.mxu0 0.0
    %4641 = vmatprep.subr.mxu0 0.0
    %4642 = vmatpush1.msra.mxu0 0.0
    %4643 = vmatprep.subr.mxu0 0.0
    %4644 = vmatpush1.msra.mxu0 0.0
    %4645 = vmatprep.subr.mxu0 0.0
    %4646 = vmatpush1.msra.mxu0 0.0
    %4647 = vmatprep.subr.mxu0 0.0
    %4648 = vmatpush1.msra.mxu0 0.0
    %4649 = vmatprep.subr.mxu0 0.0
    %4650 = vmatpush1.msra.mxu0 0.0
    %4651 = vmatprep.subr.mxu0 0.0
    %4652 = vmatpush1.msra.mxu0 0.0
    %4653 = vmatprep.subr.mxu0 0.0
    %4654 = vmatpush1.msra.mxu0 0.0
    %4655 = vmatprep.subr.mxu0 0.0
    %4656 = vmatpush1.msra.mxu0 0.0
    %4657 = vmatprep.subr.mxu0 0.0
    %4658 = vmatpush1.msra.mxu0 0.0
    %4659 = vmatprep.subr.mxu0 0.0
    %4660 = vmatpush1.msra.mxu0 0.0
    %4661 = vmatprep.subr.mxu0 0.0
    %4662 = vmatpush1.msra.mxu0 0.0
    %4663 = vmatprep.mubr.f32.mxu0 0.0
    %4664 = vmatmul.mubr.f32.gmra.mrb[0].mxu0 %v4597
    %v4665 = vpop.f32.mrb[0].mxu0
    %v4666 = vadd.f32 %v4594, %v4665
    %v4667 = vpop.f32.mrb[0].mxu0
    %4668 = vdwg.mxu0
    %vm4669 = vcmask 25600
    %4670 = vst.msk [vmem:[#allocation11] sm:$0x3] %vm4669, %v4666
    // Predicated region
    $region62: #{tpu_custom_call.1} parent=1 // pred_check
      _
    $region63: #{tpu_custom_call.1} parent=1 // pred_check_branch
      %4672 = sbr.rel (0) target = $region65
    $region64: #{tpu_custom_call.1} parent=1 // pred_region
      %s4674 = ssub.s32 32, 32
      %4675 = vsyncadd [#allocation5], %s4674
      %s4677 = sshll.u32 [#allocation11], 4
      %s4678 = int_to_ptr.vmem [resolvable:$true] %s4677
      %4680 = dma.vmem_to_hbm [thread:$0]  %s4678, 32, %s11, [#allocation5]
    $region65: #{tpu_custom_call.1} parent=1 // pred_fallthru
      _
    // Predicated region
    $region66: #{tpu_custom_call.1} parent=1 // pred_check
      _
    $region67: #{tpu_custom_call.1} parent=1 // pred_check_branch
      %4682 = sbr.rel (0) target = $region69
    $region68: #{tpu_custom_call.1} parent=1 // pred_region
      %4683 = dma.done [#allocation5], 32
    $region69: #{tpu_custom_call.1} parent=1 // pred_fallthru
      _
    %4684 = vsyncpa [#allocation4], 1
    %4685 = vsyncpa [#allocation7], 1
    %4686 = vsyncpa [#allocation10], 1
    %4687 = vsyncpa [#allocation5], 1

</llo_original>
